<compile_context>
chip_gen: v6e
topology: v6e:2x2x1
jax: 0.10.0
libtpu: 0.0.40
codegen_flags: <defaults>
</compile_context>

<pallas_src>
import functools
import math

import jax
import jax.numpy as jnp
from jax.experimental import pallas as pl
from jax.experimental.pallas import tpu as pltpu

EPS = 1e-5
_ROW_TILE_TARGET = 512  # rows per grid step; keeps double-buffered tiles small


def _pick_row_tile(M, target=_ROW_TILE_TARGET):
    """Largest multiple-of-8 divisor of M that is <= target; else full M."""
    best = M
    for t in range(8, min(M, target) + 1, 8):
        if M % t == 0:
            best = t
    return best


# ----------------------------- Pallas kernels ------------------------------ #
def _head_kernel(x_ref, w1_ref, b1_ref, w2_ref, b2_ref, o_ref):
    """conv1 (1x4 im2col) + BN + ReLU  ->  conv2 (1x1) + BN + ReLU, fused."""
    y = jnp.dot(x_ref[...], w1_ref[...], preferred_element_type=jnp.float32)
    y = jnp.maximum(y + b1_ref[...], 0.0)
    y = jnp.dot(y.astype(w2_ref.dtype), w2_ref[...],
                preferred_element_type=jnp.float32)
    y = jnp.maximum(y + b2_ref[...], 0.0)
    o_ref[...] = y.astype(o_ref.dtype)


def _invres_kernel(x0_ref, x1_ref, we_ref, b1_ref, w0_ref, w1_ref, b2_ref,
                   wp_ref, b3_ref, o_ref, *, add_residual):
    """Fused inverted-residual block on one row tile.

    x0/x1 are the two row-streams feeding the (2,1) depthwise taps (even/odd
    rows for stride 2; row i / row i+1-with-reflection for stride 1).  The
    expanded [tm, 6C] activation lives only in vregs/VMEM.
    """
    # expansion 1x1 conv (BN1 scale folded into we) + ReLU6, on both taps
    y0 = jnp.dot(x0_ref[...], we_ref[...], preferred_element_type=jnp.float32)
    y0 = jnp.clip(y0 + b1_ref[...], 0.0, 6.0)
    y1 = jnp.dot(x1_ref[...], we_ref[...], preferred_element_type=jnp.float32)
    y1 = jnp.clip(y1 + b1_ref[...], 0.0, 6.0)
    # depthwise (2,1) conv + BN2 + ReLU6 (BN2 scale folded into the taps)
    dw = jnp.clip(y0 * w0_ref[...] + y1 * w1_ref[...] + b2_ref[...], 0.0, 6.0)
    # pointwise 1x1 conv + BN3 (+ residual), no activation
    z = jnp.dot(dw.astype(wp_ref.dtype), wp_ref[...],
                preferred_element_type=jnp.float32)
    z = z + b3_ref[...]
    if add_residual:
        z = z + x0_ref[...].astype(jnp.float32)
    o_ref[...] = z.astype(o_ref.dtype)


def _tail_kernel(x_ref, w1_ref, b1_ref, w2_ref, b2_ref, o_ref):
    """fc1 + ReLU -> fc2 fused (inputs already flattened)."""
    y = jnp.dot(x_ref[...], w1_ref[...], preferred_element_type=jnp.float32)
    y = jnp.maximum(y + b1_ref[...], 0.0)
    y = jnp.dot(y.astype(w2_ref.dtype), w2_ref[...],
                preferred_element_type=jnp.float32)
    o_ref[...] = (y + b2_ref[...]).astype(o_ref.dtype)


def _row_tiled_call(kernel, row_inputs, param_inputs, out_cols, out_dtype,
                    cost=None):
    """pallas_call with a 1-D 'parallel' grid over row tiles.

    Row inputs / output use (tm, C) blocks (tm a multiple of 8, or the full
    extent); weights & biases are small full blocks resident across the grid.
    """
    M = row_inputs[0].shape[0]
    tm = _pick_row_tile(M)
    in_specs = ([pl.BlockSpec((tm, x.shape[1]), lambda i: (i, 0))
                 for x in row_inputs] +
                [pl.BlockSpec(p.shape, lambda i: (0, 0))
                 for p in param_inputs])
    return pl.pallas_call(
        kernel,
        grid=(M // tm,),
        in_specs=in_specs,
        out_specs=pl.BlockSpec((tm, out_cols), lambda i: (i, 0)),
        out_shape=jax.ShapeDtypeStruct((M, out_cols), out_dtype),
        compiler_params=pltpu.CompilerParams(
            dimension_semantics=("parallel",)),
        cost_estimate=cost,
    )(*row_inputs, *param_inputs)


# --------------------------- parameter construction ------------------------ #
def _bn_scale_bias(c):
    # PyTorch BatchNorm2d default init, eval-mode fold
    gamma = jnp.ones((c,), jnp.float32)
    beta = jnp.zeros((c,), jnp.float32)
    mean = jnp.zeros((c,), jnp.float32)
    var = jnp.ones((c,), jnp.float32)
    scale = gamma / jnp.sqrt(var + EPS)
    bias = beta - mean * scale
    return scale, bias


def _w(key, shape, std=0.05):
    return std * jax.random.normal(key, shape, jnp.float32)


def _init_invres(keys, cin, cout):
    e = cin * 6
    p = {}
    p["exp_w"] = _w(next(keys), (e, cin, 1, 1))
    p["bn1_scale"], p["bn1_bias"] = _bn_scale_bias(e)
    p["dw_w"] = _w(next(keys), (e, 1, 2, 1))
    p["bn2_scale"], p["bn2_bias"] = _bn_scale_bias(e)
    p["pw_w"] = _w(next(keys), (cout, e, 1, 1))
    p["bn3_scale"], p["bn3_bias"] = _bn_scale_bias(cout)
    return p


def init_mobilenetv2_params(N, key):
    # bn_or_gn='bn', en_grad_checkpointing=False (inference forward path)
    n_blocks = int(math.log2(N))
    keys = iter(jax.random.split(key, 256))
    params = {}
    params["conv1_w"] = _w(next(keys), (32, 2, 1, 4))
    params["conv1_scale"], params["conv1_bias"] = _bn_scale_bias(32)
    params["conv2_w"] = _w(next(keys), (32, 32, 1, 1))
    params["conv2_scale"], params["conv2_bias"] = _bn_scale_bias(32)

    blocks = []
    prev = 32
    for block_no in range(n_blocks):
        if (block_no + 2) % 2 < 1:
            cin, cout = prev, prev
        else:
            cin, cout = prev, prev * 2
            prev = prev * 2
        b = _init_invres(keys, cin, cout)
        b["stride"] = 2          # size_reduction == 1 -> stride (2,1)
        b["residual"] = False
        blocks.append(b)
        if block_no < n_blocks - 1:
            b2 = _init_invres(keys, cout, cout)
            b2["stride"] = 1     # size_reduction == 0 -> reflection pad + (1,1)
            b2["residual"] = True
            blocks.append(b2)
    params["blocks"] = blocks

    fcs = prev  # fully_connected_size
    params["fc1_w"] = _w(next(keys), (fcs // 4, fcs))
    params["fc1_b"] = _w(next(keys), (fcs // 4,))
    params["fc2_w"] = _w(next(keys), (10, fcs // 4))
    params["fc2_b"] = _w(next(keys), (10,))
    params["fcs"] = fcs
    return params


def prepare_params(raw):
    """Fold BN scales into weights, transpose to [K, N] layout and cast MXU
    operands to bf16 -- done exactly once, outside the per-forward wrapper."""
    prep = {}
    c1 = raw["conv1_w"].shape[0]
    w1 = raw["conv1_w"].reshape(c1, -1).T * raw["conv1_scale"][None, :]
    prep["head_w1"] = w1.astype(jnp.bfloat16)
    prep["head_b1"] = raw["conv1_bias"].reshape(1, c1).astype(jnp.float32)
    c2 = raw["conv2_w"].shape[0]
    w2 = raw["conv2_w"].reshape(c2, -1).T * raw["conv2_scale"][None, :]
    prep["head_w2"] = w2.astype(jnp.bfloat16)
    prep["head_b2"] = raw["conv2_bias"].reshape(1, c2).astype(jnp.float32)

    blocks = []
    for b in raw["blocks"]:
        e, cin = b["exp_w"].shape[0], b["exp_w"].shape[1]
        cout = b["pw_w"].shape[0]
        we = b["exp_w"].reshape(e, cin).T * b["bn1_scale"][None, :]
        w0 = (b["dw_w"][:, 0, 0, 0] * b["bn2_scale"]).reshape(1, e)
        w1d = (b["dw_w"][:, 0, 1, 0] * b["bn2_scale"]).reshape(1, e)
        wp = b["pw_w"].reshape(cout, e).T * b["bn3_scale"][None, :]
        blocks.append(dict(
            we=we.astype(jnp.bfloat16),
            b1=b["bn1_bias"].reshape(1, e).astype(jnp.float32),
            w0=w0.astype(jnp.float32),
            w1=w1d.astype(jnp.float32),
            b2=b["bn2_bias"].reshape(1, e).astype(jnp.float32),
            wp=wp.astype(jnp.bfloat16),
            b3=b["bn3_bias"].reshape(1, cout).astype(jnp.float32),
            stride=b["stride"], residual=b["residual"],
            cin=cin, cout=cout, e=e))
    prep["blocks"] = blocks

    prep["fc1_w"] = raw["fc1_w"].T.astype(jnp.bfloat16)
    prep["fc1_b"] = raw["fc1_b"].reshape(1, -1).astype(jnp.float32)
    prep["fc2_w"] = raw["fc2_w"].T.astype(jnp.bfloat16)
    prep["fc2_b"] = raw["fc2_b"].reshape(1, -1).astype(jnp.float32)
    return prep


# -------------------------------- forward ---------------------------------- #
def head_forward(x_nchw, prep):
    B, cin, H, W = x_nchw.shape  # cin=2, W=4
    xi = jnp.transpose(x_nchw, (0, 2, 1, 3)).reshape(B * H, cin * W)
    xi = xi.astype(jnp.bfloat16)
    cout = prep["head_w1"].shape[1]
    out = _row_tiled_call(
        _head_kernel, [xi],
        [prep["head_w1"], prep["head_b1"], prep["head_w2"], prep["head_b2"]],
        cout, jnp.bfloat16)
    return out.reshape(B, H, cout)


def invres_forward(x_bhc, bp):
    B, H, C = x_bhc.shape
    E, Cout = bp["e"], bp["cout"]
    if bp["stride"] == 2:
        # depthwise stride (2,1): taps are the even / odd rows of each batch
        Ho = H // 2
        x0 = x_bhc[:, 0::2, :]
        x1 = x_bhc[:, 1::2, :]
    else:
        # ReflectionPad2d((0,0,0,1)) + stride (1,1): taps are row i and row
        # i+1, with the last output row pairing with the reflected row H-2.
        Ho = H
        x0 = x_bhc
        x1 = jnp.concatenate(
            [x_bhc[:, 1:, :], x_bhc[:, H - 2:H - 1, :]], axis=1)
        # TODO(synk): the stride-1 path recomputes the expansion of the shifted
        # rows instead of shuffling the expanded tile in VMEM (extra MXU work,
        # zero extra HBM traffic).
    M = B * Ho
    x0 = x0.reshape(M, C)
    x1 = x1.reshape(M, C)
    cost = pl.CostEstimate(
        flops=4 * M * C * E + 2 * M * E * Cout,
        transcendentals=0,
        bytes_accessed=2 * (2 * M * C + M * Cout + C * E + E * Cout)
        + 4 * (3 * E + Cout))
    kern = functools.partial(_invres_kernel, add_residual=bp["residual"])
    out = _row_tiled_call(
        kern, [x0, x1],
        [bp["we"], bp["b1"], bp["w0"], bp["w1"], bp["b2"], bp["wp"], bp["b3"]],
        Cout, jnp.bfloat16, cost=cost)
    return out.reshape(B, Ho, Cout)


def tail_forward(x_2d, prep):
    return _row_tiled_call(
        _tail_kernel, [x_2d.astype(jnp.bfloat16)],
        [prep["fc1_w"], prep["fc1_b"], prep["fc2_w"], prep["fc2_b"]],
        prep["fc2_w"].shape[1], jnp.float32)


def mobilenetv2_forward(prep, x_nchw):
    out = head_forward(x_nchw, prep)                # [B, H, 32] bf16
    for bp in prep["blocks"]:
        out = invres_forward(out, bp)               # [B, H', Cout] bf16
    B, Hf, Cf = out.shape                           # Hf == 1 after all blocks
    x = out.reshape(B * Hf, Cf)                     # == x.view(-1, fcs)
    return tail_forward(x, prep)                    # [B, 10] f32


if __name__ == "__main__":
    N = 8          # -> n_blocks = 3, fully_connected_size = 64
    B = 2
    key = jax.random.PRNGKey(0)
    pkey, xkey = jax.random.split(key)
    raw = init_mobilenetv2_params(N, pkey)
    prep = prepare_params(raw)
    x = jax.random.normal(xkey, (B, 2, N, 4), jnp.float32)  # NCHW like PyTorch
    fwd = jax.jit(lambda xx: mobilenetv2_forward(prep, xx))
    out = fwd(x)
    jax.block_until_ready(out)
    assert out.shape == (B, 10), out.shape
    print("KERNEL_OK")
</pallas_src>

<mosaic_0001>
module attributes {stable_mosaic.version = 11 : i64} {
  func.func @_head_kernel(%arg0: i32, %arg1: memref<16x8xbf16, #tpu.memory_space<vmem>>, %arg2: memref<8x32xbf16, #tpu.memory_space<vmem>>, %arg3: memref<1x32xf32, #tpu.memory_space<vmem>>, %arg4: memref<32x32xbf16, #tpu.memory_space<vmem>>, %arg5: memref<1x32xf32, #tpu.memory_space<vmem>>, %arg6: memref<16x32xbf16, #tpu.memory_space<vmem>>) attributes {dimension_semantics = [#tpu.dimension_semantics<parallel>], iteration_bounds = array<i64: 1>, scalar_prefetch = 0 : i64, scratch_operands = 0 : i64, tpu.core_type = #tpu.core_type<tc>, window_params = [{transform_indices = @transform_0, window_bounds = array<i64: 16, 8>}, {pipeline_mode = #tpu.pipeline_mode<synchronous>, transform_indices = @transform_1, window_bounds = array<i64: 8, 32>}, {pipeline_mode = #tpu.pipeline_mode<synchronous>, transform_indices = @transform_2, window_bounds = array<i64: 1, 32>}, {pipeline_mode = #tpu.pipeline_mode<synchronous>, transform_indices = @transform_3, window_bounds = array<i64: 32, 32>}, {pipeline_mode = #tpu.pipeline_mode<synchronous>, transform_indices = @transform_4, window_bounds = array<i64: 1, 32>}, {transform_indices = @transform_5, window_bounds = array<i64: 16, 32>}]} {
    %c0 = arith.constant 0 : index
    %c0_0 = arith.constant 0 : index
    %0 = vector.load %arg1[%c0, %c0_0] : memref<16x8xbf16, #tpu.memory_space<vmem>>, vector<16x8xbf16>
    %c0_1 = arith.constant 0 : index
    %c0_2 = arith.constant 0 : index
    %1 = vector.load %arg2[%c0_1, %c0_2] : memref<8x32xbf16, #tpu.memory_space<vmem>>, vector<8x32xbf16>
    %cst = arith.constant dense<0.000000e+00> : vector<16x32xf32>
    %2 = tpu.matmul %0, %1, %cst {dimension_numbers = #tpu.dot_dimension_numbers<[1], [0], [0], [1], [0, 0, 1, 1], [], []>} : vector<16x8xbf16>, vector<8x32xbf16>, vector<16x32xf32> -> vector<16x32xf32>
    %c0_3 = arith.constant 0 : index
    %c0_4 = arith.constant 0 : index
    %3 = vector.load %arg3[%c0_3, %c0_4] : memref<1x32xf32, #tpu.memory_space<vmem>>, vector<1x32xf32>
    %4 = vector.broadcast %3 : vector<1x32xf32> to vector<16x32xf32>
    %5 = arith.addf %2, %4 : vector<16x32xf32>
    %cst_5 = arith.constant 0.000000e+00 : f32
    %6 = vector.broadcast %cst_5 : f32 to vector<16x32xf32>
    %7 = arith.maximumf %5, %6 : vector<16x32xf32>
    %8 = arith.truncf %7 : vector<16x32xf32> to vector<16x32xbf16>
    %c0_6 = arith.constant 0 : index
    %c0_7 = arith.constant 0 : index
    %9 = vector.load %arg4[%c0_6, %c0_7] : memref<32x32xbf16, #tpu.memory_space<vmem>>, vector<32x32xbf16>
    %cst_8 = arith.constant dense<0.000000e+00> : vector<16x32xf32>
    %10 = tpu.matmul %8, %9, %cst_8 {dimension_numbers = #tpu.dot_dimension_numbers<[1], [0], [0], [1], [0, 0, 1, 1], [], []>} : vector<16x32xbf16>, vector<32x32xbf16>, vector<16x32xf32> -> vector<16x32xf32>
    %c0_9 = arith.constant 0 : index
    %c0_10 = arith.constant 0 : index
    %11 = vector.load %arg5[%c0_9, %c0_10] : memref<1x32xf32, #tpu.memory_space<vmem>>, vector<1x32xf32>
    %12 = vector.broadcast %11 : vector<1x32xf32> to vector<16x32xf32>
    %13 = arith.addf %10, %12 : vector<16x32xf32>
    %cst_11 = arith.constant 0.000000e+00 : f32
    %14 = vector.broadcast %cst_11 : f32 to vector<16x32xf32>
    %15 = arith.maximumf %13, %14 : vector<16x32xf32>
    %16 = arith.truncf %15 : vector<16x32xf32> to vector<16x32xbf16>
    %c0_12 = arith.constant 0 : index
    %c0_13 = arith.constant 0 : index
    %17 = vector.load %arg6[%c0_12, %c0_13] : memref<16x32xbf16, #tpu.memory_space<vmem>>, vector<16x32xbf16>
    tpu.vector_store %arg6[%c0_12, %c0_13], %16 {strides = array<i32>} : memref<16x32xbf16, #tpu.memory_space<vmem>>, vector<16x32xbf16>,
    return
  }
  func.func @transform_0(%arg0: i32) -> (i32, i32) {
    %c0_i32 = arith.constant 0 : i32
    %c0_i32_0 = arith.constant 0 : i32
    return %arg0, %c0_i32 : i32, i32
  }
  func.func @transform_1(%arg0: i32) -> (i32, i32) {
    %c0_i32 = arith.constant 0 : i32
    %c0_i32_0 = arith.constant 0 : i32
    %c0_i32_1 = arith.constant 0 : i32
    return %c0_i32, %c0_i32_0 : i32, i32
  }
  func.func @transform_2(%arg0: i32) -> (i32, i32) {
    %c0_i32 = arith.constant 0 : i32
    %c0_i32_0 = arith.constant 0 : i32
    %c0_i32_1 = arith.constant 0 : i32
    return %c0_i32, %c0_i32_0 : i32, i32
  }
  func.func @transform_3(%arg0: i32) -> (i32, i32) {
    %c0_i32 = arith.constant 0 : i32
    %c0_i32_0 = arith.constant 0 : i32
    %c0_i32_1 = arith.constant 0 : i32
    return %c0_i32, %c0_i32_0 : i32, i32
  }
  func.func @transform_4(%arg0: i32) -> (i32, i32) {
    %c0_i32 = arith.constant 0 : i32
    %c0_i32_0 = arith.constant 0 : i32
    %c0_i32_1 = arith.constant 0 : i32
    return %c0_i32, %c0_i32_0 : i32, i32
  }
  func.func @transform_5(%arg0: i32) -> (i32, i32) {
    %c0_i32 = arith.constant 0 : i32
    %c0_i32_0 = arith.constant 0 : i32
    return %arg0, %c0_i32 : i32, i32
  }
}

module attributes {stable_mosaic.version = 11 : i64} {
  func.func @_invres_kernel(%arg0: i32, %arg1: memref<8x32xbf16, #tpu.memory_space<vmem>>, %arg2: memref<8x32xbf16, #tpu.memory_space<vmem>>, %arg3: memref<32x192xbf16, #tpu.memory_space<vmem>>, %arg4: memref<1x192xf32, #tpu.memory_space<vmem>>, %arg5: memref<1x192xf32, #tpu.memory_space<vmem>>, %arg6: memref<1x192xf32, #tpu.memory_space<vmem>>, %arg7: memref<1x192xf32, #tpu.memory_space<vmem>>, %arg8: memref<192x32xbf16, #tpu.memory_space<vmem>>, %arg9: memref<1x32xf32, #tpu.memory_space<vmem>>, %arg10: memref<8x32xbf16, #tpu.memory_space<vmem>>) attributes {dimension_semantics = [#tpu.dimension_semantics<parallel>], iteration_bounds = array<i64: 1>, scalar_prefetch = 0 : i64, scratch_operands = 0 : i64, tpu.core_type = #tpu.core_type<tc>, window_params = [{transform_indices = @transform_0, window_bounds = array<i64: 8, 32>}, {transform_indices = @transform_1, window_bounds = array<i64: 8, 32>}, {pipeline_mode = #tpu.pipeline_mode<synchronous>, transform_indices = @transform_2, window_bounds = array<i64: 32, 192>}, {pipeline_mode = #tpu.pipeline_mode<synchronous>, transform_indices = @transform_3, window_bounds = array<i64: 1, 192>}, {pipeline_mode = #tpu.pipeline_mode<synchronous>, transform_indices = @transform_4, window_bounds = array<i64: 1, 192>}, {pipeline_mode = #tpu.pipeline_mode<synchronous>, transform_indices = @transform_5, window_bounds = array<i64: 1, 192>}, {pipeline_mode = #tpu.pipeline_mode<synchronous>, transform_indices = @transform_6, window_bounds = array<i64: 1, 192>}, {pipeline_mode = #tpu.pipeline_mode<synchronous>, transform_indices = @transform_7, window_bounds = array<i64: 192, 32>}, {pipeline_mode = #tpu.pipeline_mode<synchronous>, transform_indices = @transform_8, window_bounds = array<i64: 1, 32>}, {transform_indices = @transform_9, window_bounds = array<i64: 8, 32>}]} {
    %c0 = arith.constant 0 : index
    %c0_0 = arith.constant 0 : index
    %0 = vector.load %arg1[%c0, %c0_0] : memref<8x32xbf16, #tpu.memory_space<vmem>>, vector<8x32xbf16>
    %c0_1 = arith.constant 0 : index
    %c0_2 = arith.constant 0 : index
    %1 = vector.load %arg3[%c0_1, %c0_2] : memref<32x192xbf16, #tpu.memory_space<vmem>>, vector<32x192xbf16>
    %cst = arith.constant dense<0.000000e+00> : vector<8x192xf32>
    %2 = tpu.matmul %0, %1, %cst {dimension_numbers = #tpu.dot_dimension_numbers<[1], [0], [0], [1], [0, 0, 1, 1], [], []>} : vector<8x32xbf16>, vector<32x192xbf16>, vector<8x192xf32> -> vector<8x192xf32>
    %c0_3 = arith.constant 0 : index
    %c0_4 = arith.constant 0 : index
    %3 = vector.load %arg4[%c0_3, %c0_4] : memref<1x192xf32, #tpu.memory_space<vmem>>, vector<1x192xf32>
    %4 = vector.broadcast %3 : vector<1x192xf32> to vector<8x192xf32>
    %5 = arith.addf %2, %4 : vector<8x192xf32>
    %cst_5 = arith.constant 0.000000e+00 : f32
    %cst_6 = arith.constant 6.000000e+00 : f32
    %6 = vector.broadcast %cst_5 : f32 to vector<8x192xf32>
    %7 = arith.maximumf %6, %5 : vector<8x192xf32>
    %8 = vector.broadcast %cst_6 : f32 to vector<8x192xf32>
    %9 = arith.minimumf %8, %7 : vector<8x192xf32>
    %c0_7 = arith.constant 0 : index
    %c0_8 = arith.constant 0 : index
    %10 = vector.load %arg2[%c0_7, %c0_8] : memref<8x32xbf16, #tpu.memory_space<vmem>>, vector<8x32xbf16>
    %c0_9 = arith.constant 0 : index
    %c0_10 = arith.constant 0 : index
    %11 = vector.load %arg3[%c0_9, %c0_10] : memref<32x192xbf16, #tpu.memory_space<vmem>>, vector<32x192xbf16>
    %cst_11 = arith.constant dense<0.000000e+00> : vector<8x192xf32>
    %12 = tpu.matmul %10, %11, %cst_11 {dimension_numbers = #tpu.dot_dimension_numbers<[1], [0], [0], [1], [0, 0, 1, 1], [], []>} : vector<8x32xbf16>, vector<32x192xbf16>, vector<8x192xf32> -> vector<8x192xf32>
    %c0_12 = arith.constant 0 : index
    %c0_13 = arith.constant 0 : index
    %13 = vector.load %arg4[%c0_12, %c0_13] : memref<1x192xf32, #tpu.memory_space<vmem>>, vector<1x192xf32>
    %14 = vector.broadcast %13 : vector<1x192xf32> to vector<8x192xf32>
    %15 = arith.addf %12, %14 : vector<8x192xf32>
    %cst_14 = arith.constant 0.000000e+00 : f32
    %cst_15 = arith.constant 6.000000e+00 : f32
    %16 = vector.broadcast %cst_14 : f32 to vector<8x192xf32>
    %17 = arith.maximumf %16, %15 : vector<8x192xf32>
    %18 = vector.broadcast %cst_15 : f32 to vector<8x192xf32>
    %19 = arith.minimumf %18, %17 : vector<8x192xf32>
    %c0_16 = arith.constant 0 : index
    %c0_17 = arith.constant 0 : index
    %20 = vector.load %arg5[%c0_16, %c0_17] : memref<1x192xf32, #tpu.memory_space<vmem>>, vector<1x192xf32>
    %21 = vector.broadcast %20 : vector<1x192xf32> to vector<8x192xf32>
    %22 = arith.mulf %9, %21 : vector<8x192xf32>
    %c0_18 = arith.constant 0 : index
    %c0_19 = arith.constant 0 : index
    %23 = vector.load %arg6[%c0_18, %c0_19] : memref<1x192xf32, #tpu.memory_space<vmem>>, vector<1x192xf32>
    %24 = vector.broadcast %23 : vector<1x192xf32> to vector<8x192xf32>
    %25 = arith.mulf %19, %24 : vector<8x192xf32>
    %26 = arith.addf %22, %25 : vector<8x192xf32>
    %c0_20 = arith.constant 0 : index
    %c0_21 = arith.constant 0 : index
    %27 = vector.load %arg7[%c0_20, %c0_21] : memref<1x192xf32, #tpu.memory_space<vmem>>, vector<1x192xf32>
    %28 = vector.broadcast %27 : vector<1x192xf32> to vector<8x192xf32>
    %29 = arith.addf %26, %28 : vector<8x192xf32>
    %cst_22 = arith.constant 0.000000e+00 : f32
    %cst_23 = arith.constant 6.000000e+00 : f32
    %30 = vector.broadcast %cst_22 : f32 to vector<8x192xf32>
    %31 = arith.maximumf %30, %29 : vector<8x192xf32>
    %32 = vector.broadcast %cst_23 : f32 to vector<8x192xf32>
    %33 = arith.minimumf %32, %31 : vector<8x192xf32>
    %34 = arith.truncf %33 : vector<8x192xf32> to vector<8x192xbf16>
    %c0_24 = arith.constant 0 : index
    %c0_25 = arith.constant 0 : index
    %35 = vector.load %arg8[%c0_24, %c0_25] : memref<192x32xbf16, #tpu.memory_space<vmem>>, vector<192x32xbf16>
    %cst_26 = arith.constant dense<0.000000e+00> : vector<8x32xf32>
    %36 = tpu.matmul %34, %35, %cst_26 {dimension_numbers = #tpu.dot_dimension_numbers<[1], [0], [0], [1], [0, 0, 1, 1], [], []>} : vector<8x192xbf16>, vector<192x32xbf16>, vector<8x32xf32> -> vector<8x32xf32>
    %c0_27 = arith.constant 0 : index
    %c0_28 = arith.constant 0 : index
    %37 = vector.load %arg9[%c0_27, %c0_28] : memref<1x32xf32, #tpu.memory_space<vmem>>, vector<1x32xf32>
    %38 = vector.broadcast %37 : vector<1x32xf32> to vector<8x32xf32>
    %39 = arith.addf %36, %38 : vector<8x32xf32>
    %40 = arith.truncf %39 : vector<8x32xf32> to vector<8x32xbf16>
    %c0_29 = arith.constant 0 : index
    %c0_30 = arith.constant 0 : index
    %41 = vector.load %arg10[%c0_29, %c0_30] : memref<8x32xbf16, #tpu.memory_space<vmem>>, vector<8x32xbf16>
    tpu.vector_store %arg10[%c0_29, %c0_30], %40 {strides = array<i32>} : memref<8x32xbf16, #tpu.memory_space<vmem>>, vector<8x32xbf16>,
    return
  }
  func.func @transform_0(%arg0: i32) -> (i32, i32) {
    %c0_i32 = arith.constant 0 : i32
    %c0_i32_0 = arith.constant 0 : i32
    return %arg0, %c0_i32 : i32, i32
  }
  func.func @transform_1(%arg0: i32) -> (i32, i32) {
    %c0_i32 = arith.constant 0 : i32
    %c0_i32_0 = arith.constant 0 : i32
    return %arg0, %c0_i32 : i32, i32
  }
  func.func @transform_2(%arg0: i32) -> (i32, i32) {
    %c0_i32 = arith.constant 0 : i32
    %c0_i32_0 = arith.constant 0 : i32
    %c0_i32_1 = arith.constant 0 : i32
    return %c0_i32, %c0_i32_0 : i32, i32
  }
  func.func @transform_3(%arg0: i32) -> (i32, i32) {
    %c0_i32 = arith.constant 0 : i32
    %c0_i32_0 = arith.constant 0 : i32
    %c0_i32_1 = arith.constant 0 : i32
    return %c0_i32, %c0_i32_0 : i32, i32
  }
  func.func @transform_4(%arg0: i32) -> (i32, i32) {
    %c0_i32 = arith.constant 0 : i32
    %c0_i32_0 = arith.constant 0 : i32
    %c0_i32_1 = arith.constant 0 : i32
    return %c0_i32, %c0_i32_0 : i32, i32
  }
  func.func @transform_5(%arg0: i32) -> (i32, i32) {
    %c0_i32 = arith.constant 0 : i32
    %c0_i32_0 = arith.constant 0 : i32
    %c0_i32_1 = arith.constant 0 : i32
    return %c0_i32, %c0_i32_0 : i32, i32
  }
  func.func @transform_6(%arg0: i32) -> (i32, i32) {
    %c0_i32 = arith.constant 0 : i32
    %c0_i32_0 = arith.constant 0 : i32
    %c0_i32_1 = arith.constant 0 : i32
    return %c0_i32, %c0_i32_0 : i32, i32
  }
  func.func @transform_7(%arg0: i32) -> (i32, i32) {
    %c0_i32 = arith.constant 0 : i32
    %c0_i32_0 = arith.constant 0 : i32
    %c0_i32_1 = arith.constant 0 : i32
    return %c0_i32, %c0_i32_0 : i32, i32
  }
  func.func @transform_8(%arg0: i32) -> (i32, i32) {
    %c0_i32 = arith.constant 0 : i32
    %c0_i32_0 = arith.constant 0 : i32
    %c0_i32_1 = arith.constant 0 : i32
    return %c0_i32, %c0_i32_0 : i32, i32
  }
  func.func @transform_9(%arg0: i32) -> (i32, i32) {
    %c0_i32 = arith.constant 0 : i32
    %c0_i32_0 = arith.constant 0 : i32
    return %arg0, %c0_i32 : i32, i32
  }
}

module attributes {stable_mosaic.version = 11 : i64} {
  func.func @_invres_kernel(%arg0: i32, %arg1: memref<8x32xbf16, #tpu.memory_space<vmem>>, %arg2: memref<8x32xbf16, #tpu.memory_space<vmem>>, %arg3: memref<32x192xbf16, #tpu.memory_space<vmem>>, %arg4: memref<1x192xf32, #tpu.memory_space<vmem>>, %arg5: memref<1x192xf32, #tpu.memory_space<vmem>>, %arg6: memref<1x192xf32, #tpu.memory_space<vmem>>, %arg7: memref<1x192xf32, #tpu.memory_space<vmem>>, %arg8: memref<192x32xbf16, #tpu.memory_space<vmem>>, %arg9: memref<1x32xf32, #tpu.memory_space<vmem>>, %arg10: memref<8x32xbf16, #tpu.memory_space<vmem>>) attributes {dimension_semantics = [#tpu.dimension_semantics<parallel>], iteration_bounds = array<i64: 1>, scalar_prefetch = 0 : i64, scratch_operands = 0 : i64, tpu.core_type = #tpu.core_type<tc>, window_params = [{transform_indices = @transform_0, window_bounds = array<i64: 8, 32>}, {transform_indices = @transform_1, window_bounds = array<i64: 8, 32>}, {pipeline_mode = #tpu.pipeline_mode<synchronous>, transform_indices = @transform_2, window_bounds = array<i64: 32, 192>}, {pipeline_mode = #tpu.pipeline_mode<synchronous>, transform_indices = @transform_3, window_bounds = array<i64: 1, 192>}, {pipeline_mode = #tpu.pipeline_mode<synchronous>, transform_indices = @transform_4, window_bounds = array<i64: 1, 192>}, {pipeline_mode = #tpu.pipeline_mode<synchronous>, transform_indices = @transform_5, window_bounds = array<i64: 1, 192>}, {pipeline_mode = #tpu.pipeline_mode<synchronous>, transform_indices = @transform_6, window_bounds = array<i64: 1, 192>}, {pipeline_mode = #tpu.pipeline_mode<synchronous>, transform_indices = @transform_7, window_bounds = array<i64: 192, 32>}, {pipeline_mode = #tpu.pipeline_mode<synchronous>, transform_indices = @transform_8, window_bounds = array<i64: 1, 32>}, {transform_indices = @transform_9, window_bounds = array<i64: 8, 32>}]} {
    %c0 = arith.constant 0 : index
    %c0_0 = arith.constant 0 : index
    %0 = vector.load %arg1[%c0, %c0_0] : memref<8x32xbf16, #tpu.memory_space<vmem>>, vector<8x32xbf16>
    %c0_1 = arith.constant 0 : index
    %c0_2 = arith.constant 0 : index
    %1 = vector.load %arg3[%c0_1, %c0_2] : memref<32x192xbf16, #tpu.memory_space<vmem>>, vector<32x192xbf16>
    %cst = arith.constant dense<0.000000e+00> : vector<8x192xf32>
    %2 = tpu.matmul %0, %1, %cst {dimension_numbers = #tpu.dot_dimension_numbers<[1], [0], [0], [1], [0, 0, 1, 1], [], []>} : vector<8x32xbf16>, vector<32x192xbf16>, vector<8x192xf32> -> vector<8x192xf32>
    %c0_3 = arith.constant 0 : index
    %c0_4 = arith.constant 0 : index
    %3 = vector.load %arg4[%c0_3, %c0_4] : memref<1x192xf32, #tpu.memory_space<vmem>>, vector<1x192xf32>
    %4 = vector.broadcast %3 : vector<1x192xf32> to vector<8x192xf32>
    %5 = arith.addf %2, %4 : vector<8x192xf32>
    %cst_5 = arith.constant 0.000000e+00 : f32
    %cst_6 = arith.constant 6.000000e+00 : f32
    %6 = vector.broadcast %cst_5 : f32 to vector<8x192xf32>
    %7 = arith.maximumf %6, %5 : vector<8x192xf32>
    %8 = vector.broadcast %cst_6 : f32 to vector<8x192xf32>
    %9 = arith.minimumf %8, %7 : vector<8x192xf32>
    %c0_7 = arith.constant 0 : index
    %c0_8 = arith.constant 0 : index
    %10 = vector.load %arg2[%c0_7, %c0_8] : memref<8x32xbf16, #tpu.memory_space<vmem>>, vector<8x32xbf16>
    %c0_9 = arith.constant 0 : index
    %c0_10 = arith.constant 0 : index
    %11 = vector.load %arg3[%c0_9, %c0_10] : memref<32x192xbf16, #tpu.memory_space<vmem>>, vector<32x192xbf16>
    %cst_11 = arith.constant dense<0.000000e+00> : vector<8x192xf32>
    %12 = tpu.matmul %10, %11, %cst_11 {dimension_numbers = #tpu.dot_dimension_numbers<[1], [0], [0], [1], [0, 0, 1, 1], [], []>} : vector<8x32xbf16>, vector<32x192xbf16>, vector<8x192xf32> -> vector<8x192xf32>
    %c0_12 = arith.constant 0 : index
    %c0_13 = arith.constant 0 : index
    %13 = vector.load %arg4[%c0_12, %c0_13] : memref<1x192xf32, #tpu.memory_space<vmem>>, vector<1x192xf32>
    %14 = vector.broadcast %13 : vector<1x192xf32> to vector<8x192xf32>
    %15 = arith.addf %12, %14 : vector<8x192xf32>
    %cst_14 = arith.constant 0.000000e+00 : f32
    %cst_15 = arith.constant 6.000000e+00 : f32
    %16 = vector.broadcast %cst_14 : f32 to vector<8x192xf32>
    %17 = arith.maximumf %16, %15 : vector<8x192xf32>
    %18 = vector.broadcast %cst_15 : f32 to vector<8x192xf32>
    %19 = arith.minimumf %18, %17 : vector<8x192xf32>
    %c0_16 = arith.constant 0 : index
    %c0_17 = arith.constant 0 : index
    %20 = vector.load %arg5[%c0_16, %c0_17] : memref<1x192xf32, #tpu.memory_space<vmem>>, vector<1x192xf32>
    %21 = vector.broadcast %20 : vector<1x192xf32> to vector<8x192xf32>
    %22 = arith.mulf %9, %21 : vector<8x192xf32>
    %c0_18 = arith.constant 0 : index
    %c0_19 = arith.constant 0 : index
    %23 = vector.load %arg6[%c0_18, %c0_19] : memref<1x192xf32, #tpu.memory_space<vmem>>, vector<1x192xf32>
    %24 = vector.broadcast %23 : vector<1x192xf32> to vector<8x192xf32>
    %25 = arith.mulf %19, %24 : vector<8x192xf32>
    %26 = arith.addf %22, %25 : vector<8x192xf32>
    %c0_20 = arith.constant 0 : index
    %c0_21 = arith.constant 0 : index
    %27 = vector.load %arg7[%c0_20, %c0_21] : memref<1x192xf32, #tpu.memory_space<vmem>>, vector<1x192xf32>
    %28 = vector.broadcast %27 : vector<1x192xf32> to vector<8x192xf32>
    %29 = arith.addf %26, %28 : vector<8x192xf32>
    %cst_22 = arith.constant 0.000000e+00 : f32
    %cst_23 = arith.constant 6.000000e+00 : f32
    %30 = vector.broadcast %cst_22 : f32 to vector<8x192xf32>
    %31 = arith.maximumf %30, %29 : vector<8x192xf32>
    %32 = vector.broadcast %cst_23 : f32 to vector<8x192xf32>
    %33 = arith.minimumf %32, %31 : vector<8x192xf32>
    %34 = arith.truncf %33 : vector<8x192xf32> to vector<8x192xbf16>
    %c0_24 = arith.constant 0 : index
    %c0_25 = arith.constant 0 : index
    %35 = vector.load %arg8[%c0_24, %c0_25] : memref<192x32xbf16, #tpu.memory_space<vmem>>, vector<192x32xbf16>
    %cst_26 = arith.constant dense<0.000000e+00> : vector<8x32xf32>
    %36 = tpu.matmul %34, %35, %cst_26 {dimension_numbers = #tpu.dot_dimension_numbers<[1], [0], [0], [1], [0, 0, 1, 1], [], []>} : vector<8x192xbf16>, vector<192x32xbf16>, vector<8x32xf32> -> vector<8x32xf32>
    %c0_27 = arith.constant 0 : index
    %c0_28 = arith.constant 0 : index
    %37 = vector.load %arg9[%c0_27, %c0_28] : memref<1x32xf32, #tpu.memory_space<vmem>>, vector<1x32xf32>
    %38 = vector.broadcast %37 : vector<1x32xf32> to vector<8x32xf32>
    %39 = arith.addf %36, %38 : vector<8x32xf32>
    %c0_29 = arith.constant 0 : index
    %c0_30 = arith.constant 0 : index
    %40 = vector.load %arg1[%c0_29, %c0_30] : memref<8x32xbf16, #tpu.memory_space<vmem>>, vector<8x32xbf16>
    %41 = arith.extf %40 : vector<8x32xbf16> to vector<8x32xf32>
    %42 = arith.addf %39, %41 : vector<8x32xf32>
    %43 = arith.truncf %42 : vector<8x32xf32> to vector<8x32xbf16>
    %c0_31 = arith.constant 0 : index
    %c0_32 = arith.constant 0 : index
    %44 = vector.load %arg10[%c0_31, %c0_32] : memref<8x32xbf16, #tpu.memory_space<vmem>>, vector<8x32xbf16>
    tpu.vector_store %arg10[%c0_31, %c0_32], %43 {strides = array<i32>} : memref<8x32xbf16, #tpu.memory_space<vmem>>, vector<8x32xbf16>,
    return
  }
  func.func @transform_0(%arg0: i32) -> (i32, i32) {
    %c0_i32 = arith.constant 0 : i32
    %c0_i32_0 = arith.constant 0 : i32
    return %arg0, %c0_i32 : i32, i32
  }
  func.func @transform_1(%arg0: i32) -> (i32, i32) {
    %c0_i32 = arith.constant 0 : i32
    %c0_i32_0 = arith.constant 0 : i32
    return %arg0, %c0_i32 : i32, i32
  }
  func.func @transform_2(%arg0: i32) -> (i32, i32) {
    %c0_i32 = arith.constant 0 : i32
    %c0_i32_0 = arith.constant 0 : i32
    %c0_i32_1 = arith.constant 0 : i32
    return %c0_i32, %c0_i32_0 : i32, i32
  }
  func.func @transform_3(%arg0: i32) -> (i32, i32) {
    %c0_i32 = arith.constant 0 : i32
    %c0_i32_0 = arith.constant 0 : i32
    %c0_i32_1 = arith.constant 0 : i32
    return %c0_i32, %c0_i32_0 : i32, i32
  }
  func.func @transform_4(%arg0: i32) -> (i32, i32) {
    %c0_i32 = arith.constant 0 : i32
    %c0_i32_0 = arith.constant 0 : i32
    %c0_i32_1 = arith.constant 0 : i32
    return %c0_i32, %c0_i32_0 : i32, i32
  }
  func.func @transform_5(%arg0: i32) -> (i32, i32) {
    %c0_i32 = arith.constant 0 : i32
    %c0_i32_0 = arith.constant 0 : i32
    %c0_i32_1 = arith.constant 0 : i32
    return %c0_i32, %c0_i32_0 : i32, i32
  }
  func.func @transform_6(%arg0: i32) -> (i32, i32) {
    %c0_i32 = arith.constant 0 : i32
    %c0_i32_0 = arith.constant 0 : i32
    %c0_i32_1 = arith.constant 0 : i32
    return %c0_i32, %c0_i32_0 : i32, i32
  }
  func.func @transform_7(%arg0: i32) -> (i32, i32) {
    %c0_i32 = arith.constant 0 : i32
    %c0_i32_0 = arith.constant 0 : i32
    %c0_i32_1 = arith.constant 0 : i32
    return %c0_i32, %c0_i32_0 : i32, i32
  }
  func.func @transform_8(%arg0: i32) -> (i32, i32) {
    %c0_i32 = arith.constant 0 : i32
    %c0_i32_0 = arith.constant 0 : i32
    %c0_i32_1 = arith.constant 0 : i32
    return %c0_i32, %c0_i32_0 : i32, i32
  }
  func.func @transform_9(%arg0: i32) -> (i32, i32) {
    %c0_i32 = arith.constant 0 : i32
    %c0_i32_0 = arith.constant 0 : i32
    return %arg0, %c0_i32 : i32, i32
  }
}

module attributes {stable_mosaic.version = 11 : i64} {
  func.func @_invres_kernel(%arg0: i32, %arg1: memref<4x32xbf16, #tpu.memory_space<vmem>>, %arg2: memref<4x32xbf16, #tpu.memory_space<vmem>>, %arg3: memref<32x192xbf16, #tpu.memory_space<vmem>>, %arg4: memref<1x192xf32, #tpu.memory_space<vmem>>, %arg5: memref<1x192xf32, #tpu.memory_space<vmem>>, %arg6: memref<1x192xf32, #tpu.memory_space<vmem>>, %arg7: memref<1x192xf32, #tpu.memory_space<vmem>>, %arg8: memref<192x64xbf16, #tpu.memory_space<vmem>>, %arg9: memref<1x64xf32, #tpu.memory_space<vmem>>, %arg10: memref<4x64xbf16, #tpu.memory_space<vmem>>) attributes {dimension_semantics = [#tpu.dimension_semantics<parallel>], iteration_bounds = array<i64: 1>, scalar_prefetch = 0 : i64, scratch_operands = 0 : i64, tpu.core_type = #tpu.core_type<tc>, window_params = [{transform_indices = @transform_0, window_bounds = array<i64: 4, 32>}, {transform_indices = @transform_1, window_bounds = array<i64: 4, 32>}, {pipeline_mode = #tpu.pipeline_mode<synchronous>, transform_indices = @transform_2, window_bounds = array<i64: 32, 192>}, {pipeline_mode = #tpu.pipeline_mode<synchronous>, transform_indices = @transform_3, window_bounds = array<i64: 1, 192>}, {pipeline_mode = #tpu.pipeline_mode<synchronous>, transform_indices = @transform_4, window_bounds = array<i64: 1, 192>}, {pipeline_mode = #tpu.pipeline_mode<synchronous>, transform_indices = @transform_5, window_bounds = array<i64: 1, 192>}, {pipeline_mode = #tpu.pipeline_mode<synchronous>, transform_indices = @transform_6, window_bounds = array<i64: 1, 192>}, {pipeline_mode = #tpu.pipeline_mode<synchronous>, transform_indices = @transform_7, window_bounds = array<i64: 192, 64>}, {pipeline_mode = #tpu.pipeline_mode<synchronous>, transform_indices = @transform_8, window_bounds = array<i64: 1, 64>}, {transform_indices = @transform_9, window_bounds = array<i64: 4, 64>}]} {
    %c0 = arith.constant 0 : index
    %c0_0 = arith.constant 0 : index
    %0 = vector.load %arg1[%c0, %c0_0] : memref<4x32xbf16, #tpu.memory_space<vmem>>, vector<4x32xbf16>
    %c0_1 = arith.constant 0 : index
    %c0_2 = arith.constant 0 : index
    %1 = vector.load %arg3[%c0_1, %c0_2] : memref<32x192xbf16, #tpu.memory_space<vmem>>, vector<32x192xbf16>
    %cst = arith.constant dense<0.000000e+00> : vector<4x192xf32>
    %2 = tpu.matmul %0, %1, %cst {dimension_numbers = #tpu.dot_dimension_numbers<[1], [0], [0], [1], [0, 0, 1, 1], [], []>} : vector<4x32xbf16>, vector<32x192xbf16>, vector<4x192xf32> -> vector<4x192xf32>
    %c0_3 = arith.constant 0 : index
    %c0_4 = arith.constant 0 : index
    %3 = vector.load %arg4[%c0_3, %c0_4] : memref<1x192xf32, #tpu.memory_space<vmem>>, vector<1x192xf32>
    %4 = vector.broadcast %3 : vector<1x192xf32> to vector<4x192xf32>
    %5 = arith.addf %2, %4 : vector<4x192xf32>
    %cst_5 = arith.constant 0.000000e+00 : f32
    %cst_6 = arith.constant 6.000000e+00 : f32
    %6 = vector.broadcast %cst_5 : f32 to vector<4x192xf32>
    %7 = arith.maximumf %6, %5 : vector<4x192xf32>
    %8 = vector.broadcast %cst_6 : f32 to vector<4x192xf32>
    %9 = arith.minimumf %8, %7 : vector<4x192xf32>
    %c0_7 = arith.constant 0 : index
    %c0_8 = arith.constant 0 : index
    %10 = vector.load %arg2[%c0_7, %c0_8] : memref<4x32xbf16, #tpu.memory_space<vmem>>, vector<4x32xbf16>
    %c0_9 = arith.constant 0 : index
    %c0_10 = arith.constant 0 : index
    %11 = vector.load %arg3[%c0_9, %c0_10] : memref<32x192xbf16, #tpu.memory_space<vmem>>, vector<32x192xbf16>
    %cst_11 = arith.constant dense<0.000000e+00> : vector<4x192xf32>
    %12 = tpu.matmul %10, %11, %cst_11 {dimension_numbers = #tpu.dot_dimension_numbers<[1], [0], [0], [1], [0, 0, 1, 1], [], []>} : vector<4x32xbf16>, vector<32x192xbf16>, vector<4x192xf32> -> vector<4x192xf32>
    %c0_12 = arith.constant 0 : index
    %c0_13 = arith.constant 0 : index
    %13 = vector.load %arg4[%c0_12, %c0_13] : memref<1x192xf32, #tpu.memory_space<vmem>>, vector<1x192xf32>
    %14 = vector.broadcast %13 : vector<1x192xf32> to vector<4x192xf32>
    %15 = arith.addf %12, %14 : vector<4x192xf32>
    %cst_14 = arith.constant 0.000000e+00 : f32
    %cst_15 = arith.constant 6.000000e+00 : f32
    %16 = vector.broadcast %cst_14 : f32 to vector<4x192xf32>
    %17 = arith.maximumf %16, %15 : vector<4x192xf32>
    %18 = vector.broadcast %cst_15 : f32 to vector<4x192xf32>
    %19 = arith.minimumf %18, %17 : vector<4x192xf32>
    %c0_16 = arith.constant 0 : index
    %c0_17 = arith.constant 0 : index
    %20 = vector.load %arg5[%c0_16, %c0_17] : memref<1x192xf32, #tpu.memory_space<vmem>>, vector<1x192xf32>
    %21 = vector.broadcast %20 : vector<1x192xf32> to vector<4x192xf32>
    %22 = arith.mulf %9, %21 : vector<4x192xf32>
    %c0_18 = arith.constant 0 : index
    %c0_19 = arith.constant 0 : index
    %23 = vector.load %arg6[%c0_18, %c0_19] : memref<1x192xf32, #tpu.memory_space<vmem>>, vector<1x192xf32>
    %24 = vector.broadcast %23 : vector<1x192xf32> to vector<4x192xf32>
    %25 = arith.mulf %19, %24 : vector<4x192xf32>
    %26 = arith.addf %22, %25 : vector<4x192xf32>
    %c0_20 = arith.constant 0 : index
    %c0_21 = arith.constant 0 : index
    %27 = vector.load %arg7[%c0_20, %c0_21] : memref<1x192xf32, #tpu.memory_space<vmem>>, vector<1x192xf32>
    %28 = vector.broadcast %27 : vector<1x192xf32> to vector<4x192xf32>
    %29 = arith.addf %26, %28 : vector<4x192xf32>
    %cst_22 = arith.constant 0.000000e+00 : f32
    %cst_23 = arith.constant 6.000000e+00 : f32
    %30 = vector.broadcast %cst_22 : f32 to vector<4x192xf32>
    %31 = arith.maximumf %30, %29 : vector<4x192xf32>
    %32 = vector.broadcast %cst_23 : f32 to vector<4x192xf32>
    %33 = arith.minimumf %32, %31 : vector<4x192xf32>
    %34 = arith.truncf %33 : vector<4x192xf32> to vector<4x192xbf16>
    %c0_24 = arith.constant 0 : index
    %c0_25 = arith.constant 0 : index
    %35 = vector.load %arg8[%c0_24, %c0_25] : memref<192x64xbf16, #tpu.memory_space<vmem>>, vector<192x64xbf16>
    %cst_26 = arith.constant dense<0.000000e+00> : vector<4x64xf32>
    %36 = tpu.matmul %34, %35, %cst_26 {dimension_numbers = #tpu.dot_dimension_numbers<[1], [0], [0], [1], [0, 0, 1, 1], [], []>} : vector<4x192xbf16>, vector<192x64xbf16>, vector<4x64xf32> -> vector<4x64xf32>
    %c0_27 = arith.constant 0 : index
    %c0_28 = arith.constant 0 : index
    %37 = vector.load %arg9[%c0_27, %c0_28] : memref<1x64xf32, #tpu.memory_space<vmem>>, vector<1x64xf32>
    %38 = vector.broadcast %37 : vector<1x64xf32> to vector<4x64xf32>
    %39 = arith.addf %36, %38 : vector<4x64xf32>
    %40 = arith.truncf %39 : vector<4x64xf32> to vector<4x64xbf16>
    %c0_29 = arith.constant 0 : index
    %c0_30 = arith.constant 0 : index
    %41 = vector.load %arg10[%c0_29, %c0_30] : memref<4x64xbf16, #tpu.memory_space<vmem>>, vector<4x64xbf16>
    tpu.vector_store %arg10[%c0_29, %c0_30], %40 {strides = array<i32>} : memref<4x64xbf16, #tpu.memory_space<vmem>>, vector<4x64xbf16>,
    return
  }
  func.func @transform_0(%arg0: i32) -> (i32, i32) {
    %c0_i32 = arith.constant 0 : i32
    %c0_i32_0 = arith.constant 0 : i32
    return %arg0, %c0_i32 : i32, i32
  }
  func.func @transform_1(%arg0: i32) -> (i32, i32) {
    %c0_i32 = arith.constant 0 : i32
    %c0_i32_0 = arith.constant 0 : i32
    return %arg0, %c0_i32 : i32, i32
  }
  func.func @transform_2(%arg0: i32) -> (i32, i32) {
    %c0_i32 = arith.constant 0 : i32
    %c0_i32_0 = arith.constant 0 : i32
    %c0_i32_1 = arith.constant 0 : i32
    return %c0_i32, %c0_i32_0 : i32, i32
  }
  func.func @transform_3(%arg0: i32) -> (i32, i32) {
    %c0_i32 = arith.constant 0 : i32
    %c0_i32_0 = arith.constant 0 : i32
    %c0_i32_1 = arith.constant 0 : i32
    return %c0_i32, %c0_i32_0 : i32, i32
  }
  func.func @transform_4(%arg0: i32) -> (i32, i32) {
    %c0_i32 = arith.constant 0 : i32
    %c0_i32_0 = arith.constant 0 : i32
    %c0_i32_1 = arith.constant 0 : i32
    return %c0_i32, %c0_i32_0 : i32, i32
  }
  func.func @transform_5(%arg0: i32) -> (i32, i32) {
    %c0_i32 = arith.constant 0 : i32
    %c0_i32_0 = arith.constant 0 : i32
    %c0_i32_1 = arith.constant 0 : i32
    return %c0_i32, %c0_i32_0 : i32, i32
  }
  func.func @transform_6(%arg0: i32) -> (i32, i32) {
    %c0_i32 = arith.constant 0 : i32
    %c0_i32_0 = arith.constant 0 : i32
    %c0_i32_1 = arith.constant 0 : i32
    return %c0_i32, %c0_i32_0 : i32, i32
  }
  func.func @transform_7(%arg0: i32) -> (i32, i32) {
    %c0_i32 = arith.constant 0 : i32
    %c0_i32_0 = arith.constant 0 : i32
    %c0_i32_1 = arith.constant 0 : i32
    return %c0_i32, %c0_i32_0 : i32, i32
  }
  func.func @transform_8(%arg0: i32) -> (i32, i32) {
    %c0_i32 = arith.constant 0 : i32
    %c0_i32_0 = arith.constant 0 : i32
    %c0_i32_1 = arith.constant 0 : i32
    return %c0_i32, %c0_i32_0 : i32, i32
  }
  func.func @transform_9(%arg0: i32) -> (i32, i32) {
    %c0_i32 = arith.constant 0 : i32
    %c0_i32_0 = arith.constant 0 : i32
    return %arg0, %c0_i32 : i32, i32
  }
}

module attributes {stable_mosaic.version = 11 : i64} {
  func.func @_invres_kernel(%arg0: i32, %arg1: memref<4x64xbf16, #tpu.memory_space<vmem>>, %arg2: memref<4x64xbf16, #tpu.memory_space<vmem>>, %arg3: memref<64x384xbf16, #tpu.memory_space<vmem>>, %arg4: memref<1x384xf32, #tpu.memory_space<vmem>>, %arg5: memref<1x384xf32, #tpu.memory_space<vmem>>, %arg6: memref<1x384xf32, #tpu.memory_space<vmem>>, %arg7: memref<1x384xf32, #tpu.memory_space<vmem>>, %arg8: memref<384x64xbf16, #tpu.memory_space<vmem>>, %arg9: memref<1x64xf32, #tpu.memory_space<vmem>>, %arg10: memref<4x64xbf16, #tpu.memory_space<vmem>>) attributes {dimension_semantics = [#tpu.dimension_semantics<parallel>], iteration_bounds = array<i64: 1>, scalar_prefetch = 0 : i64, scratch_operands = 0 : i64, tpu.core_type = #tpu.core_type<tc>, window_params = [{transform_indices = @transform_0, window_bounds = array<i64: 4, 64>}, {transform_indices = @transform_1, window_bounds = array<i64: 4, 64>}, {pipeline_mode = #tpu.pipeline_mode<synchronous>, transform_indices = @transform_2, window_bounds = array<i64: 64, 384>}, {pipeline_mode = #tpu.pipeline_mode<synchronous>, transform_indices = @transform_3, window_bounds = array<i64: 1, 384>}, {pipeline_mode = #tpu.pipeline_mode<synchronous>, transform_indices = @transform_4, window_bounds = array<i64: 1, 384>}, {pipeline_mode = #tpu.pipeline_mode<synchronous>, transform_indices = @transform_5, window_bounds = array<i64: 1, 384>}, {pipeline_mode = #tpu.pipeline_mode<synchronous>, transform_indices = @transform_6, window_bounds = array<i64: 1, 384>}, {pipeline_mode = #tpu.pipeline_mode<synchronous>, transform_indices = @transform_7, window_bounds = array<i64: 384, 64>}, {pipeline_mode = #tpu.pipeline_mode<synchronous>, transform_indices = @transform_8, window_bounds = array<i64: 1, 64>}, {transform_indices = @transform_9, window_bounds = array<i64: 4, 64>}]} {
    %c0 = arith.constant 0 : index
    %c0_0 = arith.constant 0 : index
    %0 = vector.load %arg1[%c0, %c0_0] : memref<4x64xbf16, #tpu.memory_space<vmem>>, vector<4x64xbf16>
    %c0_1 = arith.constant 0 : index
    %c0_2 = arith.constant 0 : index
    %1 = vector.load %arg3[%c0_1, %c0_2] : memref<64x384xbf16, #tpu.memory_space<vmem>>, vector<64x384xbf16>
    %cst = arith.constant dense<0.000000e+00> : vector<4x384xf32>
    %2 = tpu.matmul %0, %1, %cst {dimension_numbers = #tpu.dot_dimension_numbers<[1], [0], [0], [1], [0, 0, 1, 1], [], []>} : vector<4x64xbf16>, vector<64x384xbf16>, vector<4x384xf32> -> vector<4x384xf32>
    %c0_3 = arith.constant 0 : index
    %c0_4 = arith.constant 0 : index
    %3 = vector.load %arg4[%c0_3, %c0_4] : memref<1x384xf32, #tpu.memory_space<vmem>>, vector<1x384xf32>
    %4 = vector.broadcast %3 : vector<1x384xf32> to vector<4x384xf32>
    %5 = arith.addf %2, %4 : vector<4x384xf32>
    %cst_5 = arith.constant 0.000000e+00 : f32
    %cst_6 = arith.constant 6.000000e+00 : f32
    %6 = vector.broadcast %cst_5 : f32 to vector<4x384xf32>
    %7 = arith.maximumf %6, %5 : vector<4x384xf32>
    %8 = vector.broadcast %cst_6 : f32 to vector<4x384xf32>
    %9 = arith.minimumf %8, %7 : vector<4x384xf32>
    %c0_7 = arith.constant 0 : index
    %c0_8 = arith.constant 0 : index
    %10 = vector.load %arg2[%c0_7, %c0_8] : memref<4x64xbf16, #tpu.memory_space<vmem>>, vector<4x64xbf16>
    %c0_9 = arith.constant 0 : index
    %c0_10 = arith.constant 0 : index
    %11 = vector.load %arg3[%c0_9, %c0_10] : memref<64x384xbf16, #tpu.memory_space<vmem>>, vector<64x384xbf16>
    %cst_11 = arith.constant dense<0.000000e+00> : vector<4x384xf32>
    %12 = tpu.matmul %10, %11, %cst_11 {dimension_numbers = #tpu.dot_dimension_numbers<[1], [0], [0], [1], [0, 0, 1, 1], [], []>} : vector<4x64xbf16>, vector<64x384xbf16>, vector<4x384xf32> -> vector<4x384xf32>
    %c0_12 = arith.constant 0 : index
    %c0_13 = arith.constant 0 : index
    %13 = vector.load %arg4[%c0_12, %c0_13] : memref<1x384xf32, #tpu.memory_space<vmem>>, vector<1x384xf32>
    %14 = vector.broadcast %13 : vector<1x384xf32> to vector<4x384xf32>
    %15 = arith.addf %12, %14 : vector<4x384xf32>
    %cst_14 = arith.constant 0.000000e+00 : f32
    %cst_15 = arith.constant 6.000000e+00 : f32
    %16 = vector.broadcast %cst_14 : f32 to vector<4x384xf32>
    %17 = arith.maximumf %16, %15 : vector<4x384xf32>
    %18 = vector.broadcast %cst_15 : f32 to vector<4x384xf32>
    %19 = arith.minimumf %18, %17 : vector<4x384xf32>
    %c0_16 = arith.constant 0 : index
    %c0_17 = arith.constant 0 : index
    %20 = vector.load %arg5[%c0_16, %c0_17] : memref<1x384xf32, #tpu.memory_space<vmem>>, vector<1x384xf32>
    %21 = vector.broadcast %20 : vector<1x384xf32> to vector<4x384xf32>
    %22 = arith.mulf %9, %21 : vector<4x384xf32>
    %c0_18 = arith.constant 0 : index
    %c0_19 = arith.constant 0 : index
    %23 = vector.load %arg6[%c0_18, %c0_19] : memref<1x384xf32, #tpu.memory_space<vmem>>, vector<1x384xf32>
    %24 = vector.broadcast %23 : vector<1x384xf32> to vector<4x384xf32>
    %25 = arith.mulf %19, %24 : vector<4x384xf32>
    %26 = arith.addf %22, %25 : vector<4x384xf32>
    %c0_20 = arith.constant 0 : index
    %c0_21 = arith.constant 0 : index
    %27 = vector.load %arg7[%c0_20, %c0_21] : memref<1x384xf32, #tpu.memory_space<vmem>>, vector<1x384xf32>
    %28 = vector.broadcast %27 : vector<1x384xf32> to vector<4x384xf32>
    %29 = arith.addf %26, %28 : vector<4x384xf32>
    %cst_22 = arith.constant 0.000000e+00 : f32
    %cst_23 = arith.constant 6.000000e+00 : f32
    %30 = vector.broadcast %cst_22 : f32 to vector<4x384xf32>
    %31 = arith.maximumf %30, %29 : vector<4x384xf32>
    %32 = vector.broadcast %cst_23 : f32 to vector<4x384xf32>
    %33 = arith.minimumf %32, %31 : vector<4x384xf32>
    %34 = arith.truncf %33 : vector<4x384xf32> to vector<4x384xbf16>
    %c0_24 = arith.constant 0 : index
    %c0_25 = arith.constant 0 : index
    %35 = vector.load %arg8[%c0_24, %c0_25] : memref<384x64xbf16, #tpu.memory_space<vmem>>, vector<384x64xbf16>
    %cst_26 = arith.constant dense<0.000000e+00> : vector<4x64xf32>
    %36 = tpu.matmul %34, %35, %cst_26 {dimension_numbers = #tpu.dot_dimension_numbers<[1], [0], [0], [1], [0, 0, 1, 1], [], []>} : vector<4x384xbf16>, vector<384x64xbf16>, vector<4x64xf32> -> vector<4x64xf32>
    %c0_27 = arith.constant 0 : index
    %c0_28 = arith.constant 0 : index
    %37 = vector.load %arg9[%c0_27, %c0_28] : memref<1x64xf32, #tpu.memory_space<vmem>>, vector<1x64xf32>
    %38 = vector.broadcast %37 : vector<1x64xf32> to vector<4x64xf32>
    %39 = arith.addf %36, %38 : vector<4x64xf32>
    %c0_29 = arith.constant 0 : index
    %c0_30 = arith.constant 0 : index
    %40 = vector.load %arg1[%c0_29, %c0_30] : memref<4x64xbf16, #tpu.memory_space<vmem>>, vector<4x64xbf16>
    %41 = arith.extf %40 : vector<4x64xbf16> to vector<4x64xf32>
    %42 = arith.addf %39, %41 : vector<4x64xf32>
    %43 = arith.truncf %42 : vector<4x64xf32> to vector<4x64xbf16>
    %c0_31 = arith.constant 0 : index
    %c0_32 = arith.constant 0 : index
    %44 = vector.load %arg10[%c0_31, %c0_32] : memref<4x64xbf16, #tpu.memory_space<vmem>>, vector<4x64xbf16>
    tpu.vector_store %arg10[%c0_31, %c0_32], %43 {strides = array<i32>} : memref<4x64xbf16, #tpu.memory_space<vmem>>, vector<4x64xbf16>,
    return
  }
  func.func @transform_0(%arg0: i32) -> (i32, i32) {
    %c0_i32 = arith.constant 0 : i32
    %c0_i32_0 = arith.constant 0 : i32
    return %arg0, %c0_i32 : i32, i32
  }
  func.func @transform_1(%arg0: i32) -> (i32, i32) {
    %c0_i32 = arith.constant 0 : i32
    %c0_i32_0 = arith.constant 0 : i32
    return %arg0, %c0_i32 : i32, i32
  }
  func.func @transform_2(%arg0: i32) -> (i32, i32) {
    %c0_i32 = arith.constant 0 : i32
    %c0_i32_0 = arith.constant 0 : i32
    %c0_i32_1 = arith.constant 0 : i32
    return %c0_i32, %c0_i32_0 : i32, i32
  }
  func.func @transform_3(%arg0: i32) -> (i32, i32) {
    %c0_i32 = arith.constant 0 : i32
    %c0_i32_0 = arith.constant 0 : i32
    %c0_i32_1 = arith.constant 0 : i32
    return %c0_i32, %c0_i32_0 : i32, i32
  }
  func.func @transform_4(%arg0: i32) -> (i32, i32) {
    %c0_i32 = arith.constant 0 : i32
    %c0_i32_0 = arith.constant 0 : i32
    %c0_i32_1 = arith.constant 0 : i32
    return %c0_i32, %c0_i32_0 : i32, i32
  }
  func.func @transform_5(%arg0: i32) -> (i32, i32) {
    %c0_i32 = arith.constant 0 : i32
    %c0_i32_0 = arith.constant 0 : i32
    %c0_i32_1 = arith.constant 0 : i32
    return %c0_i32, %c0_i32_0 : i32, i32
  }
  func.func @transform_6(%arg0: i32) -> (i32, i32) {
    %c0_i32 = arith.constant 0 : i32
    %c0_i32_0 = arith.constant 0 : i32
    %c0_i32_1 = arith.constant 0 : i32
    return %c0_i32, %c0_i32_0 : i32, i32
  }
  func.func @transform_7(%arg0: i32) -> (i32, i32) {
    %c0_i32 = arith.constant 0 : i32
    %c0_i32_0 = arith.constant 0 : i32
    %c0_i32_1 = arith.constant 0 : i32
    return %c0_i32, %c0_i32_0 : i32, i32
  }
  func.func @transform_8(%arg0: i32) -> (i32, i32) {
    %c0_i32 = arith.constant 0 : i32
    %c0_i32_0 = arith.constant 0 : i32
    %c0_i32_1 = arith.constant 0 : i32
    return %c0_i32, %c0_i32_0 : i32, i32
  }
  func.func @transform_9(%arg0: i32) -> (i32, i32) {
    %c0_i32 = arith.constant 0 : i32
    %c0_i32_0 = arith.constant 0 : i32
    return %arg0, %c0_i32 : i32, i32
  }
}

module attributes {stable_mosaic.version = 11 : i64} {
  func.func @_tail_kernel(%arg0: i32, %arg1: memref<2x64xbf16, #tpu.memory_space<vmem>>, %arg2: memref<64x16xbf16, #tpu.memory_space<vmem>>, %arg3: memref<1x16xf32, #tpu.memory_space<vmem>>, %arg4: memref<16x10xbf16, #tpu.memory_space<vmem>>, %arg5: memref<1x10xf32, #tpu.memory_space<vmem>>, %arg6: memref<2x10xf32, #tpu.memory_space<vmem>>) attributes {dimension_semantics = [#tpu.dimension_semantics<parallel>], iteration_bounds = array<i64: 1>, scalar_prefetch = 0 : i64, scratch_operands = 0 : i64, tpu.core_type = #tpu.core_type<tc>, window_params = [{transform_indices = @transform_0, window_bounds = array<i64: 2, 64>}, {pipeline_mode = #tpu.pipeline_mode<synchronous>, transform_indices = @transform_1, window_bounds = array<i64: 64, 16>}, {pipeline_mode = #tpu.pipeline_mode<synchronous>, transform_indices = @transform_2, window_bounds = array<i64: 1, 16>}, {pipeline_mode = #tpu.pipeline_mode<synchronous>, transform_indices = @transform_3, window_bounds = array<i64: 16, 10>}, {pipeline_mode = #tpu.pipeline_mode<synchronous>, transform_indices = @transform_4, window_bounds = array<i64: 1, 10>}, {transform_indices = @transform_5, window_bounds = array<i64: 2, 10>}]} {
    %c0 = arith.constant 0 : index
    %c0_0 = arith.constant 0 : index
    %0 = vector.load %arg1[%c0, %c0_0] : memref<2x64xbf16, #tpu.memory_space<vmem>>, vector<2x64xbf16>
    %c0_1 = arith.constant 0 : index
    %c0_2 = arith.constant 0 : index
    %1 = vector.load %arg2[%c0_1, %c0_2] : memref<64x16xbf16, #tpu.memory_space<vmem>>, vector<64x16xbf16>
    %cst = arith.constant dense<0.000000e+00> : vector<2x16xf32>
    %2 = tpu.matmul %0, %1, %cst {dimension_numbers = #tpu.dot_dimension_numbers<[1], [0], [0], [1], [0, 0, 1, 1], [], []>} : vector<2x64xbf16>, vector<64x16xbf16>, vector<2x16xf32> -> vector<2x16xf32>
    %c0_3 = arith.constant 0 : index
    %c0_4 = arith.constant 0 : index
    %3 = vector.load %arg3[%c0_3, %c0_4] : memref<1x16xf32, #tpu.memory_space<vmem>>, vector<1x16xf32>
    %4 = vector.broadcast %3 : vector<1x16xf32> to vector<2x16xf32>
    %5 = arith.addf %2, %4 : vector<2x16xf32>
    %cst_5 = arith.constant 0.000000e+00 : f32
    %6 = vector.broadcast %cst_5 : f32 to vector<2x16xf32>
    %7 = arith.maximumf %5, %6 : vector<2x16xf32>
    %8 = arith.truncf %7 : vector<2x16xf32> to vector<2x16xbf16>
    %c0_6 = arith.constant 0 : index
    %c0_7 = arith.constant 0 : index
    %9 = vector.load %arg4[%c0_6, %c0_7] : memref<16x10xbf16, #tpu.memory_space<vmem>>, vector<16x10xbf16>
    %cst_8 = arith.constant dense<0.000000e+00> : vector<2x10xf32>
    %10 = tpu.matmul %8, %9, %cst_8 {dimension_numbers = #tpu.dot_dimension_numbers<[1], [0], [0], [1], [0, 0, 1, 1], [], []>} : vector<2x16xbf16>, vector<16x10xbf16>, vector<2x10xf32> -> vector<2x10xf32>
    %c0_9 = arith.constant 0 : index
    %c0_10 = arith.constant 0 : index
    %11 = vector.load %arg5[%c0_9, %c0_10] : memref<1x10xf32, #tpu.memory_space<vmem>>, vector<1x10xf32>
    %12 = vector.broadcast %11 : vector<1x10xf32> to vector<2x10xf32>
    %13 = arith.addf %10, %12 : vector<2x10xf32>
    %c0_11 = arith.constant 0 : index
    %c0_12 = arith.constant 0 : index
    %14 = vector.load %arg6[%c0_11, %c0_12] : memref<2x10xf32, #tpu.memory_space<vmem>>, vector<2x10xf32>
    tpu.vector_store %arg6[%c0_11, %c0_12], %13 {strides = array<i32>} : memref<2x10xf32, #tpu.memory_space<vmem>>, vector<2x10xf32>,
    return
  }
  func.func @transform_0(%arg0: i32) -> (i32, i32) {
    %c0_i32 = arith.constant 0 : i32
    %c0_i32_0 = arith.constant 0 : i32
    return %arg0, %c0_i32 : i32, i32
  }
  func.func @transform_1(%arg0: i32) -> (i32, i32) {
    %c0_i32 = arith.constant 0 : i32
    %c0_i32_0 = arith.constant 0 : i32
    %c0_i32_1 = arith.constant 0 : i32
    return %c0_i32, %c0_i32_0 : i32, i32
  }
  func.func @transform_2(%arg0: i32) -> (i32, i32) {
    %c0_i32 = arith.constant 0 : i32
    %c0_i32_0 = arith.constant 0 : i32
    %c0_i32_1 = arith.constant 0 : i32
    return %c0_i32, %c0_i32_0 : i32, i32
  }
  func.func @transform_3(%arg0: i32) -> (i32, i32) {
    %c0_i32 = arith.constant 0 : i32
    %c0_i32_0 = arith.constant 0 : i32
    %c0_i32_1 = arith.constant 0 : i32
    return %c0_i32, %c0_i32_0 : i32, i32
  }
  func.func @transform_4(%arg0: i32) -> (i32, i32) {
    %c0_i32 = arith.constant 0 : i32
    %c0_i32_0 = arith.constant 0 : i32
    %c0_i32_1 = arith.constant 0 : i32
    return %c0_i32, %c0_i32_0 : i32, i32
  }
  func.func @transform_5(%arg0: i32) -> (i32, i32) {
    %c0_i32 = arith.constant 0 : i32
    %c0_i32_0 = arith.constant 0 : i32
    return %arg0, %c0_i32 : i32, i32
  }
}

module attributes {stable_mosaic.version = 11 : i64} {
  func.func @_invres_kernel(%arg0: i32, %arg1: memref<2x64xbf16, #tpu.memory_space<vmem>>, %arg2: memref<2x64xbf16, #tpu.memory_space<vmem>>, %arg3: memref<64x384xbf16, #tpu.memory_space<vmem>>, %arg4: memref<1x384xf32, #tpu.memory_space<vmem>>, %arg5: memref<1x384xf32, #tpu.memory_space<vmem>>, %arg6: memref<1x384xf32, #tpu.memory_space<vmem>>, %arg7: memref<1x384xf32, #tpu.memory_space<vmem>>, %arg8: memref<384x64xbf16, #tpu.memory_space<vmem>>, %arg9: memref<1x64xf32, #tpu.memory_space<vmem>>, %arg10: memref<2x64xbf16, #tpu.memory_space<vmem>>) attributes {dimension_semantics = [#tpu.dimension_semantics<parallel>], iteration_bounds = array<i64: 1>, scalar_prefetch = 0 : i64, scratch_operands = 0 : i64, tpu.core_type = #tpu.core_type<tc>, window_params = [{transform_indices = @transform_0, window_bounds = array<i64: 2, 64>}, {transform_indices = @transform_1, window_bounds = array<i64: 2, 64>}, {pipeline_mode = #tpu.pipeline_mode<synchronous>, transform_indices = @transform_2, window_bounds = array<i64: 64, 384>}, {pipeline_mode = #tpu.pipeline_mode<synchronous>, transform_indices = @transform_3, window_bounds = array<i64: 1, 384>}, {pipeline_mode = #tpu.pipeline_mode<synchronous>, transform_indices = @transform_4, window_bounds = array<i64: 1, 384>}, {pipeline_mode = #tpu.pipeline_mode<synchronous>, transform_indices = @transform_5, window_bounds = array<i64: 1, 384>}, {pipeline_mode = #tpu.pipeline_mode<synchronous>, transform_indices = @transform_6, window_bounds = array<i64: 1, 384>}, {pipeline_mode = #tpu.pipeline_mode<synchronous>, transform_indices = @transform_7, window_bounds = array<i64: 384, 64>}, {pipeline_mode = #tpu.pipeline_mode<synchronous>, transform_indices = @transform_8, window_bounds = array<i64: 1, 64>}, {transform_indices = @transform_9, window_bounds = array<i64: 2, 64>}]} {
    %c0 = arith.constant 0 : index
    %c0_0 = arith.constant 0 : index
    %0 = vector.load %arg1[%c0, %c0_0] : memref<2x64xbf16, #tpu.memory_space<vmem>>, vector<2x64xbf16>
    %c0_1 = arith.constant 0 : index
    %c0_2 = arith.constant 0 : index
    %1 = vector.load %arg3[%c0_1, %c0_2] : memref<64x384xbf16, #tpu.memory_space<vmem>>, vector<64x384xbf16>
    %cst = arith.constant dense<0.000000e+00> : vector<2x384xf32>
    %2 = tpu.matmul %0, %1, %cst {dimension_numbers = #tpu.dot_dimension_numbers<[1], [0], [0], [1], [0, 0, 1, 1], [], []>} : vector<2x64xbf16>, vector<64x384xbf16>, vector<2x384xf32> -> vector<2x384xf32>
    %c0_3 = arith.constant 0 : index
    %c0_4 = arith.constant 0 : index
    %3 = vector.load %arg4[%c0_3, %c0_4] : memref<1x384xf32, #tpu.memory_space<vmem>>, vector<1x384xf32>
    %4 = vector.broadcast %3 : vector<1x384xf32> to vector<2x384xf32>
    %5 = arith.addf %2, %4 : vector<2x384xf32>
    %cst_5 = arith.constant 0.000000e+00 : f32
    %cst_6 = arith.constant 6.000000e+00 : f32
    %6 = vector.broadcast %cst_5 : f32 to vector<2x384xf32>
    %7 = arith.maximumf %6, %5 : vector<2x384xf32>
    %8 = vector.broadcast %cst_6 : f32 to vector<2x384xf32>
    %9 = arith.minimumf %8, %7 : vector<2x384xf32>
    %c0_7 = arith.constant 0 : index
    %c0_8 = arith.constant 0 : index
    %10 = vector.load %arg2[%c0_7, %c0_8] : memref<2x64xbf16, #tpu.memory_space<vmem>>, vector<2x64xbf16>
    %c0_9 = arith.constant 0 : index
    %c0_10 = arith.constant 0 : index
    %11 = vector.load %arg3[%c0_9, %c0_10] : memref<64x384xbf16, #tpu.memory_space<vmem>>, vector<64x384xbf16>
    %cst_11 = arith.constant dense<0.000000e+00> : vector<2x384xf32>
    %12 = tpu.matmul %10, %11, %cst_11 {dimension_numbers = #tpu.dot_dimension_numbers<[1], [0], [0], [1], [0, 0, 1, 1], [], []>} : vector<2x64xbf16>, vector<64x384xbf16>, vector<2x384xf32> -> vector<2x384xf32>
    %c0_12 = arith.constant 0 : index
    %c0_13 = arith.constant 0 : index
    %13 = vector.load %arg4[%c0_12, %c0_13] : memref<1x384xf32, #tpu.memory_space<vmem>>, vector<1x384xf32>
    %14 = vector.broadcast %13 : vector<1x384xf32> to vector<2x384xf32>
    %15 = arith.addf %12, %14 : vector<2x384xf32>
    %cst_14 = arith.constant 0.000000e+00 : f32
    %cst_15 = arith.constant 6.000000e+00 : f32
    %16 = vector.broadcast %cst_14 : f32 to vector<2x384xf32>
    %17 = arith.maximumf %16, %15 : vector<2x384xf32>
    %18 = vector.broadcast %cst_15 : f32 to vector<2x384xf32>
    %19 = arith.minimumf %18, %17 : vector<2x384xf32>
    %c0_16 = arith.constant 0 : index
    %c0_17 = arith.constant 0 : index
    %20 = vector.load %arg5[%c0_16, %c0_17] : memref<1x384xf32, #tpu.memory_space<vmem>>, vector<1x384xf32>
    %21 = vector.broadcast %20 : vector<1x384xf32> to vector<2x384xf32>
    %22 = arith.mulf %9, %21 : vector<2x384xf32>
    %c0_18 = arith.constant 0 : index
    %c0_19 = arith.constant 0 : index
    %23 = vector.load %arg6[%c0_18, %c0_19] : memref<1x384xf32, #tpu.memory_space<vmem>>, vector<1x384xf32>
    %24 = vector.broadcast %23 : vector<1x384xf32> to vector<2x384xf32>
    %25 = arith.mulf %19, %24 : vector<2x384xf32>
    %26 = arith.addf %22, %25 : vector<2x384xf32>
    %c0_20 = arith.constant 0 : index
    %c0_21 = arith.constant 0 : index
    %27 = vector.load %arg7[%c0_20, %c0_21] : memref<1x384xf32, #tpu.memory_space<vmem>>, vector<1x384xf32>
    %28 = vector.broadcast %27 : vector<1x384xf32> to vector<2x384xf32>
    %29 = arith.addf %26, %28 : vector<2x384xf32>
    %cst_22 = arith.constant 0.000000e+00 : f32
    %cst_23 = arith.constant 6.000000e+00 : f32
    %30 = vector.broadcast %cst_22 : f32 to vector<2x384xf32>
    %31 = arith.maximumf %30, %29 : vector<2x384xf32>
    %32 = vector.broadcast %cst_23 : f32 to vector<2x384xf32>
    %33 = arith.minimumf %32, %31 : vector<2x384xf32>
    %34 = arith.truncf %33 : vector<2x384xf32> to vector<2x384xbf16>
    %c0_24 = arith.constant 0 : index
    %c0_25 = arith.constant 0 : index
    %35 = vector.load %arg8[%c0_24, %c0_25] : memref<384x64xbf16, #tpu.memory_space<vmem>>, vector<384x64xbf16>
    %cst_26 = arith.constant dense<0.000000e+00> : vector<2x64xf32>
    %36 = tpu.matmul %34, %35, %cst_26 {dimension_numbers = #tpu.dot_dimension_numbers<[1], [0], [0], [1], [0, 0, 1, 1], [], []>} : vector<2x384xbf16>, vector<384x64xbf16>, vector<2x64xf32> -> vector<2x64xf32>
    %c0_27 = arith.constant 0 : index
    %c0_28 = arith.constant 0 : index
    %37 = vector.load %arg9[%c0_27, %c0_28] : memref<1x64xf32, #tpu.memory_space<vmem>>, vector<1x64xf32>
    %38 = vector.broadcast %37 : vector<1x64xf32> to vector<2x64xf32>
    %39 = arith.addf %36, %38 : vector<2x64xf32>
    %40 = arith.truncf %39 : vector<2x64xf32> to vector<2x64xbf16>
    %c0_29 = arith.constant 0 : index
    %c0_30 = arith.constant 0 : index
    %41 = vector.load %arg10[%c0_29, %c0_30] : memref<2x64xbf16, #tpu.memory_space<vmem>>, vector<2x64xbf16>
    tpu.vector_store %arg10[%c0_29, %c0_30], %40 {strides = array<i32>} : memref<2x64xbf16, #tpu.memory_space<vmem>>, vector<2x64xbf16>,
    return
  }
  func.func @transform_0(%arg0: i32) -> (i32, i32) {
    %c0_i32 = arith.constant 0 : i32
    %c0_i32_0 = arith.constant 0 : i32
    return %arg0, %c0_i32 : i32, i32
  }
  func.func @transform_1(%arg0: i32) -> (i32, i32) {
    %c0_i32 = arith.constant 0 : i32
    %c0_i32_0 = arith.constant 0 : i32
    return %arg0, %c0_i32 : i32, i32
  }
  func.func @transform_2(%arg0: i32) -> (i32, i32) {
    %c0_i32 = arith.constant 0 : i32
    %c0_i32_0 = arith.constant 0 : i32
    %c0_i32_1 = arith.constant 0 : i32
    return %c0_i32, %c0_i32_0 : i32, i32
  }
  func.func @transform_3(%arg0: i32) -> (i32, i32) {
    %c0_i32 = arith.constant 0 : i32
    %c0_i32_0 = arith.constant 0 : i32
    %c0_i32_1 = arith.constant 0 : i32
    return %c0_i32, %c0_i32_0 : i32, i32
  }
  func.func @transform_4(%arg0: i32) -> (i32, i32) {
    %c0_i32 = arith.constant 0 : i32
    %c0_i32_0 = arith.constant 0 : i32
    %c0_i32_1 = arith.constant 0 : i32
    return %c0_i32, %c0_i32_0 : i32, i32
  }
  func.func @transform_5(%arg0: i32) -> (i32, i32) {
    %c0_i32 = arith.constant 0 : i32
    %c0_i32_0 = arith.constant 0 : i32
    %c0_i32_1 = arith.constant 0 : i32
    return %c0_i32, %c0_i32_0 : i32, i32
  }
  func.func @transform_6(%arg0: i32) -> (i32, i32) {
    %c0_i32 = arith.constant 0 : i32
    %c0_i32_0 = arith.constant 0 : i32
    %c0_i32_1 = arith.constant 0 : i32
    return %c0_i32, %c0_i32_0 : i32, i32
  }
  func.func @transform_7(%arg0: i32) -> (i32, i32) {
    %c0_i32 = arith.constant 0 : i32
    %c0_i32_0 = arith.constant 0 : i32
    %c0_i32_1 = arith.constant 0 : i32
    return %c0_i32, %c0_i32_0 : i32, i32
  }
  func.func @transform_8(%arg0: i32) -> (i32, i32) {
    %c0_i32 = arith.constant 0 : i32
    %c0_i32_0 = arith.constant 0 : i32
    %c0_i32_1 = arith.constant 0 : i32
    return %c0_i32, %c0_i32_0 : i32, i32
  }
  func.func @transform_9(%arg0: i32) -> (i32, i32) {
    %c0_i32 = arith.constant 0 : i32
    %c0_i32_0 = arith.constant 0 : i32
    return %arg0, %c0_i32 : i32, i32
  }
}

</mosaic_0001>

<llo_original>
// kernel: _lambda_.7
$region0: #{_lambda_.7}
  #allocation0 [shape = 'u32[]', space=smem, size = 0x4, offset = 0x4, fixed_abs, tag = 'smem constant byte address 0x4 - core index']
  #allocation1 [shape = 'u32[144,128]{1,0:T(1,128)}', space=vmem, size = 0x12000, scoped, tag = 'internal scratch']
  %s0 = inlined_call_operand.vmem [shape: bf16[16,8], index: 0, kind: input, shape index: {}]
  %s1 = inlined_call_operand.vmem [shape: bf16[8,32], index: 1, kind: input, shape index: {}]
  %s2 = inlined_call_operand.vmem [shape: f32[1,32], index: 2, kind: input, shape index: {}, may-alias: {2,4}]
  %s3 = inlined_call_operand.hbm [shape: bf16[32,32], index: 3, kind: input, shape index: {}]
  %s4 = inlined_call_operand.vmem [shape: f32[1,32], index: 4, kind: input, shape index: {}, may-alias: {2,4}]
  %s5 = inlined_call_operand.vmem [shape: bf16[16,32], index: 5, kind: output, shape index: {}]
  %s6 = sld [smem:[#allocation0]]
  $region34: #{_lambda_.7} parent=0
    _
  %s8 = ssub.s32 1, %s6
  %s9 = scalar_select 0, %s8, %s6
  $region1: #{_lambda_.7} parent=0
    #allocation2 [shape = 'u8[8192]{0}', space=vmem, size = 0x2000, scoped, tag = 'input window, operand 3, single buffered']
    #allocation3 [shape = 's32[1]{0}', space=sflag, size = 0x4, scoped, tag = 'scoped memory for _lambda_.7']
    %10 = vsyncpa [#allocation3], 0
    // Predicated region
    $region2: #{_lambda_.7} parent=1 // pred_check
      _
    $region3: #{_lambda_.7} parent=1 // pred_check_branch
      %12 = sbr.rel (0) target = $region5
    $region4: #{_lambda_.7} parent=1 // pred_region
      _
    $region5: #{_lambda_.7} parent=1 // pred_fallthru
      _
    // Predicated region
    $region6: #{_lambda_.7} parent=1 // pred_check
      _
    $region7: #{_lambda_.7} parent=1 // pred_check_branch
      %14 = sbr.rel (0) target = $region9
    $region8: #{_lambda_.7} parent=1 // pred_region
      _
    $region9: #{_lambda_.7} parent=1 // pred_fallthru
      _
    // Predicated region
    $region10: #{_lambda_.7} parent=1 // pred_check
      _
    $region11: #{_lambda_.7} parent=1 // pred_check_branch
      %16 = sbr.rel (0) target = $region13
    $region12: #{_lambda_.7} parent=1 // pred_region
      _
    $region13: #{_lambda_.7} parent=1 // pred_fallthru
      _
    // Predicated region
    $region14: #{_lambda_.7} parent=1 // pred_check
      _
    $region15: #{_lambda_.7} parent=1 // pred_check_branch
      %18 = sbr.rel (0) target = $region17
    $region16: #{_lambda_.7} parent=1 // pred_region
      %s20 = ssub.s32 256, 256
      %21 = vsyncadd [#allocation3], %s20
      %s22 = sshll.u32 [#allocation2], 4
      %s23 = int_to_ptr.vmem [resolvable:$true] %s22
      %28 = dma.hbm_to_vmem [thread:$0]  %s3, 256, %s23, [#allocation3], 64, 64, 4
    $region17: #{_lambda_.7} parent=1 // pred_fallthru
      _
    // Predicated region
    $region18: #{_lambda_.7} parent=1 // pred_check
      _
    $region19: #{_lambda_.7} parent=1 // pred_check_branch
      %30 = sbr.rel (0) target = $region21
    $region20: #{_lambda_.7} parent=1 // pred_region
      _
    $region21: #{_lambda_.7} parent=1 // pred_fallthru
      _
    // Predicated region
    $region22: #{_lambda_.7} parent=1 // pred_check
      _
    $region23: #{_lambda_.7} parent=1 // pred_check_branch
      %32 = sbr.rel (0) target = $region25
    $region24: #{_lambda_.7} parent=1 // pred_region
      %33 = dma.done [#allocation3], 256
    $region25: #{_lambda_.7} parent=1 // pred_fallthru
      _
    %v35 = vld [vmem:[%s0] sm:$0xf]
    %v36 = vld [vmem:[%s0 + $0x4] sm:$0xf]
    %v37 = vld [vmem:[%s1] sm:$0xf]
    %v38 = vld [vmem:[%s2] sm:$0x1]
    %v40 = vlaneseq
    %v41 = vshrl.u32 %v40, 7
    %v42 = vsub.s32 0, %v41
    %v43 = vrot.slane %v38, %v42
    %v47 = vunpack.c.l.b16 %v35
    %v48 = vunpack.c.l.b16 %v36
    %v49 = vpack.c.b16 %v48, %v47
    %vm50 = vcmask 64512
    %v52 = vsel %vm50, %v49, 0
    %vm54 = vcmask 1043456
    %v56 = vsel %vm54, %v37, 0
    %58 = vmatprep.subr.bf16.mxu0 0
    %59 = vmatpush1.bf16.msra.mxu0 0
    %60 = vmatprep.subr.bf16.mxu0 0
    %61 = vmatpush1.bf16.msra.mxu0 0
    %62 = vmatprep.subr.bf16.mxu0 0
    %63 = vmatpush1.bf16.msra.mxu0 0
    %64 = vmatprep.subr.bf16.mxu0 0
    %65 = vmatpush1.bf16.msra.mxu0 0
    %66 = vmatprep.subr.bf16.mxu0 0
    %67 = vmatpush1.bf16.msra.mxu0 0
    %68 = vmatprep.subr.bf16.mxu0 0
    %69 = vmatpush1.bf16.msra.mxu0 0
    %70 = vmatprep.subr.bf16.mxu0 0
    %71 = vmatpush1.bf16.msra.mxu0 0
    %72 = vmatprep.subr.bf16.mxu0 0
    %73 = vmatpush1.bf16.msra.mxu0 %v56
    %74 = vmatprep.subr.bf16.mxu0 0
    %75 = vmatpush2.bf16.msra.mxu0 0
    %76 = vmatprep.subr.bf16.mxu0 0
    %77 = vmatpush2.bf16.msra.mxu0 0
    %78 = vmatprep.subr.bf16.mxu0 0
    %79 = vmatpush2.bf16.msra.mxu0 0
    %80 = vmatprep.subr.bf16.mxu0 0
    %81 = vmatpush2.bf16.msra.mxu0 0
    %82 = vmatprep.subr.bf16.mxu0 0
    %83 = vmatpush2.bf16.msra.mxu0 0
    %84 = vmatprep.subr.bf16.mxu0 0
    %85 = vmatpush2.bf16.msra.mxu0 0
    %86 = vmatprep.subr.bf16.mxu0 0
    %87 = vmatpush2.bf16.msra.mxu0 0
    %88 = vmatprep.subr.bf16.mxu0 0
    %89 = vmatpush2.bf16.msra.mxu0 0
    %90 = vmatprep.mubr.bf16.mxu0 0
    %91 = vmatmul.mubr.bf16.gmra.mxu0 %v52
    %v92 = vpop.f32.mrf.mxu0
    %v93 = vadd.f32 %v43, %v92
    %v94 = vpop.f32.mrf.mxu0
    %v95 = vpop.f32.mrf.mxu0
    %v96 = vadd.f32 %v43, %v95
    %v97 = vpop.f32.mrf.mxu0
    %98 = vdwg.mxu0
    %v99 = vmax.f32 %v93, 0.0
    %v100 = vmax.f32 %v96, 0.0
    %v101 = vpack.c.bf16 %v100, %v99
    %v102 = vld [vmem:[#allocation2] sm:$0xf]
    %v103 = vld [vmem:[#allocation2 + $0x4] sm:$0xf]
    %v104 = vld [vmem:[#allocation2 + $0x8] sm:$0xf]
    %v105 = vld [vmem:[#allocation2 + $0xc] sm:$0xf]
    %v106 = vld [vmem:[%s4] sm:$0x1]
    %v108 = vlaneseq
    %v109 = vshrl.u32 %v108, 7
    %v110 = vsub.s32 0, %v109
    %v111 = vrot.slane %v106, %v110
    %v117 = vunpack.c.l.b16 %v102
    %v118 = vunpack.c.l.b16 %v103
    %v119 = vunpack.c.l.b16 %v104
    %v120 = vunpack.c.l.b16 %v105
    %v121 = vpack.c.b16 %v118, %v117
    %v122 = vpack.c.b16 %v120, %v119
    %vm125 = vcmask 261120
    %v127 = vsel %vm125, %v101, 0
    %129 = vmatprep.subr.bf16.mxu0 0
    %130 = vmatpush1.bf16.msra.mxu0 0
    %131 = vmatprep.subr.bf16.mxu0 0
    %132 = vmatpush1.bf16.msra.mxu0 0
    %133 = vmatprep.subr.bf16.mxu0 0
    %134 = vmatpush1.bf16.msra.mxu0 0
    %135 = vmatprep.subr.bf16.mxu0 0
    %136 = vmatpush1.bf16.msra.mxu0 0
    %137 = vmatprep.subr.bf16.mxu0 0
    %138 = vmatpush1.bf16.msra.mxu0 0
    %139 = vmatprep.subr.bf16.mxu0 0
    %140 = vmatpush1.bf16.msra.mxu0 0
    %141 = vmatprep.subr.bf16.mxu0 0
    %142 = vmatpush1.bf16.msra.mxu0 %v122
    %143 = vmatprep.subr.bf16.mxu0 0
    %144 = vmatpush1.bf16.msra.mxu0 %v121
    %145 = vmatprep.subr.bf16.mxu0 0
    %146 = vmatpush2.bf16.msra.mxu0 0
    %147 = vmatprep.subr.bf16.mxu0 0
    %148 = vmatpush2.bf16.msra.mxu0 0
    %149 = vmatprep.subr.bf16.mxu0 0
    %150 = vmatpush2.bf16.msra.mxu0 0
    %151 = vmatprep.subr.bf16.mxu0 0
    %152 = vmatpush2.bf16.msra.mxu0 0
    %153 = vmatprep.subr.bf16.mxu0 0
    %154 = vmatpush2.bf16.msra.mxu0 0
    %155 = vmatprep.subr.bf16.mxu0 0
    %156 = vmatpush2.bf16.msra.mxu0 0
    %157 = vmatprep.subr.bf16.mxu0 0
    %158 = vmatpush2.bf16.msra.mxu0 0
    %159 = vmatprep.subr.bf16.mxu0 0
    %160 = vmatpush2.bf16.msra.mxu0 0
    %161 = vmatprep.mubr.bf16.mxu0 0
    %162 = vmatmul.mubr.bf16.gmra.mxu0 %v127
    %v163 = vpop.f32.mrf.mxu0
    %v164 = vadd.f32 %v111, %v163
    %v165 = vpop.f32.mrf.mxu0
    %v166 = vpop.f32.mrf.mxu0
    %v167 = vadd.f32 %v111, %v166
    %v168 = vpop.f32.mrf.mxu0
    %169 = vdwg.mxu0
    %v170 = vmax.f32 %v164, 0.0
    %v171 = vmax.f32 %v167, 0.0
    %v172 = vpack.c.bf16 %v171, %v170
    %v174 = vunpack.c.l.b16 %v172
    %v175 = vunpack.c.h.b16 %v172
    %v176 = vpack.c.b16 %v174, %v174
    %v177 = vpack.c.b16 %v175, %v175
    %vm180 = vcmask 257024
    %181 = vst.msk [vmem:[%s5] sm:$0xf] %vm180, %v176
    %182 = vst.msk [vmem:[%s5 + $0x4] sm:$0xf] %vm180, %v177
    // Predicated region
    $region26: #{_lambda_.7} parent=1 // pred_check
      _
    $region27: #{_lambda_.7} parent=1 // pred_check_branch
      %184 = sbr.rel (0) target = $region29
    $region28: #{_lambda_.7} parent=1 // pred_region
      _
    $region29: #{_lambda_.7} parent=1 // pred_fallthru
      _
    // Predicated region
    $region30: #{_lambda_.7} parent=1 // pred_check
      _
    $region31: #{_lambda_.7} parent=1 // pred_check_branch
      %186 = sbr.rel (0) target = $region33
    $region32: #{_lambda_.7} parent=1 // pred_region
      _
    $region33: #{_lambda_.7} parent=1 // pred_fallthru
      _
    %187 = vsyncpa [#allocation3], 1

// kernel: _lambda_.8
$region0: #{_lambda_.8}
  #allocation0 [shape = 'u32[]', space=smem, size = 0x4, offset = 0x4, fixed_abs, tag = 'smem constant byte address 0x4 - core index']
  #allocation1 [shape = 'u32[144,128]{1,0:T(1,128)}', space=vmem, size = 0x12000, scoped, tag = 'internal scratch']
  %s0 = inlined_call_operand.vmem [shape: bf16[8,32], index: 0, kind: input, shape index: {}]
  %s1 = inlined_call_operand.vmem [shape: bf16[8,32], index: 1, kind: input, shape index: {}]
  %s2 = inlined_call_operand.vmem [shape: bf16[32,192], index: 2, kind: input, shape index: {}]
  %s3 = inlined_call_operand.vmem [shape: f32[1,192], index: 3, kind: input, shape index: {}, may-alias: {3,6}]
  %s4 = inlined_call_operand.hbm [shape: f32[1,192], index: 4, kind: input, shape index: {}]
  %s5 = inlined_call_operand.hbm [shape: f32[1,192], index: 5, kind: input, shape index: {}]
  %s6 = inlined_call_operand.vmem [shape: f32[1,192], index: 6, kind: input, shape index: {}, may-alias: {3,6}]
  %s7 = inlined_call_operand.vmem [shape: bf16[192,32], index: 7, kind: input, shape index: {}]
  %s8 = inlined_call_operand.vmem [shape: f32[1,32], index: 8, kind: input, shape index: {}]
  %s9 = inlined_call_operand.vmem [shape: bf16[8,32], index: 9, kind: output, shape index: {}]
  %s10 = sld [smem:[#allocation0]]
  $region54: #{_lambda_.8} parent=0
    _
  %s12 = ssub.s32 1, %s10
  %s13 = scalar_select 0, %s12, %s10
  $region1: #{_lambda_.8} parent=0
    #allocation2 [shape = 'u8[1024]{0}', space=vmem, size = 0x400, scoped, tag = 'input window, operand 4, single buffered']
    #allocation3 [shape = 's32[1]{0}', space=sflag, size = 0x4, scoped, tag = 'scoped memory for _lambda_.8']
    #allocation4 [shape = 'u8[1024]{0}', space=vmem, size = 0x400, scoped, tag = 'input window, operand 5, single buffered']
    #allocation5 [shape = 's32[1]{0}', space=sflag, size = 0x4, scoped, tag = 'scoped memory for _lambda_.8']
    %14 = vsyncpa [#allocation3], 0
    %15 = vsyncpa [#allocation5], 0
    // Predicated region
    $region2: #{_lambda_.8} parent=1 // pred_check
      _
    $region3: #{_lambda_.8} parent=1 // pred_check_branch
      %17 = sbr.rel (0) target = $region5
    $region4: #{_lambda_.8} parent=1 // pred_region
      _
    $region5: #{_lambda_.8} parent=1 // pred_fallthru
      _
    // Predicated region
    $region6: #{_lambda_.8} parent=1 // pred_check
      _
    $region7: #{_lambda_.8} parent=1 // pred_check_branch
      %19 = sbr.rel (0) target = $region9
    $region8: #{_lambda_.8} parent=1 // pred_region
      _
    $region9: #{_lambda_.8} parent=1 // pred_fallthru
      _
    // Predicated region
    $region10: #{_lambda_.8} parent=1 // pred_check
      _
    $region11: #{_lambda_.8} parent=1 // pred_check_branch
      %21 = sbr.rel (0) target = $region13
    $region12: #{_lambda_.8} parent=1 // pred_region
      _
    $region13: #{_lambda_.8} parent=1 // pred_fallthru
      _
    // Predicated region
    $region14: #{_lambda_.8} parent=1 // pred_check
      _
    $region15: #{_lambda_.8} parent=1 // pred_check_branch
      %23 = sbr.rel (0) target = $region17
    $region16: #{_lambda_.8} parent=1 // pred_region
      _
    $region17: #{_lambda_.8} parent=1 // pred_fallthru
      _
    // Predicated region
    $region18: #{_lambda_.8} parent=1 // pred_check
      _
    $region19: #{_lambda_.8} parent=1 // pred_check_branch
      %25 = sbr.rel (0) target = $region21
    $region20: #{_lambda_.8} parent=1 // pred_region
      %s27 = ssub.s32 32, 32
      %28 = vsyncadd [#allocation3], %s27
      %s30 = sshll.u32 [#allocation2], 4
      %s31 = int_to_ptr.vmem [resolvable:$true] %s30
      %33 = dma.hbm_to_vmem [thread:$0]  %s4, 32, %s31, [#allocation3]
    $region21: #{_lambda_.8} parent=1 // pred_fallthru
      _
    // Predicated region
    $region22: #{_lambda_.8} parent=1 // pred_check
      _
    $region23: #{_lambda_.8} parent=1 // pred_check_branch
      %35 = sbr.rel (0) target = $region25
    $region24: #{_lambda_.8} parent=1 // pred_region
      %s37 = ssub.s32 32, 32
      %38 = vsyncadd [#allocation5], %s37
      %s40 = sshll.u32 [#allocation4], 4
      %s41 = int_to_ptr.vmem [resolvable:$true] %s40
      %43 = dma.hbm_to_vmem [thread:$0]  %s5, 32, %s41, [#allocation5]
    $region25: #{_lambda_.8} parent=1 // pred_fallthru
      _
    // Predicated region
    $region26: #{_lambda_.8} parent=1 // pred_check
      _
    $region27: #{_lambda_.8} parent=1 // pred_check_branch
      %45 = sbr.rel (0) target = $region29
    $region28: #{_lambda_.8} parent=1 // pred_region
      _
    $region29: #{_lambda_.8} parent=1 // pred_fallthru
      _
    // Predicated region
    $region30: #{_lambda_.8} parent=1 // pred_check
      _
    $region31: #{_lambda_.8} parent=1 // pred_check_branch
      %47 = sbr.rel (0) target = $region33
    $region32: #{_lambda_.8} parent=1 // pred_region
      _
    $region33: #{_lambda_.8} parent=1 // pred_fallthru
      _
    // Predicated region
    $region34: #{_lambda_.8} parent=1 // pred_check
      _
    $region35: #{_lambda_.8} parent=1 // pred_check_branch
      %49 = sbr.rel (0) target = $region37
    $region36: #{_lambda_.8} parent=1 // pred_region
      _
    $region37: #{_lambda_.8} parent=1 // pred_fallthru
      _
    // Predicated region
    $region38: #{_lambda_.8} parent=1 // pred_check
      _
    $region39: #{_lambda_.8} parent=1 // pred_check_branch
      %51 = sbr.rel (0) target = $region41
    $region40: #{_lambda_.8} parent=1 // pred_region
      %52 = dma.done [#allocation3], 32
    $region41: #{_lambda_.8} parent=1 // pred_fallthru
      _
    // Predicated region
    $region42: #{_lambda_.8} parent=1 // pred_check
      _
    $region43: #{_lambda_.8} parent=1 // pred_check_branch
      %54 = sbr.rel (0) target = $region45
    $region44: #{_lambda_.8} parent=1 // pred_region
      %55 = dma.done [#allocation5], 32
    $region45: #{_lambda_.8} parent=1 // pred_fallthru
      _
    %v57 = vld [vmem:[%s0] sm:$0xf]
    %v58 = vld [vmem:[%s2] sm:$0xff]
    %v59 = vld [vmem:[%s2 + $0x8] sm:$0xff]
    %v60 = vld [vmem:[%s2 + $0x10] sm:$0xff]
    %v61 = vld [vmem:[%s2 + $0x18] sm:$0xff]
    %v62 = vld [vmem:[%s3] sm:$0x3]
    %v64 = vlaneseq
    %v65 = vshrl.u32 %v64, 7
    %v66 = vsub.s32 0, %v65
    %v67 = vrot.slane %v62, %v66
    %v68 = vlaneseq
    %v69 = vshrl.u32 %v68, 7
    %v70 = vsub.s32 1, %v69
    %v71 = vrot.slane %v62, %v70
    %v78 = vunpack.c.l.b16 %v58
    %v79 = vunpack.c.h.b16 %v58
    %v80 = vunpack.c.l.b16 %v59
    %v81 = vunpack.c.h.b16 %v59
    %v82 = vunpack.c.l.b16 %v60
    %v83 = vunpack.c.h.b16 %v60
    %v84 = vunpack.c.l.b16 %v61
    %v85 = vunpack.c.h.b16 %v61
    %v86 = vpack.c.b16 %v80, %v78
    %v87 = vpack.c.b16 %v81, %v79
    %v88 = vpack.c.b16 %v84, %v82
    %v89 = vpack.c.b16 %v85, %v83
    %vm94 = vcmask 261120
    %v96 = vsel %vm94, %v57, 0
    %98 = vmatprep.subr.bf16.mxu0 0
    %99 = vmatpush1.bf16.msra.mxu0 0
    %100 = vmatprep.subr.bf16.mxu0 0
    %101 = vmatpush1.bf16.msra.mxu0 0
    %102 = vmatprep.subr.bf16.mxu0 0
    %103 = vmatpush1.bf16.msra.mxu0 0
    %104 = vmatprep.subr.bf16.mxu0 0
    %105 = vmatpush1.bf16.msra.mxu0 0
    %106 = vmatprep.subr.bf16.mxu0 0
    %107 = vmatpush1.bf16.msra.mxu0 0
    %108 = vmatprep.subr.bf16.mxu0 0
    %109 = vmatpush1.bf16.msra.mxu0 0
    %110 = vmatprep.subr.bf16.mxu0 %v89
    %111 = vmatpush1.bf16.msra.mxu0 %v88
    %112 = vmatprep.subr.bf16.mxu0 %v87
    %113 = vmatpush1.bf16.msra.mxu0 %v86
    %114 = vmatprep.subr.bf16.mxu0 0
    %115 = vmatpush2.bf16.msra.mxu0 0
    %116 = vmatprep.subr.bf16.mxu0 0
    %117 = vmatpush2.bf16.msra.mxu0 0
    %118 = vmatprep.subr.bf16.mxu0 0
    %119 = vmatpush2.bf16.msra.mxu0 0
    %120 = vmatprep.subr.bf16.mxu0 0
    %121 = vmatpush2.bf16.msra.mxu0 0
    %122 = vmatprep.subr.bf16.mxu0 0
    %123 = vmatpush2.bf16.msra.mxu0 0
    %124 = vmatprep.subr.bf16.mxu0 0
    %125 = vmatpush2.bf16.msra.mxu0 0
    %126 = vmatprep.subr.bf16.mxu0 0
    %127 = vmatpush2.bf16.msra.mxu0 0
    %128 = vmatprep.subr.bf16.mxu0 0
    %129 = vmatpush2.bf16.msra.mxu0 0
    %130 = vmatprep.mubr.bf16.mxu0 0
    %131 = vmatmul.mubr.bf16.gmra.mxu0 %v96
    %v132 = vpop.f32.mrf.mxu0
    %v133 = vadd.f32 %v67, %v132
    %v134 = vpop.f32.mrf.mxu0
    %v135 = vadd.f32 %v71, %v134
    %v136 = vpop.f32.mrf.mxu0
    %v137 = vpop.f32.mrf.mxu0
    %138 = vdwg.mxu0
    %v139 = vmax.f32 %v133, 0.0
    %v140 = vmax.f32 %v135, 0.0
    %v141 = vmin.f32 %v139, 6.0
    %v142 = vmin.f32 %v140, 6.0
    %v143 = vld [vmem:[%s1] sm:$0xf]
    %v145 = vsel %vm94, %v143, 0
    %147 = vmatprep.subr.bf16.mxu0 0
    %148 = vmatpush1.bf16.msra.mxu0 0
    %149 = vmatprep.subr.bf16.mxu0 0
    %150 = vmatpush1.bf16.msra.mxu0 0
    %151 = vmatprep.subr.bf16.mxu0 0
    %152 = vmatpush1.bf16.msra.mxu0 0
    %153 = vmatprep.subr.bf16.mxu0 0
    %154 = vmatpush1.bf16.msra.mxu0 0
    %155 = vmatprep.subr.bf16.mxu0 0
    %156 = vmatpush1.bf16.msra.mxu0 0
    %157 = vmatprep.subr.bf16.mxu0 0
    %158 = vmatpush1.bf16.msra.mxu0 0
    %159 = vmatprep.subr.bf16.mxu0 %v89
    %160 = vmatpush1.bf16.msra.mxu0 %v88
    %161 = vmatprep.subr.bf16.mxu0 %v87
    %162 = vmatpush1.bf16.msra.mxu0 %v86
    %163 = vmatprep.subr.bf16.mxu0 0
    %164 = vmatpush2.bf16.msra.mxu0 0
    %165 = vmatprep.subr.bf16.mxu0 0
    %166 = vmatpush2.bf16.msra.mxu0 0
    %167 = vmatprep.subr.bf16.mxu0 0
    %168 = vmatpush2.bf16.msra.mxu0 0
    %169 = vmatprep.subr.bf16.mxu0 0
    %170 = vmatpush2.bf16.msra.mxu0 0
    %171 = vmatprep.subr.bf16.mxu0 0
    %172 = vmatpush2.bf16.msra.mxu0 0
    %173 = vmatprep.subr.bf16.mxu0 0
    %174 = vmatpush2.bf16.msra.mxu0 0
    %175 = vmatprep.subr.bf16.mxu0 0
    %176 = vmatpush2.bf16.msra.mxu0 0
    %177 = vmatprep.subr.bf16.mxu0 0
    %178 = vmatpush2.bf16.msra.mxu0 0
    %179 = vmatprep.mubr.bf16.mxu0 0
    %180 = vmatmul.mubr.bf16.gmra.mxu0 %v145
    %v181 = vpop.f32.mrf.mxu0
    %v182 = vadd.f32 %v67, %v181
    %v183 = vpop.f32.mrf.mxu0
    %v184 = vadd.f32 %v71, %v183
    %v185 = vpop.f32.mrf.mxu0
    %v186 = vpop.f32.mrf.mxu0
    %187 = vdwg.mxu0
    %v188 = vmax.f32 %v182, 0.0
    %v189 = vmax.f32 %v184, 0.0
    %v190 = vmin.f32 %v188, 6.0
    %v191 = vmin.f32 %v189, 6.0
    %v192 = vld [vmem:[#allocation2] sm:$0x3]
    %v194 = vlaneseq
    %v195 = vshrl.u32 %v194, 7
    %v196 = vsub.s32 0, %v195
    %v197 = vrot.slane %v192, %v196
    %v198 = vlaneseq
    %v199 = vshrl.u32 %v198, 7
    %v200 = vsub.s32 1, %v199
    %v201 = vrot.slane %v192, %v200
    %v204 = vmul.f32 %v141, %v197
    %v205 = vmul.f32 %v142, %v201
    %v206 = vld [vmem:[#allocation4] sm:$0x3]
    %v208 = vlaneseq
    %v209 = vshrl.u32 %v208, 7
    %v210 = vsub.s32 0, %v209
    %v211 = vrot.slane %v206, %v210
    %v212 = vlaneseq
    %v213 = vshrl.u32 %v212, 7
    %v214 = vsub.s32 1, %v213
    %v215 = vrot.slane %v206, %v214
    %v218 = vmul.f32 %v190, %v211
    %v219 = vmul.f32 %v191, %v215
    %v220 = vadd.f32 %v204, %v218
    %v221 = vadd.f32 %v205, %v219
    %v222 = vld [vmem:[%s6] sm:$0x3]
    %v224 = vlaneseq
    %v225 = vshrl.u32 %v224, 7
    %v226 = vsub.s32 0, %v225
    %v227 = vrot.slane %v222, %v226
    %v228 = vlaneseq
    %v229 = vshrl.u32 %v228, 7
    %v230 = vsub.s32 1, %v229
    %v231 = vrot.slane %v222, %v230
    %v234 = vadd.f32 %v220, %v227
    %v235 = vadd.f32 %v221, %v231
    %v236 = vmax.f32 %v234, 0.0
    %v237 = vmax.f32 %v235, 0.0
    %v238 = vmin.f32 %v236, 6.0
    %v239 = vmin.f32 %v237, 6.0
    %v240 = vpack.c.bf16 %v238, %v238
    %v241 = vpack.c.bf16 %v239, %v239
    %v242 = vld [vmem:[%s7] sm:$0xf]
    %v243 = vld [vmem:[%s7 + $0x4] sm:$0xf]
    %v244 = vld [vmem:[%s7 + $0x8] sm:$0xf]
    %v245 = vld [vmem:[%s7 + $0xc] sm:$0xf]
    %v246 = vld [vmem:[%s7 + $0x10] sm:$0xf]
    %v247 = vld [vmem:[%s7 + $0x14] sm:$0xf]
    %v248 = vld [vmem:[%s7 + $0x18] sm:$0xf]
    %v249 = vld [vmem:[%s7 + $0x1c] sm:$0xf]
    %v250 = vld [vmem:[%s7 + $0x20] sm:$0xf]
    %v251 = vld [vmem:[%s7 + $0x24] sm:$0xf]
    %v252 = vld [vmem:[%s7 + $0x28] sm:$0xf]
    %v253 = vld [vmem:[%s7 + $0x2c] sm:$0xf]
    %v254 = vld [vmem:[%s7 + $0x30] sm:$0xf]
    %v255 = vld [vmem:[%s7 + $0x34] sm:$0xf]
    %v256 = vld [vmem:[%s7 + $0x38] sm:$0xf]
    %v257 = vld [vmem:[%s7 + $0x3c] sm:$0xf]
    %v258 = vld [vmem:[%s7 + $0x40] sm:$0xf]
    %v259 = vld [vmem:[%s7 + $0x44] sm:$0xf]
    %v260 = vld [vmem:[%s7 + $0x48] sm:$0xf]
    %v261 = vld [vmem:[%s7 + $0x4c] sm:$0xf]
    %v262 = vld [vmem:[%s7 + $0x50] sm:$0xf]
    %v263 = vld [vmem:[%s7 + $0x54] sm:$0xf]
    %v264 = vld [vmem:[%s7 + $0x58] sm:$0xf]
    %v265 = vld [vmem:[%s7 + $0x5c] sm:$0xf]
    %v266 = vld [vmem:[%s8] sm:$0x1]
    %v268 = vlaneseq
    %v269 = vshrl.u32 %v268, 7
    %v270 = vsub.s32 0, %v269
    %v271 = vrot.slane %v266, %v270
    %v297 = vunpack.c.l.b16 %v242
    %v298 = vunpack.c.l.b16 %v243
    %v299 = vunpack.c.l.b16 %v244
    %v300 = vunpack.c.l.b16 %v245
    %v301 = vunpack.c.l.b16 %v246
    %v302 = vunpack.c.l.b16 %v247
    %v303 = vunpack.c.l.b16 %v248
    %v304 = vunpack.c.l.b16 %v249
    %v305 = vunpack.c.l.b16 %v250
    %v306 = vunpack.c.l.b16 %v251
    %v307 = vunpack.c.l.b16 %v252
    %v308 = vunpack.c.l.b16 %v253
    %v309 = vunpack.c.l.b16 %v254
    %v310 = vunpack.c.l.b16 %v255
    %v311 = vunpack.c.l.b16 %v256
    %v312 = vunpack.c.l.b16 %v257
    %v313 = vunpack.c.l.b16 %v258
    %v314 = vunpack.c.l.b16 %v259
    %v315 = vunpack.c.l.b16 %v260
    %v316 = vunpack.c.l.b16 %v261
    %v317 = vunpack.c.l.b16 %v262
    %v318 = vunpack.c.l.b16 %v263
    %v319 = vunpack.c.l.b16 %v264
    %v320 = vunpack.c.l.b16 %v265
    %v321 = vpack.c.b16 %v298, %v297
    %v322 = vpack.c.b16 %v300, %v299
    %v323 = vpack.c.b16 %v302, %v301
    %v324 = vpack.c.b16 %v304, %v303
    %v325 = vpack.c.b16 %v306, %v305
    %v326 = vpack.c.b16 %v308, %v307
    %v327 = vpack.c.b16 %v310, %v309
    %v328 = vpack.c.b16 %v312, %v311
    %v329 = vpack.c.b16 %v314, %v313
    %v330 = vpack.c.b16 %v316, %v315
    %v331 = vpack.c.b16 %v318, %v317
    %v332 = vpack.c.b16 %v320, %v319
    %vm345 = vcmask 523264
    %v347 = vsel %vm345, %v241, 0
    %349 = vmatprep.subr.bf16.mxu0 0
    %350 = vmatpush1.bf16.msra.mxu0 %v328
    %351 = vmatprep.subr.bf16.mxu0 0
    %352 = vmatpush1.bf16.msra.mxu0 %v327
    %353 = vmatprep.subr.bf16.mxu0 0
    %354 = vmatpush1.bf16.msra.mxu0 %v326
    %355 = vmatprep.subr.bf16.mxu0 0
    %356 = vmatpush1.bf16.msra.mxu0 %v325
    %357 = vmatprep.subr.bf16.mxu0 0
    %358 = vmatpush1.bf16.msra.mxu0 %v324
    %359 = vmatprep.subr.bf16.mxu0 0
    %360 = vmatpush1.bf16.msra.mxu0 %v323
    %361 = vmatprep.subr.bf16.mxu0 0
    %362 = vmatpush1.bf16.msra.mxu0 %v322
    %363 = vmatprep.subr.bf16.mxu0 0
    %364 = vmatpush1.bf16.msra.mxu0 %v321
    %365 = vmatprep.subr.bf16.mxu0 0
    %366 = vmatpush2.bf16.msra.mxu0 0
    %367 = vmatprep.subr.bf16.mxu0 0
    %368 = vmatpush2.bf16.msra.mxu0 0
    %369 = vmatprep.subr.bf16.mxu0 0
    %370 = vmatpush2.bf16.msra.mxu0 0
    %371 = vmatprep.subr.bf16.mxu0 0
    %372 = vmatpush2.bf16.msra.mxu0 0
    %373 = vmatprep.subr.bf16.mxu0 0
    %374 = vmatpush2.bf16.msra.mxu0 %v332
    %375 = vmatprep.subr.bf16.mxu0 0
    %376 = vmatpush2.bf16.msra.mxu0 %v331
    %377 = vmatprep.subr.bf16.mxu0 0
    %378 = vmatpush2.bf16.msra.mxu0 %v330
    %379 = vmatprep.subr.bf16.mxu0 0
    %380 = vmatpush2.bf16.msra.mxu0 %v329
    %381 = vmatprep.mubr.bf16.mxu0 %v347
    %382 = vmatmul.mubr.bf16.gmra.mxu0 %v240
    %v383 = vpop.f32.mrf.mxu0
    %v384 = vadd.f32 %v271, %v383
    %v385 = vpop.f32.mrf.mxu0
    %v386 = vpop.f32.mrf.mxu0
    %v387 = vpop.f32.mrf.mxu0
    %388 = vdwg.mxu0
    %v389 = vpack.c.bf16 %v384, %v384
    %vm390 = vcmask 257024
    %391 = vst.msk [vmem:[%s9] sm:$0xf] %vm390, %v389
    // Predicated region
    $region46: #{_lambda_.8} parent=1 // pred_check
      _
    $region47: #{_lambda_.8} parent=1 // pred_check_branch
      %393 = sbr.rel (0) target = $region49
    $region48: #{_lambda_.8} parent=1 // pred_region
      _
    $region49: #{_lambda_.8} parent=1 // pred_fallthru
      _
    // Predicated region
    $region50: #{_lambda_.8} parent=1 // pred_check
      _
    $region51: #{_lambda_.8} parent=1 // pred_check_branch
      %395 = sbr.rel (0) target = $region53
    $region52: #{_lambda_.8} parent=1 // pred_region
      _
    $region53: #{_lambda_.8} parent=1 // pred_fallthru
      _
    %396 = vsyncpa [#allocation3], 1
    %397 = vsyncpa [#allocation5], 1

// kernel: _lambda_.9
$region0: #{_lambda_.9}
  #allocation0 [shape = 'u32[]', space=smem, size = 0x4, offset = 0x4, fixed_abs, tag = 'smem constant byte address 0x4 - core index']
  #allocation1 [shape = 'u32[144,128]{1,0:T(1,128)}', space=vmem, size = 0x12000, scoped, tag = 'internal scratch']
  %s0 = inlined_call_operand.vmem [shape: bf16[8,32], index: 0, kind: input, shape index: {}]
  %s1 = inlined_call_operand.vmem [shape: bf16[8,32], index: 1, kind: input, shape index: {}]
  %s2 = inlined_call_operand.vmem [shape: bf16[32,192], index: 2, kind: input, shape index: {}]
  %s3 = inlined_call_operand.vmem [shape: f32[1,192], index: 3, kind: input, shape index: {}, may-alias: {3,6}]
  %s4 = inlined_call_operand.hbm [shape: f32[1,192], index: 4, kind: input, shape index: {}]
  %s5 = inlined_call_operand.hbm [shape: f32[1,192], index: 5, kind: input, shape index: {}]
  %s6 = inlined_call_operand.vmem [shape: f32[1,192], index: 6, kind: input, shape index: {}, may-alias: {3,6}]
  %s7 = inlined_call_operand.vmem [shape: bf16[192,32], index: 7, kind: input, shape index: {}]
  %s8 = inlined_call_operand.vmem [shape: f32[1,32], index: 8, kind: input, shape index: {}]
  %s9 = inlined_call_operand.vmem [shape: bf16[8,32], index: 9, kind: output, shape index: {}]
  %s10 = sld [smem:[#allocation0]]
  $region54: #{_lambda_.9} parent=0
    _
  %s12 = ssub.s32 1, %s10
  %s13 = scalar_select 0, %s12, %s10
  $region1: #{_lambda_.9} parent=0
    #allocation2 [shape = 'u8[1024]{0}', space=vmem, size = 0x400, scoped, tag = 'input window, operand 4, single buffered']
    #allocation3 [shape = 's32[1]{0}', space=sflag, size = 0x4, scoped, tag = 'scoped memory for _lambda_.9']
    #allocation4 [shape = 'u8[1024]{0}', space=vmem, size = 0x400, scoped, tag = 'input window, operand 5, single buffered']
    #allocation5 [shape = 's32[1]{0}', space=sflag, size = 0x4, scoped, tag = 'scoped memory for _lambda_.9']
    %14 = vsyncpa [#allocation3], 0
    %15 = vsyncpa [#allocation5], 0
    // Predicated region
    $region2: #{_lambda_.9} parent=1 // pred_check
      _
    $region3: #{_lambda_.9} parent=1 // pred_check_branch
      %17 = sbr.rel (0) target = $region5
    $region4: #{_lambda_.9} parent=1 // pred_region
      _
    $region5: #{_lambda_.9} parent=1 // pred_fallthru
      _
    // Predicated region
    $region6: #{_lambda_.9} parent=1 // pred_check
      _
    $region7: #{_lambda_.9} parent=1 // pred_check_branch
      %19 = sbr.rel (0) target = $region9
    $region8: #{_lambda_.9} parent=1 // pred_region
      _
    $region9: #{_lambda_.9} parent=1 // pred_fallthru
      _
    // Predicated region
    $region10: #{_lambda_.9} parent=1 // pred_check
      _
    $region11: #{_lambda_.9} parent=1 // pred_check_branch
      %21 = sbr.rel (0) target = $region13
    $region12: #{_lambda_.9} parent=1 // pred_region
      _
    $region13: #{_lambda_.9} parent=1 // pred_fallthru
      _
    // Predicated region
    $region14: #{_lambda_.9} parent=1 // pred_check
      _
    $region15: #{_lambda_.9} parent=1 // pred_check_branch
      %23 = sbr.rel (0) target = $region17
    $region16: #{_lambda_.9} parent=1 // pred_region
      _
    $region17: #{_lambda_.9} parent=1 // pred_fallthru
      _
    // Predicated region
    $region18: #{_lambda_.9} parent=1 // pred_check
      _
    $region19: #{_lambda_.9} parent=1 // pred_check_branch
      %25 = sbr.rel (0) target = $region21
    $region20: #{_lambda_.9} parent=1 // pred_region
      %s27 = ssub.s32 32, 32
      %28 = vsyncadd [#allocation3], %s27
      %s30 = sshll.u32 [#allocation2], 4
      %s31 = int_to_ptr.vmem [resolvable:$true] %s30
      %33 = dma.hbm_to_vmem [thread:$0]  %s4, 32, %s31, [#allocation3]
    $region21: #{_lambda_.9} parent=1 // pred_fallthru
      _
    // Predicated region
    $region22: #{_lambda_.9} parent=1 // pred_check
      _
    $region23: #{_lambda_.9} parent=1 // pred_check_branch
      %35 = sbr.rel (0) target = $region25
    $region24: #{_lambda_.9} parent=1 // pred_region
      %s37 = ssub.s32 32, 32
      %38 = vsyncadd [#allocation5], %s37
      %s40 = sshll.u32 [#allocation4], 4
      %s41 = int_to_ptr.vmem [resolvable:$true] %s40
      %43 = dma.hbm_to_vmem [thread:$0]  %s5, 32, %s41, [#allocation5]
    $region25: #{_lambda_.9} parent=1 // pred_fallthru
      _
    // Predicated region
    $region26: #{_lambda_.9} parent=1 // pred_check
      _
    $region27: #{_lambda_.9} parent=1 // pred_check_branch
      %45 = sbr.rel (0) target = $region29
    $region28: #{_lambda_.9} parent=1 // pred_region
      _
    $region29: #{_lambda_.9} parent=1 // pred_fallthru
      _
    // Predicated region
    $region30: #{_lambda_.9} parent=1 // pred_check
      _
    $region31: #{_lambda_.9} parent=1 // pred_check_branch
      %47 = sbr.rel (0) target = $region33
    $region32: #{_lambda_.9} parent=1 // pred_region
      _
    $region33: #{_lambda_.9} parent=1 // pred_fallthru
      _
    // Predicated region
    $region34: #{_lambda_.9} parent=1 // pred_check
      _
    $region35: #{_lambda_.9} parent=1 // pred_check_branch
      %49 = sbr.rel (0) target = $region37
    $region36: #{_lambda_.9} parent=1 // pred_region
      _
    $region37: #{_lambda_.9} parent=1 // pred_fallthru
      _
    // Predicated region
    $region38: #{_lambda_.9} parent=1 // pred_check
      _
    $region39: #{_lambda_.9} parent=1 // pred_check_branch
      %51 = sbr.rel (0) target = $region41
    $region40: #{_lambda_.9} parent=1 // pred_region
      %52 = dma.done [#allocation3], 32
    $region41: #{_lambda_.9} parent=1 // pred_fallthru
      _
    // Predicated region
    $region42: #{_lambda_.9} parent=1 // pred_check
      _
    $region43: #{_lambda_.9} parent=1 // pred_check_branch
      %54 = sbr.rel (0) target = $region45
    $region44: #{_lambda_.9} parent=1 // pred_region
      %55 = dma.done [#allocation5], 32
    $region45: #{_lambda_.9} parent=1 // pred_fallthru
      _
    %v57 = vld [vmem:[%s0] sm:$0xf]
    %v58 = vld [vmem:[%s2] sm:$0xff]
    %v59 = vld [vmem:[%s2 + $0x8] sm:$0xff]
    %v60 = vld [vmem:[%s2 + $0x10] sm:$0xff]
    %v61 = vld [vmem:[%s2 + $0x18] sm:$0xff]
    %v62 = vld [vmem:[%s3] sm:$0x3]
    %v64 = vlaneseq
    %v65 = vshrl.u32 %v64, 7
    %v66 = vsub.s32 0, %v65
    %v67 = vrot.slane %v62, %v66
    %v68 = vlaneseq
    %v69 = vshrl.u32 %v68, 7
    %v70 = vsub.s32 1, %v69
    %v71 = vrot.slane %v62, %v70
    %v78 = vunpack.c.l.b16 %v58
    %v79 = vunpack.c.h.b16 %v58
    %v80 = vunpack.c.l.b16 %v59
    %v81 = vunpack.c.h.b16 %v59
    %v82 = vunpack.c.l.b16 %v60
    %v83 = vunpack.c.h.b16 %v60
    %v84 = vunpack.c.l.b16 %v61
    %v85 = vunpack.c.h.b16 %v61
    %v86 = vpack.c.b16 %v80, %v78
    %v87 = vpack.c.b16 %v81, %v79
    %v88 = vpack.c.b16 %v84, %v82
    %v89 = vpack.c.b16 %v85, %v83
    %vm94 = vcmask 261120
    %v96 = vsel %vm94, %v57, 0
    %98 = vmatprep.subr.bf16.mxu0 0
    %99 = vmatpush1.bf16.msra.mxu0 0
    %100 = vmatprep.subr.bf16.mxu0 0
    %101 = vmatpush1.bf16.msra.mxu0 0
    %102 = vmatprep.subr.bf16.mxu0 0
    %103 = vmatpush1.bf16.msra.mxu0 0
    %104 = vmatprep.subr.bf16.mxu0 0
    %105 = vmatpush1.bf16.msra.mxu0 0
    %106 = vmatprep.subr.bf16.mxu0 0
    %107 = vmatpush1.bf16.msra.mxu0 0
    %108 = vmatprep.subr.bf16.mxu0 0
    %109 = vmatpush1.bf16.msra.mxu0 0
    %110 = vmatprep.subr.bf16.mxu0 %v89
    %111 = vmatpush1.bf16.msra.mxu0 %v88
    %112 = vmatprep.subr.bf16.mxu0 %v87
    %113 = vmatpush1.bf16.msra.mxu0 %v86
    %114 = vmatprep.subr.bf16.mxu0 0
    %115 = vmatpush2.bf16.msra.mxu0 0
    %116 = vmatprep.subr.bf16.mxu0 0
    %117 = vmatpush2.bf16.msra.mxu0 0
    %118 = vmatprep.subr.bf16.mxu0 0
    %119 = vmatpush2.bf16.msra.mxu0 0
    %120 = vmatprep.subr.bf16.mxu0 0
    %121 = vmatpush2.bf16.msra.mxu0 0
    %122 = vmatprep.subr.bf16.mxu0 0
    %123 = vmatpush2.bf16.msra.mxu0 0
    %124 = vmatprep.subr.bf16.mxu0 0
    %125 = vmatpush2.bf16.msra.mxu0 0
    %126 = vmatprep.subr.bf16.mxu0 0
    %127 = vmatpush2.bf16.msra.mxu0 0
    %128 = vmatprep.subr.bf16.mxu0 0
    %129 = vmatpush2.bf16.msra.mxu0 0
    %130 = vmatprep.mubr.bf16.mxu0 0
    %131 = vmatmul.mubr.bf16.gmra.mxu0 %v96
    %v132 = vpop.f32.mrf.mxu0
    %v133 = vadd.f32 %v67, %v132
    %v134 = vpop.f32.mrf.mxu0
    %v135 = vadd.f32 %v71, %v134
    %v136 = vpop.f32.mrf.mxu0
    %v137 = vpop.f32.mrf.mxu0
    %138 = vdwg.mxu0
    %v139 = vmax.f32 %v133, 0.0
    %v140 = vmax.f32 %v135, 0.0
    %v141 = vmin.f32 %v139, 6.0
    %v142 = vmin.f32 %v140, 6.0
    %v143 = vld [vmem:[%s1] sm:$0xf]
    %v145 = vsel %vm94, %v143, 0
    %147 = vmatprep.subr.bf16.mxu0 0
    %148 = vmatpush1.bf16.msra.mxu0 0
    %149 = vmatprep.subr.bf16.mxu0 0
    %150 = vmatpush1.bf16.msra.mxu0 0
    %151 = vmatprep.subr.bf16.mxu0 0
    %152 = vmatpush1.bf16.msra.mxu0 0
    %153 = vmatprep.subr.bf16.mxu0 0
    %154 = vmatpush1.bf16.msra.mxu0 0
    %155 = vmatprep.subr.bf16.mxu0 0
    %156 = vmatpush1.bf16.msra.mxu0 0
    %157 = vmatprep.subr.bf16.mxu0 0
    %158 = vmatpush1.bf16.msra.mxu0 0
    %159 = vmatprep.subr.bf16.mxu0 %v89
    %160 = vmatpush1.bf16.msra.mxu0 %v88
    %161 = vmatprep.subr.bf16.mxu0 %v87
    %162 = vmatpush1.bf16.msra.mxu0 %v86
    %163 = vmatprep.subr.bf16.mxu0 0
    %164 = vmatpush2.bf16.msra.mxu0 0
    %165 = vmatprep.subr.bf16.mxu0 0
    %166 = vmatpush2.bf16.msra.mxu0 0
    %167 = vmatprep.subr.bf16.mxu0 0
    %168 = vmatpush2.bf16.msra.mxu0 0
    %169 = vmatprep.subr.bf16.mxu0 0
    %170 = vmatpush2.bf16.msra.mxu0 0
    %171 = vmatprep.subr.bf16.mxu0 0
    %172 = vmatpush2.bf16.msra.mxu0 0
    %173 = vmatprep.subr.bf16.mxu0 0
    %174 = vmatpush2.bf16.msra.mxu0 0
    %175 = vmatprep.subr.bf16.mxu0 0
    %176 = vmatpush2.bf16.msra.mxu0 0
    %177 = vmatprep.subr.bf16.mxu0 0
    %178 = vmatpush2.bf16.msra.mxu0 0
    %179 = vmatprep.mubr.bf16.mxu0 0
    %180 = vmatmul.mubr.bf16.gmra.mxu0 %v145
    %v181 = vpop.f32.mrf.mxu0
    %v182 = vadd.f32 %v67, %v181
    %v183 = vpop.f32.mrf.mxu0
    %v184 = vadd.f32 %v71, %v183
    %v185 = vpop.f32.mrf.mxu0
    %v186 = vpop.f32.mrf.mxu0
    %187 = vdwg.mxu0
    %v188 = vmax.f32 %v182, 0.0
    %v189 = vmax.f32 %v184, 0.0
    %v190 = vmin.f32 %v188, 6.0
    %v191 = vmin.f32 %v189, 6.0
    %v192 = vld [vmem:[#allocation2] sm:$0x3]
    %v194 = vlaneseq
    %v195 = vshrl.u32 %v194, 7
    %v196 = vsub.s32 0, %v195
    %v197 = vrot.slane %v192, %v196
    %v198 = vlaneseq
    %v199 = vshrl.u32 %v198, 7
    %v200 = vsub.s32 1, %v199
    %v201 = vrot.slane %v192, %v200
    %v204 = vmul.f32 %v141, %v197
    %v205 = vmul.f32 %v142, %v201
    %v206 = vld [vmem:[#allocation4] sm:$0x3]
    %v208 = vlaneseq
    %v209 = vshrl.u32 %v208, 7
    %v210 = vsub.s32 0, %v209
    %v211 = vrot.slane %v206, %v210
    %v212 = vlaneseq
    %v213 = vshrl.u32 %v212, 7
    %v214 = vsub.s32 1, %v213
    %v215 = vrot.slane %v206, %v214
    %v218 = vmul.f32 %v190, %v211
    %v219 = vmul.f32 %v191, %v215
    %v220 = vadd.f32 %v204, %v218
    %v221 = vadd.f32 %v205, %v219
    %v222 = vld [vmem:[%s6] sm:$0x3]
    %v224 = vlaneseq
    %v225 = vshrl.u32 %v224, 7
    %v226 = vsub.s32 0, %v225
    %v227 = vrot.slane %v222, %v226
    %v228 = vlaneseq
    %v229 = vshrl.u32 %v228, 7
    %v230 = vsub.s32 1, %v229
    %v231 = vrot.slane %v222, %v230
    %v234 = vadd.f32 %v220, %v227
    %v235 = vadd.f32 %v221, %v231
    %v236 = vmax.f32 %v234, 0.0
    %v237 = vmax.f32 %v235, 0.0
    %v238 = vmin.f32 %v236, 6.0
    %v239 = vmin.f32 %v237, 6.0
    %v240 = vpack.c.bf16 %v238, %v238
    %v241 = vpack.c.bf16 %v239, %v239
    %v242 = vld [vmem:[%s7] sm:$0xf]
    %v243 = vld [vmem:[%s7 + $0x4] sm:$0xf]
    %v244 = vld [vmem:[%s7 + $0x8] sm:$0xf]
    %v245 = vld [vmem:[%s7 + $0xc] sm:$0xf]
    %v246 = vld [vmem:[%s7 + $0x10] sm:$0xf]
    %v247 = vld [vmem:[%s7 + $0x14] sm:$0xf]
    %v248 = vld [vmem:[%s7 + $0x18] sm:$0xf]
    %v249 = vld [vmem:[%s7 + $0x1c] sm:$0xf]
    %v250 = vld [vmem:[%s7 + $0x20] sm:$0xf]
    %v251 = vld [vmem:[%s7 + $0x24] sm:$0xf]
    %v252 = vld [vmem:[%s7 + $0x28] sm:$0xf]
    %v253 = vld [vmem:[%s7 + $0x2c] sm:$0xf]
    %v254 = vld [vmem:[%s7 + $0x30] sm:$0xf]
    %v255 = vld [vmem:[%s7 + $0x34] sm:$0xf]
    %v256 = vld [vmem:[%s7 + $0x38] sm:$0xf]
    %v257 = vld [vmem:[%s7 + $0x3c] sm:$0xf]
    %v258 = vld [vmem:[%s7 + $0x40] sm:$0xf]
    %v259 = vld [vmem:[%s7 + $0x44] sm:$0xf]
    %v260 = vld [vmem:[%s7 + $0x48] sm:$0xf]
    %v261 = vld [vmem:[%s7 + $0x4c] sm:$0xf]
    %v262 = vld [vmem:[%s7 + $0x50] sm:$0xf]
    %v263 = vld [vmem:[%s7 + $0x54] sm:$0xf]
    %v264 = vld [vmem:[%s7 + $0x58] sm:$0xf]
    %v265 = vld [vmem:[%s7 + $0x5c] sm:$0xf]
    %v266 = vld [vmem:[%s8] sm:$0x1]
    %v268 = vlaneseq
    %v269 = vshrl.u32 %v268, 7
    %v270 = vsub.s32 0, %v269
    %v271 = vrot.slane %v266, %v270
    %v297 = vunpack.c.l.b16 %v242
    %v298 = vunpack.c.l.b16 %v243
    %v299 = vunpack.c.l.b16 %v244
    %v300 = vunpack.c.l.b16 %v245
    %v301 = vunpack.c.l.b16 %v246
    %v302 = vunpack.c.l.b16 %v247
    %v303 = vunpack.c.l.b16 %v248
    %v304 = vunpack.c.l.b16 %v249
    %v305 = vunpack.c.l.b16 %v250
    %v306 = vunpack.c.l.b16 %v251
    %v307 = vunpack.c.l.b16 %v252
    %v308 = vunpack.c.l.b16 %v253
    %v309 = vunpack.c.l.b16 %v254
    %v310 = vunpack.c.l.b16 %v255
    %v311 = vunpack.c.l.b16 %v256
    %v312 = vunpack.c.l.b16 %v257
    %v313 = vunpack.c.l.b16 %v258
    %v314 = vunpack.c.l.b16 %v259
    %v315 = vunpack.c.l.b16 %v260
    %v316 = vunpack.c.l.b16 %v261
    %v317 = vunpack.c.l.b16 %v262
    %v318 = vunpack.c.l.b16 %v263
    %v319 = vunpack.c.l.b16 %v264
    %v320 = vunpack.c.l.b16 %v265
    %v321 = vpack.c.b16 %v298, %v297
    %v322 = vpack.c.b16 %v300, %v299
    %v323 = vpack.c.b16 %v302, %v301
    %v324 = vpack.c.b16 %v304, %v303
    %v325 = vpack.c.b16 %v306, %v305
    %v326 = vpack.c.b16 %v308, %v307
    %v327 = vpack.c.b16 %v310, %v309
    %v328 = vpack.c.b16 %v312, %v311
    %v329 = vpack.c.b16 %v314, %v313
    %v330 = vpack.c.b16 %v316, %v315
    %v331 = vpack.c.b16 %v318, %v317
    %v332 = vpack.c.b16 %v320, %v319
    %vm345 = vcmask 523264
    %v347 = vsel %vm345, %v241, 0
    %349 = vmatprep.subr.bf16.mxu0 0
    %350 = vmatpush1.bf16.msra.mxu0 %v328
    %351 = vmatprep.subr.bf16.mxu0 0
    %352 = vmatpush1.bf16.msra.mxu0 %v327
    %353 = vmatprep.subr.bf16.mxu0 0
    %354 = vmatpush1.bf16.msra.mxu0 %v326
    %355 = vmatprep.subr.bf16.mxu0 0
    %356 = vmatpush1.bf16.msra.mxu0 %v325
    %357 = vmatprep.subr.bf16.mxu0 0
    %358 = vmatpush1.bf16.msra.mxu0 %v324
    %359 = vmatprep.subr.bf16.mxu0 0
    %360 = vmatpush1.bf16.msra.mxu0 %v323
    %361 = vmatprep.subr.bf16.mxu0 0
    %362 = vmatpush1.bf16.msra.mxu0 %v322
    %363 = vmatprep.subr.bf16.mxu0 0
    %364 = vmatpush1.bf16.msra.mxu0 %v321
    %365 = vmatprep.subr.bf16.mxu0 0
    %366 = vmatpush2.bf16.msra.mxu0 0
    %367 = vmatprep.subr.bf16.mxu0 0
    %368 = vmatpush2.bf16.msra.mxu0 0
    %369 = vmatprep.subr.bf16.mxu0 0
    %370 = vmatpush2.bf16.msra.mxu0 0
    %371 = vmatprep.subr.bf16.mxu0 0
    %372 = vmatpush2.bf16.msra.mxu0 0
    %373 = vmatprep.subr.bf16.mxu0 0
    %374 = vmatpush2.bf16.msra.mxu0 %v332
    %375 = vmatprep.subr.bf16.mxu0 0
    %376 = vmatpush2.bf16.msra.mxu0 %v331
    %377 = vmatprep.subr.bf16.mxu0 0
    %378 = vmatpush2.bf16.msra.mxu0 %v330
    %379 = vmatprep.subr.bf16.mxu0 0
    %380 = vmatpush2.bf16.msra.mxu0 %v329
    %381 = vmatprep.mubr.bf16.mxu0 %v347
    %382 = vmatmul.mubr.bf16.gmra.mxu0 %v240
    %v383 = vpop.f32.mrf.mxu0
    %v384 = vadd.f32 %v271, %v383
    %v385 = vpop.f32.mrf.mxu0
    %v386 = vpop.f32.mrf.mxu0
    %v387 = vpop.f32.mrf.mxu0
    %388 = vdwg.mxu0
    %v389 = vunpack.c.l.bf16 %v57
    %v390 = vadd.f32 %v384, %v389
    %v391 = vpack.c.bf16 %v390, %v390
    %vm392 = vcmask 257024
    %393 = vst.msk [vmem:[%s9] sm:$0xf] %vm392, %v391
    // Predicated region
    $region46: #{_lambda_.9} parent=1 // pred_check
      _
    $region47: #{_lambda_.9} parent=1 // pred_check_branch
      %395 = sbr.rel (0) target = $region49
    $region48: #{_lambda_.9} parent=1 // pred_region
      _
    $region49: #{_lambda_.9} parent=1 // pred_fallthru
      _
    // Predicated region
    $region50: #{_lambda_.9} parent=1 // pred_check
      _
    $region51: #{_lambda_.9} parent=1 // pred_check_branch
      %397 = sbr.rel (0) target = $region53
    $region52: #{_lambda_.9} parent=1 // pred_region
      _
    $region53: #{_lambda_.9} parent=1 // pred_fallthru
      _
    %398 = vsyncpa [#allocation3], 1
    %399 = vsyncpa [#allocation5], 1

// kernel: _lambda_.10
$region0: #{_lambda_.10}
  #allocation0 [shape = 'u32[]', space=smem, size = 0x4, offset = 0x4, fixed_abs, tag = 'smem constant byte address 0x4 - core index']
  #allocation1 [shape = 'u32[144,128]{1,0:T(1,128)}', space=vmem, size = 0x12000, scoped, tag = 'internal scratch']
  %s0 = inlined_call_operand.vmem [shape: bf16[4,32], index: 0, kind: input, shape index: {}]
  %s1 = inlined_call_operand.vmem [shape: bf16[4,32], index: 1, kind: input, shape index: {}]
  %s2 = inlined_call_operand.vmem [shape: bf16[32,192], index: 2, kind: input, shape index: {}]
  %s3 = inlined_call_operand.vmem [shape: f32[1,192], index: 3, kind: input, shape index: {}, may-alias: {3,6}]
  %s4 = inlined_call_operand.hbm [shape: f32[1,192], index: 4, kind: input, shape index: {}]
  %s5 = inlined_call_operand.hbm [shape: f32[1,192], index: 5, kind: input, shape index: {}]
  %s6 = inlined_call_operand.vmem [shape: f32[1,192], index: 6, kind: input, shape index: {}, may-alias: {3,6}]
  %s7 = inlined_call_operand.vmem [shape: bf16[192,64], index: 7, kind: input, shape index: {}]
  %s8 = inlined_call_operand.vmem [shape: f32[1,64], index: 8, kind: input, shape index: {}]
  %s9 = inlined_call_operand.vmem [shape: bf16[4,64], index: 9, kind: output, shape index: {}]
  %s10 = sld [smem:[#allocation0]]
  $region54: #{_lambda_.10} parent=0
    _
  %s12 = ssub.s32 1, %s10
  %s13 = scalar_select 0, %s12, %s10
  $region1: #{_lambda_.10} parent=0
    #allocation2 [shape = 'u8[1024]{0}', space=vmem, size = 0x400, scoped, tag = 'input window, operand 4, single buffered']
    #allocation3 [shape = 's32[1]{0}', space=sflag, size = 0x4, scoped, tag = 'scoped memory for _lambda_.10']
    #allocation4 [shape = 'u8[1024]{0}', space=vmem, size = 0x400, scoped, tag = 'input window, operand 5, single buffered']
    #allocation5 [shape = 's32[1]{0}', space=sflag, size = 0x4, scoped, tag = 'scoped memory for _lambda_.10']
    %14 = vsyncpa [#allocation3], 0
    %15 = vsyncpa [#allocation5], 0
    // Predicated region
    $region2: #{_lambda_.10} parent=1 // pred_check
      _
    $region3: #{_lambda_.10} parent=1 // pred_check_branch
      %17 = sbr.rel (0) target = $region5
    $region4: #{_lambda_.10} parent=1 // pred_region
      _
    $region5: #{_lambda_.10} parent=1 // pred_fallthru
      _
    // Predicated region
    $region6: #{_lambda_.10} parent=1 // pred_check
      _
    $region7: #{_lambda_.10} parent=1 // pred_check_branch
      %19 = sbr.rel (0) target = $region9
    $region8: #{_lambda_.10} parent=1 // pred_region
      _
    $region9: #{_lambda_.10} parent=1 // pred_fallthru
      _
    // Predicated region
    $region10: #{_lambda_.10} parent=1 // pred_check
      _
    $region11: #{_lambda_.10} parent=1 // pred_check_branch
      %21 = sbr.rel (0) target = $region13
    $region12: #{_lambda_.10} parent=1 // pred_region
      _
    $region13: #{_lambda_.10} parent=1 // pred_fallthru
      _
    // Predicated region
    $region14: #{_lambda_.10} parent=1 // pred_check
      _
    $region15: #{_lambda_.10} parent=1 // pred_check_branch
      %23 = sbr.rel (0) target = $region17
    $region16: #{_lambda_.10} parent=1 // pred_region
      _
    $region17: #{_lambda_.10} parent=1 // pred_fallthru
      _
    // Predicated region
    $region18: #{_lambda_.10} parent=1 // pred_check
      _
    $region19: #{_lambda_.10} parent=1 // pred_check_branch
      %25 = sbr.rel (0) target = $region21
    $region20: #{_lambda_.10} parent=1 // pred_region
      %s27 = ssub.s32 32, 32
      %28 = vsyncadd [#allocation3], %s27
      %s30 = sshll.u32 [#allocation2], 4
      %s31 = int_to_ptr.vmem [resolvable:$true] %s30
      %33 = dma.hbm_to_vmem [thread:$0]  %s4, 32, %s31, [#allocation3]
    $region21: #{_lambda_.10} parent=1 // pred_fallthru
      _
    // Predicated region
    $region22: #{_lambda_.10} parent=1 // pred_check
      _
    $region23: #{_lambda_.10} parent=1 // pred_check_branch
      %35 = sbr.rel (0) target = $region25
    $region24: #{_lambda_.10} parent=1 // pred_region
      %s37 = ssub.s32 32, 32
      %38 = vsyncadd [#allocation5], %s37
      %s40 = sshll.u32 [#allocation4], 4
      %s41 = int_to_ptr.vmem [resolvable:$true] %s40
      %43 = dma.hbm_to_vmem [thread:$0]  %s5, 32, %s41, [#allocation5]
    $region25: #{_lambda_.10} parent=1 // pred_fallthru
      _
    // Predicated region
    $region26: #{_lambda_.10} parent=1 // pred_check
      _
    $region27: #{_lambda_.10} parent=1 // pred_check_branch
      %45 = sbr.rel (0) target = $region29
    $region28: #{_lambda_.10} parent=1 // pred_region
      _
    $region29: #{_lambda_.10} parent=1 // pred_fallthru
      _
    // Predicated region
    $region30: #{_lambda_.10} parent=1 // pred_check
      _
    $region31: #{_lambda_.10} parent=1 // pred_check_branch
      %47 = sbr.rel (0) target = $region33
    $region32: #{_lambda_.10} parent=1 // pred_region
      _
    $region33: #{_lambda_.10} parent=1 // pred_fallthru
      _
    // Predicated region
    $region34: #{_lambda_.10} parent=1 // pred_check
      _
    $region35: #{_lambda_.10} parent=1 // pred_check_branch
      %49 = sbr.rel (0) target = $region37
    $region36: #{_lambda_.10} parent=1 // pred_region
      _
    $region37: #{_lambda_.10} parent=1 // pred_fallthru
      _
    // Predicated region
    $region38: #{_lambda_.10} parent=1 // pred_check
      _
    $region39: #{_lambda_.10} parent=1 // pred_check_branch
      %51 = sbr.rel (0) target = $region41
    $region40: #{_lambda_.10} parent=1 // pred_region
      %52 = dma.done [#allocation3], 32
    $region41: #{_lambda_.10} parent=1 // pred_fallthru
      _
    // Predicated region
    $region42: #{_lambda_.10} parent=1 // pred_check
      _
    $region43: #{_lambda_.10} parent=1 // pred_check_branch
      %54 = sbr.rel (0) target = $region45
    $region44: #{_lambda_.10} parent=1 // pred_region
      %55 = dma.done [#allocation5], 32
    $region45: #{_lambda_.10} parent=1 // pred_fallthru
      _
    %v57 = vld [vmem:[%s0] sm:$0x3]
    %v58 = vld [vmem:[%s2] sm:$0xff]
    %v59 = vld [vmem:[%s2 + $0x8] sm:$0xff]
    %v60 = vld [vmem:[%s2 + $0x10] sm:$0xff]
    %v61 = vld [vmem:[%s2 + $0x18] sm:$0xff]
    %v62 = vld [vmem:[%s3] sm:$0x3]
    %v64 = vlaneseq
    %v65 = vshrl.u32 %v64, 7
    %v66 = vsub.s32 0, %v65
    %v67 = vrot.slane %v62, %v66
    %v68 = vlaneseq
    %v69 = vshrl.u32 %v68, 7
    %v70 = vsub.s32 1, %v69
    %v71 = vrot.slane %v62, %v70
    %v78 = vunpack.c.l.b16 %v58
    %v79 = vunpack.c.h.b16 %v58
    %v80 = vunpack.c.l.b16 %v59
    %v81 = vunpack.c.h.b16 %v59
    %v82 = vunpack.c.l.b16 %v60
    %v83 = vunpack.c.h.b16 %v60
    %v84 = vunpack.c.l.b16 %v61
    %v85 = vunpack.c.h.b16 %v61
    %v86 = vpack.c.b16 %v80, %v78
    %v87 = vpack.c.b16 %v81, %v79
    %v88 = vpack.c.b16 %v84, %v82
    %v89 = vpack.c.b16 %v85, %v83
    %vm94 = vcmask 261120
    %v96 = vsel %vm94, %v57, 0
    %98 = vmatprep.subr.bf16.mxu0 0
    %99 = vmatpush1.bf16.msra.mxu0 0
    %100 = vmatprep.subr.bf16.mxu0 0
    %101 = vmatpush1.bf16.msra.mxu0 0
    %102 = vmatprep.subr.bf16.mxu0 0
    %103 = vmatpush1.bf16.msra.mxu0 0
    %104 = vmatprep.subr.bf16.mxu0 0
    %105 = vmatpush1.bf16.msra.mxu0 0
    %106 = vmatprep.subr.bf16.mxu0 0
    %107 = vmatpush1.bf16.msra.mxu0 0
    %108 = vmatprep.subr.bf16.mxu0 0
    %109 = vmatpush1.bf16.msra.mxu0 0
    %110 = vmatprep.subr.bf16.mxu0 %v89
    %111 = vmatpush1.bf16.msra.mxu0 %v88
    %112 = vmatprep.subr.bf16.mxu0 %v87
    %113 = vmatpush1.bf16.msra.mxu0 %v86
    %114 = vmatprep.subr.bf16.mxu0 0
    %115 = vmatpush2.bf16.msra.mxu0 0
    %116 = vmatprep.subr.bf16.mxu0 0
    %117 = vmatpush2.bf16.msra.mxu0 0
    %118 = vmatprep.subr.bf16.mxu0 0
    %119 = vmatpush2.bf16.msra.mxu0 0
    %120 = vmatprep.subr.bf16.mxu0 0
    %121 = vmatpush2.bf16.msra.mxu0 0
    %122 = vmatprep.subr.bf16.mxu0 0
    %123 = vmatpush2.bf16.msra.mxu0 0
    %124 = vmatprep.subr.bf16.mxu0 0
    %125 = vmatpush2.bf16.msra.mxu0 0
    %126 = vmatprep.subr.bf16.mxu0 0
    %127 = vmatpush2.bf16.msra.mxu0 0
    %128 = vmatprep.subr.bf16.mxu0 0
    %129 = vmatpush2.bf16.msra.mxu0 0
    %130 = vmatprep.mubr.bf16.mxu0 0
    %131 = vmatmul.mubr.bf16.gmra.mxu0 %v96
    %v132 = vpop.f32.mrf.mxu0
    %v133 = vadd.f32 %v67, %v132
    %v134 = vpop.f32.mrf.mxu0
    %v135 = vadd.f32 %v71, %v134
    %v136 = vpop.f32.mrf.mxu0
    %v137 = vpop.f32.mrf.mxu0
    %138 = vdwg.mxu0
    %v139 = vmax.f32 %v133, 0.0
    %v140 = vmax.f32 %v135, 0.0
    %v141 = vmin.f32 %v139, 6.0
    %v142 = vmin.f32 %v140, 6.0
    %v143 = vld [vmem:[%s1] sm:$0x3]
    %v145 = vsel %vm94, %v143, 0
    %147 = vmatprep.subr.bf16.mxu0 0
    %148 = vmatpush1.bf16.msra.mxu0 0
    %149 = vmatprep.subr.bf16.mxu0 0
    %150 = vmatpush1.bf16.msra.mxu0 0
    %151 = vmatprep.subr.bf16.mxu0 0
    %152 = vmatpush1.bf16.msra.mxu0 0
    %153 = vmatprep.subr.bf16.mxu0 0
    %154 = vmatpush1.bf16.msra.mxu0 0
    %155 = vmatprep.subr.bf16.mxu0 0
    %156 = vmatpush1.bf16.msra.mxu0 0
    %157 = vmatprep.subr.bf16.mxu0 0
    %158 = vmatpush1.bf16.msra.mxu0 0
    %159 = vmatprep.subr.bf16.mxu0 %v89
    %160 = vmatpush1.bf16.msra.mxu0 %v88
    %161 = vmatprep.subr.bf16.mxu0 %v87
    %162 = vmatpush1.bf16.msra.mxu0 %v86
    %163 = vmatprep.subr.bf16.mxu0 0
    %164 = vmatpush2.bf16.msra.mxu0 0
    %165 = vmatprep.subr.bf16.mxu0 0
    %166 = vmatpush2.bf16.msra.mxu0 0
    %167 = vmatprep.subr.bf16.mxu0 0
    %168 = vmatpush2.bf16.msra.mxu0 0
    %169 = vmatprep.subr.bf16.mxu0 0
    %170 = vmatpush2.bf16.msra.mxu0 0
    %171 = vmatprep.subr.bf16.mxu0 0
    %172 = vmatpush2.bf16.msra.mxu0 0
    %173 = vmatprep.subr.bf16.mxu0 0
    %174 = vmatpush2.bf16.msra.mxu0 0
    %175 = vmatprep.subr.bf16.mxu0 0
    %176 = vmatpush2.bf16.msra.mxu0 0
    %177 = vmatprep.subr.bf16.mxu0 0
    %178 = vmatpush2.bf16.msra.mxu0 0
    %179 = vmatprep.mubr.bf16.mxu0 0
    %180 = vmatmul.mubr.bf16.gmra.mxu0 %v145
    %v181 = vpop.f32.mrf.mxu0
    %v182 = vadd.f32 %v67, %v181
    %v183 = vpop.f32.mrf.mxu0
    %v184 = vadd.f32 %v71, %v183
    %v185 = vpop.f32.mrf.mxu0
    %v186 = vpop.f32.mrf.mxu0
    %187 = vdwg.mxu0
    %v188 = vmax.f32 %v182, 0.0
    %v189 = vmax.f32 %v184, 0.0
    %v190 = vmin.f32 %v188, 6.0
    %v191 = vmin.f32 %v189, 6.0
    %v192 = vld [vmem:[#allocation2] sm:$0x3]
    %v194 = vlaneseq
    %v195 = vshrl.u32 %v194, 7
    %v196 = vsub.s32 0, %v195
    %v197 = vrot.slane %v192, %v196
    %v198 = vlaneseq
    %v199 = vshrl.u32 %v198, 7
    %v200 = vsub.s32 1, %v199
    %v201 = vrot.slane %v192, %v200
    %v204 = vmul.f32 %v141, %v197
    %v205 = vmul.f32 %v142, %v201
    %v206 = vld [vmem:[#allocation4] sm:$0x3]
    %v208 = vlaneseq
    %v209 = vshrl.u32 %v208, 7
    %v210 = vsub.s32 0, %v209
    %v211 = vrot.slane %v206, %v210
    %v212 = vlaneseq
    %v213 = vshrl.u32 %v212, 7
    %v214 = vsub.s32 1, %v213
    %v215 = vrot.slane %v206, %v214
    %v218 = vmul.f32 %v190, %v211
    %v219 = vmul.f32 %v191, %v215
    %v220 = vadd.f32 %v204, %v218
    %v221 = vadd.f32 %v205, %v219
    %v222 = vld [vmem:[%s6] sm:$0x3]
    %v224 = vlaneseq
    %v225 = vshrl.u32 %v224, 7
    %v226 = vsub.s32 0, %v225
    %v227 = vrot.slane %v222, %v226
    %v228 = vlaneseq
    %v229 = vshrl.u32 %v228, 7
    %v230 = vsub.s32 1, %v229
    %v231 = vrot.slane %v222, %v230
    %v234 = vadd.f32 %v220, %v227
    %v235 = vadd.f32 %v221, %v231
    %v236 = vmax.f32 %v234, 0.0
    %v237 = vmax.f32 %v235, 0.0
    %v238 = vmin.f32 %v236, 6.0
    %v239 = vmin.f32 %v237, 6.0
    %v240 = vpack.c.bf16 %v238, %v238
    %v241 = vpack.c.bf16 %v239, %v239
    %v242 = vld [vmem:[%s7] sm:$0xf]
    %v243 = vld [vmem:[%s7 + $0x4] sm:$0xf]
    %v244 = vld [vmem:[%s7 + $0x8] sm:$0xf]
    %v245 = vld [vmem:[%s7 + $0xc] sm:$0xf]
    %v246 = vld [vmem:[%s7 + $0x10] sm:$0xf]
    %v247 = vld [vmem:[%s7 + $0x14] sm:$0xf]
    %v248 = vld [vmem:[%s7 + $0x18] sm:$0xf]
    %v249 = vld [vmem:[%s7 + $0x1c] sm:$0xf]
    %v250 = vld [vmem:[%s7 + $0x20] sm:$0xf]
    %v251 = vld [vmem:[%s7 + $0x24] sm:$0xf]
    %v252 = vld [vmem:[%s7 + $0x28] sm:$0xf]
    %v253 = vld [vmem:[%s7 + $0x2c] sm:$0xf]
    %v254 = vld [vmem:[%s7 + $0x30] sm:$0xf]
    %v255 = vld [vmem:[%s7 + $0x34] sm:$0xf]
    %v256 = vld [vmem:[%s7 + $0x38] sm:$0xf]
    %v257 = vld [vmem:[%s7 + $0x3c] sm:$0xf]
    %v258 = vld [vmem:[%s7 + $0x40] sm:$0xf]
    %v259 = vld [vmem:[%s7 + $0x44] sm:$0xf]
    %v260 = vld [vmem:[%s7 + $0x48] sm:$0xf]
    %v261 = vld [vmem:[%s7 + $0x4c] sm:$0xf]
    %v262 = vld [vmem:[%s7 + $0x50] sm:$0xf]
    %v263 = vld [vmem:[%s7 + $0x54] sm:$0xf]
    %v264 = vld [vmem:[%s7 + $0x58] sm:$0xf]
    %v265 = vld [vmem:[%s7 + $0x5c] sm:$0xf]
    %v266 = vld [vmem:[%s8] sm:$0x1]
    %v268 = vlaneseq
    %v269 = vshrl.u32 %v268, 7
    %v270 = vsub.s32 0, %v269
    %v271 = vrot.slane %v266, %v270
    %v297 = vunpack.c.l.b16 %v242
    %v298 = vunpack.c.l.b16 %v243
    %v299 = vunpack.c.l.b16 %v244
    %v300 = vunpack.c.l.b16 %v245
    %v301 = vunpack.c.l.b16 %v246
    %v302 = vunpack.c.l.b16 %v247
    %v303 = vunpack.c.l.b16 %v248
    %v304 = vunpack.c.l.b16 %v249
    %v305 = vunpack.c.l.b16 %v250
    %v306 = vunpack.c.l.b16 %v251
    %v307 = vunpack.c.l.b16 %v252
    %v308 = vunpack.c.l.b16 %v253
    %v309 = vunpack.c.l.b16 %v254
    %v310 = vunpack.c.l.b16 %v255
    %v311 = vunpack.c.l.b16 %v256
    %v312 = vunpack.c.l.b16 %v257
    %v313 = vunpack.c.l.b16 %v258
    %v314 = vunpack.c.l.b16 %v259
    %v315 = vunpack.c.l.b16 %v260
    %v316 = vunpack.c.l.b16 %v261
    %v317 = vunpack.c.l.b16 %v262
    %v318 = vunpack.c.l.b16 %v263
    %v319 = vunpack.c.l.b16 %v264
    %v320 = vunpack.c.l.b16 %v265
    %v321 = vpack.c.b16 %v298, %v297
    %v322 = vpack.c.b16 %v300, %v299
    %v323 = vpack.c.b16 %v302, %v301
    %v324 = vpack.c.b16 %v304, %v303
    %v325 = vpack.c.b16 %v306, %v305
    %v326 = vpack.c.b16 %v308, %v307
    %v327 = vpack.c.b16 %v310, %v309
    %v328 = vpack.c.b16 %v312, %v311
    %v329 = vpack.c.b16 %v314, %v313
    %v330 = vpack.c.b16 %v316, %v315
    %v331 = vpack.c.b16 %v318, %v317
    %v332 = vpack.c.b16 %v320, %v319
    %vm345 = vcmask 523264
    %v347 = vsel %vm345, %v241, 0
    %349 = vmatprep.subr.bf16.mxu0 0
    %350 = vmatpush1.bf16.msra.mxu0 %v328
    %351 = vmatprep.subr.bf16.mxu0 0
    %352 = vmatpush1.bf16.msra.mxu0 %v327
    %353 = vmatprep.subr.bf16.mxu0 0
    %354 = vmatpush1.bf16.msra.mxu0 %v326
    %355 = vmatprep.subr.bf16.mxu0 0
    %356 = vmatpush1.bf16.msra.mxu0 %v325
    %357 = vmatprep.subr.bf16.mxu0 0
    %358 = vmatpush1.bf16.msra.mxu0 %v324
    %359 = vmatprep.subr.bf16.mxu0 0
    %360 = vmatpush1.bf16.msra.mxu0 %v323
    %361 = vmatprep.subr.bf16.mxu0 0
    %362 = vmatpush1.bf16.msra.mxu0 %v322
    %363 = vmatprep.subr.bf16.mxu0 0
    %364 = vmatpush1.bf16.msra.mxu0 %v321
    %365 = vmatprep.subr.bf16.mxu0 0
    %366 = vmatpush2.bf16.msra.mxu0 0
    %367 = vmatprep.subr.bf16.mxu0 0
    %368 = vmatpush2.bf16.msra.mxu0 0
    %369 = vmatprep.subr.bf16.mxu0 0
    %370 = vmatpush2.bf16.msra.mxu0 0
    %371 = vmatprep.subr.bf16.mxu0 0
    %372 = vmatpush2.bf16.msra.mxu0 0
    %373 = vmatprep.subr.bf16.mxu0 0
    %374 = vmatpush2.bf16.msra.mxu0 %v332
    %375 = vmatprep.subr.bf16.mxu0 0
    %376 = vmatpush2.bf16.msra.mxu0 %v331
    %377 = vmatprep.subr.bf16.mxu0 0
    %378 = vmatpush2.bf16.msra.mxu0 %v330
    %379 = vmatprep.subr.bf16.mxu0 0
    %380 = vmatpush2.bf16.msra.mxu0 %v329
    %381 = vmatprep.mubr.bf16.mxu0 %v347
    %382 = vmatmul.mubr.bf16.gmra.mxu0 %v240
    %v383 = vpop.f32.mrf.mxu0
    %v384 = vadd.f32 %v271, %v383
    %v385 = vpop.f32.mrf.mxu0
    %v386 = vpop.f32.mrf.mxu0
    %v387 = vpop.f32.mrf.mxu0
    %388 = vdwg.mxu0
    %v389 = vpack.c.bf16 %v384, %v384
    %vm390 = vcmask 517120
    %391 = vst.msk [vmem:[%s9] sm:$0x3] %vm390, %v389
    // Predicated region
    $region46: #{_lambda_.10} parent=1 // pred_check
      _
    $region47: #{_lambda_.10} parent=1 // pred_check_branch
      %393 = sbr.rel (0) target = $region49
    $region48: #{_lambda_.10} parent=1 // pred_region
      _
    $region49: #{_lambda_.10} parent=1 // pred_fallthru
      _
    // Predicated region
    $region50: #{_lambda_.10} parent=1 // pred_check
      _
    $region51: #{_lambda_.10} parent=1 // pred_check_branch
      %395 = sbr.rel (0) target = $region53
    $region52: #{_lambda_.10} parent=1 // pred_region
      _
    $region53: #{_lambda_.10} parent=1 // pred_fallthru
      _
    %396 = vsyncpa [#allocation3], 1
    %397 = vsyncpa [#allocation5], 1

// kernel: _lambda_.13
$region0: #{_lambda_.13}
  #allocation0 [shape = 'u32[]', space=smem, size = 0x4, offset = 0x4, fixed_abs, tag = 'smem constant byte address 0x4 - core index']
  #allocation1 [shape = 'u32[144,128]{1,0:T(1,128)}', space=vmem, size = 0x12000, scoped, tag = 'internal scratch']
  %s0 = inlined_call_operand.vmem [shape: bf16[2,64], index: 0, kind: input, shape index: {}]
  %s1 = inlined_call_operand.vmem [shape: bf16[64,16], index: 1, kind: input, shape index: {}]
  %s2 = inlined_call_operand.vmem [shape: f32[1,16], index: 2, kind: input, shape index: {}]
  %s3 = inlined_call_operand.vmem [shape: bf16[16,10], index: 3, kind: input, shape index: {}]
  %s4 = inlined_call_operand.vmem [shape: f32[1,10], index: 4, kind: input, shape index: {}]
  %s5 = inlined_call_operand.hbm [shape: f32[2,10], index: 5, kind: output, shape index: {}]
  %s6 = sld [smem:[#allocation0]]
  $region30: #{_lambda_.13} parent=0
    _
  %s8 = ssub.s32 1, %s6
  %s9 = scalar_select 0, %s8, %s6
  $region1: #{_lambda_.13} parent=0
    #allocation2 [shape = 'u8[1024]{0}', space=vmem, size = 0x400, scoped, tag = 'output window, operand 0, single buffered']
    #allocation3 [shape = 's32[1]{0}', space=sflag, size = 0x4, scoped, tag = 'scoped memory for _lambda_.13']
    %10 = vsyncpa [#allocation3], 0
    // Predicated region
    $region2: #{_lambda_.13} parent=1 // pred_check
      _
    $region3: #{_lambda_.13} parent=1 // pred_check_branch
      %12 = sbr.rel (0) target = $region5
    $region4: #{_lambda_.13} parent=1 // pred_region
      _
    $region5: #{_lambda_.13} parent=1 // pred_fallthru
      _
    // Predicated region
    $region6: #{_lambda_.13} parent=1 // pred_check
      _
    $region7: #{_lambda_.13} parent=1 // pred_check_branch
      %14 = sbr.rel (0) target = $region9
    $region8: #{_lambda_.13} parent=1 // pred_region
      _
    $region9: #{_lambda_.13} parent=1 // pred_fallthru
      _
    // Predicated region
    $region10: #{_lambda_.13} parent=1 // pred_check
      _
    $region11: #{_lambda_.13} parent=1 // pred_check_branch
      %16 = sbr.rel (0) target = $region13
    $region12: #{_lambda_.13} parent=1 // pred_region
      _
    $region13: #{_lambda_.13} parent=1 // pred_fallthru
      _
    // Predicated region
    $region14: #{_lambda_.13} parent=1 // pred_check
      _
    $region15: #{_lambda_.13} parent=1 // pred_check_branch
      %18 = sbr.rel (0) target = $region17
    $region16: #{_lambda_.13} parent=1 // pred_region
      _
    $region17: #{_lambda_.13} parent=1 // pred_fallthru
      _
    // Predicated region
    $region18: #{_lambda_.13} parent=1 // pred_check
      _
    $region19: #{_lambda_.13} parent=1 // pred_check_branch
      %20 = sbr.rel (0) target = $region21
    $region20: #{_lambda_.13} parent=1 // pred_region
      _
    $region21: #{_lambda_.13} parent=1 // pred_fallthru
      _
    %v22 = vld [vmem:[%s0] sm:$0x1]
    %v23 = vld [vmem:[%s1] sm:$0xf]
    %v24 = vld [vmem:[%s1 + $0x4] sm:$0xf]
    %v25 = vld [vmem:[%s1 + $0x8] sm:$0xf]
    %v26 = vld [vmem:[%s1 + $0xc] sm:$0xf]
    %v27 = vld [vmem:[%s1 + $0x10] sm:$0xf]
    %v28 = vld [vmem:[%s1 + $0x14] sm:$0xf]
    %v29 = vld [vmem:[%s1 + $0x18] sm:$0xf]
    %v30 = vld [vmem:[%s1 + $0x1c] sm:$0xf]
    %v31 = vld [vmem:[%s2] sm:$0x1]
    %v33 = vlaneseq
    %v34 = vshrl.u32 %v33, 7
    %v35 = vsub.s32 0, %v34
    %v36 = vrot.slane %v31, %v35
    %v46 = vunpack.c.l.b16 %v23
    %v47 = vunpack.c.l.b16 %v24
    %v48 = vunpack.c.l.b16 %v25
    %v49 = vunpack.c.l.b16 %v26
    %v50 = vunpack.c.l.b16 %v27
    %v51 = vunpack.c.l.b16 %v28
    %v52 = vunpack.c.l.b16 %v29
    %v53 = vunpack.c.l.b16 %v30
    %v54 = vpack.c.b16 %v47, %v46
    %v55 = vpack.c.b16 %v49, %v48
    %v56 = vpack.c.b16 %v51, %v50
    %v57 = vpack.c.b16 %v53, %v52
    %vm62 = vcmask 523264
    %v64 = vsel %vm62, %v22, 0
    %66 = vmatprep.subr.bf16.mxu0 0
    %67 = vmatpush1.bf16.msra.mxu0 0
    %68 = vmatprep.subr.bf16.mxu0 0
    %69 = vmatpush1.bf16.msra.mxu0 0
    %70 = vmatprep.subr.bf16.mxu0 0
    %71 = vmatpush1.bf16.msra.mxu0 0
    %72 = vmatprep.subr.bf16.mxu0 0
    %73 = vmatpush1.bf16.msra.mxu0 0
    %74 = vmatprep.subr.bf16.mxu0 0
    %75 = vmatpush1.bf16.msra.mxu0 %v57
    %76 = vmatprep.subr.bf16.mxu0 0
    %77 = vmatpush1.bf16.msra.mxu0 %v56
    %78 = vmatprep.subr.bf16.mxu0 0
    %79 = vmatpush1.bf16.msra.mxu0 %v55
    %80 = vmatprep.subr.bf16.mxu0 0
    %81 = vmatpush1.bf16.msra.mxu0 %v54
    %82 = vmatprep.subr.bf16.mxu0 0
    %83 = vmatpush2.bf16.msra.mxu0 0
    %84 = vmatprep.subr.bf16.mxu0 0
    %85 = vmatpush2.bf16.msra.mxu0 0
    %86 = vmatprep.subr.bf16.mxu0 0
    %87 = vmatpush2.bf16.msra.mxu0 0
    %88 = vmatprep.subr.bf16.mxu0 0
    %89 = vmatpush2.bf16.msra.mxu0 0
    %90 = vmatprep.subr.bf16.mxu0 0
    %91 = vmatpush2.bf16.msra.mxu0 0
    %92 = vmatprep.subr.bf16.mxu0 0
    %93 = vmatpush2.bf16.msra.mxu0 0
    %94 = vmatprep.subr.bf16.mxu0 0
    %95 = vmatpush2.bf16.msra.mxu0 0
    %96 = vmatprep.subr.bf16.mxu0 0
    %97 = vmatpush2.bf16.msra.mxu0 0
    %98 = vmatprep.mubr.bf16.mxu0 0
    %99 = vmatmul.mubr.bf16.gmra.mxu0 %v64
    %v100 = vpop.f32.mrf.mxu0
    %v101 = vadd.f32 %v36, %v100
    %v102 = vpop.f32.mrf.mxu0
    %v103 = vpop.f32.mrf.mxu0
    %v104 = vpop.f32.mrf.mxu0
    %105 = vdwg.mxu0
    %v106 = vmax.f32 %v101, 0.0
    %v107 = vpack.c.bf16 %v106, %v106
    %v108 = vld [vmem:[%s3] sm:$0xf]
    %v109 = vld [vmem:[%s3 + $0x4] sm:$0xf]
    %v110 = vld [vmem:[%s4] sm:$0x1]
    %v112 = vlaneseq
    %v113 = vshrl.u32 %v112, 7
    %v114 = vsub.s32 0, %v113
    %v115 = vrot.slane %v110, %v114
    %v119 = vunpack.c.l.b16 %v108
    %v120 = vunpack.c.l.b16 %v109
    %v121 = vpack.c.b16 %v120, %v119
    %vm123 = vcmask 130048
    %v125 = vsel %vm123, %v107, 0
    %127 = vmatprep.subr.bf16.mxu0 0
    %128 = vmatpush1.bf16.msra.mxu0 0
    %129 = vmatprep.subr.bf16.mxu0 0
    %130 = vmatpush1.bf16.msra.mxu0 0
    %131 = vmatprep.subr.bf16.mxu0 0
    %132 = vmatpush1.bf16.msra.mxu0 0
    %133 = vmatprep.subr.bf16.mxu0 0
    %134 = vmatpush1.bf16.msra.mxu0 0
    %135 = vmatprep.subr.bf16.mxu0 0
    %136 = vmatpush1.bf16.msra.mxu0 0
    %137 = vmatprep.subr.bf16.mxu0 0
    %138 = vmatpush1.bf16.msra.mxu0 0
    %139 = vmatprep.subr.bf16.mxu0 0
    %140 = vmatpush1.bf16.msra.mxu0 0
    %141 = vmatprep.subr.bf16.mxu0 0
    %142 = vmatpush1.bf16.msra.mxu0 %v121
    %143 = vmatprep.subr.bf16.mxu0 0
    %144 = vmatpush2.bf16.msra.mxu0 0
    %145 = vmatprep.subr.bf16.mxu0 0
    %146 = vmatpush2.bf16.msra.mxu0 0
    %147 = vmatprep.subr.bf16.mxu0 0
    %148 = vmatpush2.bf16.msra.mxu0 0
    %149 = vmatprep.subr.bf16.mxu0 0
    %150 = vmatpush2.bf16.msra.mxu0 0
    %151 = vmatprep.subr.bf16.mxu0 0
    %152 = vmatpush2.bf16.msra.mxu0 0
    %153 = vmatprep.subr.bf16.mxu0 0
    %154 = vmatpush2.bf16.msra.mxu0 0
    %155 = vmatprep.subr.bf16.mxu0 0
    %156 = vmatpush2.bf16.msra.mxu0 0
    %157 = vmatprep.subr.bf16.mxu0 0
    %158 = vmatpush2.bf16.msra.mxu0 0
    %159 = vmatprep.mubr.bf16.mxu0 0
    %160 = vmatmul.mubr.bf16.gmra.mxu0 %v125
    %v161 = vpop.f32.mrf.mxu0
    %v162 = vadd.f32 %v115, %v161
    %v163 = vpop.f32.mrf.mxu0
    %v164 = vpop.f32.mrf.mxu0
    %v165 = vpop.f32.mrf.mxu0
    %166 = vdwg.mxu0
    %vm167 = vcmask 74752
    %168 = vst.msk [vmem:[#allocation2] sm:$0x3] %vm167, %v162
    // Predicated region
    $region22: #{_lambda_.13} parent=1 // pred_check
      _
    $region23: #{_lambda_.13} parent=1 // pred_check_branch
      %170 = sbr.rel (0) target = $region25
    $region24: #{_lambda_.13} parent=1 // pred_region
      %s172 = ssub.s32 32, 32
      %173 = vsyncadd [#allocation3], %s172
      %s175 = sshll.u32 [#allocation2], 4
      %s176 = int_to_ptr.vmem [resolvable:$true] %s175
      %178 = dma.vmem_to_hbm [thread:$0]  %s176, 32, %s5, [#allocation3]
    $region25: #{_lambda_.13} parent=1 // pred_fallthru
      _
    // Predicated region
    $region26: #{_lambda_.13} parent=1 // pred_check
      _
    $region27: #{_lambda_.13} parent=1 // pred_check_branch
      %180 = sbr.rel (0) target = $region29
    $region28: #{_lambda_.13} parent=1 // pred_region
      %181 = dma.done [#allocation3], 32
    $region29: #{_lambda_.13} parent=1 // pred_fallthru
      _
    %182 = vsyncpa [#allocation3], 1

// kernel: _lambda_.11
$region0: #{_lambda_.11}
  #allocation0 [shape = 'u32[]', space=smem, size = 0x4, offset = 0x4, fixed_abs, tag = 'smem constant byte address 0x4 - core index']
  #allocation1 [shape = 'u32[144,128]{1,0:T(1,128)}', space=vmem, size = 0x12000, scoped, tag = 'internal scratch']
  %s0 = inlined_call_operand.vmem [shape: bf16[4,64], index: 0, kind: input, shape index: {}]
  %s1 = inlined_call_operand.vmem [shape: bf16[4,64], index: 1, kind: input, shape index: {}]
  %s2 = inlined_call_operand.vmem [shape: bf16[64,384], index: 2, kind: input, shape index: {}]
  %s3 = inlined_call_operand.vmem [shape: f32[1,384], index: 3, kind: input, shape index: {}, may-alias: {3,6}]
  %s4 = inlined_call_operand.hbm [shape: f32[1,384], index: 4, kind: input, shape index: {}]
  %s5 = inlined_call_operand.hbm [shape: f32[1,384], index: 5, kind: input, shape index: {}]
  %s6 = inlined_call_operand.vmem [shape: f32[1,384], index: 6, kind: input, shape index: {}, may-alias: {3,6}]
  %s7 = inlined_call_operand.vmem [shape: bf16[384,64], index: 7, kind: input, shape index: {}]
  %s8 = inlined_call_operand.vmem [shape: f32[1,64], index: 8, kind: input, shape index: {}]
  %s9 = inlined_call_operand.vmem [shape: bf16[4,64], index: 9, kind: output, shape index: {}]
  %s10 = sld [smem:[#allocation0]]
  $region54: #{_lambda_.11} parent=0
    _
  %s12 = ssub.s32 1, %s10
  %s13 = scalar_select 0, %s12, %s10
  $region1: #{_lambda_.11} parent=0
    #allocation2 [shape = 'u8[1536]{0}', space=vmem, size = 0x800, scoped, tag = 'input window, operand 4, single buffered']
    #allocation3 [shape = 's32[1]{0}', space=sflag, size = 0x4, scoped, tag = 'scoped memory for _lambda_.11']
    #allocation4 [shape = 'u8[1536]{0}', space=vmem, size = 0x800, scoped, tag = 'input window, operand 5, single buffered']
    #allocation5 [shape = 's32[1]{0}', space=sflag, size = 0x4, scoped, tag = 'scoped memory for _lambda_.11']
    %14 = vsyncpa [#allocation3], 0
    %15 = vsyncpa [#allocation5], 0
    // Predicated region
    $region2: #{_lambda_.11} parent=1 // pred_check
      _
    $region3: #{_lambda_.11} parent=1 // pred_check_branch
      %17 = sbr.rel (0) target = $region5
    $region4: #{_lambda_.11} parent=1 // pred_region
      _
    $region5: #{_lambda_.11} parent=1 // pred_fallthru
      _
    // Predicated region
    $region6: #{_lambda_.11} parent=1 // pred_check
      _
    $region7: #{_lambda_.11} parent=1 // pred_check_branch
      %19 = sbr.rel (0) target = $region9
    $region8: #{_lambda_.11} parent=1 // pred_region
      _
    $region9: #{_lambda_.11} parent=1 // pred_fallthru
      _
    // Predicated region
    $region10: #{_lambda_.11} parent=1 // pred_check
      _
    $region11: #{_lambda_.11} parent=1 // pred_check_branch
      %21 = sbr.rel (0) target = $region13
    $region12: #{_lambda_.11} parent=1 // pred_region
      _
    $region13: #{_lambda_.11} parent=1 // pred_fallthru
      _
    // Predicated region
    $region14: #{_lambda_.11} parent=1 // pred_check
      _
    $region15: #{_lambda_.11} parent=1 // pred_check_branch
      %23 = sbr.rel (0) target = $region17
    $region16: #{_lambda_.11} parent=1 // pred_region
      _
    $region17: #{_lambda_.11} parent=1 // pred_fallthru
      _
    // Predicated region
    $region18: #{_lambda_.11} parent=1 // pred_check
      _
    $region19: #{_lambda_.11} parent=1 // pred_check_branch
      %25 = sbr.rel (0) target = $region21
    $region20: #{_lambda_.11} parent=1 // pred_region
      %s27 = ssub.s32 48, 48
      %28 = vsyncadd [#allocation3], %s27
      %s30 = sshll.u32 [#allocation2], 4
      %s31 = int_to_ptr.vmem [resolvable:$true] %s30
      %33 = dma.hbm_to_vmem [thread:$0]  %s4, 48, %s31, [#allocation3]
    $region21: #{_lambda_.11} parent=1 // pred_fallthru
      _
    // Predicated region
    $region22: #{_lambda_.11} parent=1 // pred_check
      _
    $region23: #{_lambda_.11} parent=1 // pred_check_branch
      %35 = sbr.rel (0) target = $region25
    $region24: #{_lambda_.11} parent=1 // pred_region
      %s37 = ssub.s32 48, 48
      %38 = vsyncadd [#allocation5], %s37
      %s40 = sshll.u32 [#allocation4], 4
      %s41 = int_to_ptr.vmem [resolvable:$true] %s40
      %43 = dma.hbm_to_vmem [thread:$0]  %s5, 48, %s41, [#allocation5]
    $region25: #{_lambda_.11} parent=1 // pred_fallthru
      _
    // Predicated region
    $region26: #{_lambda_.11} parent=1 // pred_check
      _
    $region27: #{_lambda_.11} parent=1 // pred_check_branch
      %45 = sbr.rel (0) target = $region29
    $region28: #{_lambda_.11} parent=1 // pred_region
      _
    $region29: #{_lambda_.11} parent=1 // pred_fallthru
      _
    // Predicated region
    $region30: #{_lambda_.11} parent=1 // pred_check
      _
    $region31: #{_lambda_.11} parent=1 // pred_check_branch
      %47 = sbr.rel (0) target = $region33
    $region32: #{_lambda_.11} parent=1 // pred_region
      _
    $region33: #{_lambda_.11} parent=1 // pred_fallthru
      _
    // Predicated region
    $region34: #{_lambda_.11} parent=1 // pred_check
      _
    $region35: #{_lambda_.11} parent=1 // pred_check_branch
      %49 = sbr.rel (0) target = $region37
    $region36: #{_lambda_.11} parent=1 // pred_region
      _
    $region37: #{_lambda_.11} parent=1 // pred_fallthru
      _
    // Predicated region
    $region38: #{_lambda_.11} parent=1 // pred_check
      _
    $region39: #{_lambda_.11} parent=1 // pred_check_branch
      %51 = sbr.rel (0) target = $region41
    $region40: #{_lambda_.11} parent=1 // pred_region
      %52 = dma.done [#allocation3], 48
    $region41: #{_lambda_.11} parent=1 // pred_fallthru
      _
    // Predicated region
    $region42: #{_lambda_.11} parent=1 // pred_check
      _
    $region43: #{_lambda_.11} parent=1 // pred_check_branch
      %54 = sbr.rel (0) target = $region45
    $region44: #{_lambda_.11} parent=1 // pred_region
      %55 = dma.done [#allocation5], 48
    $region45: #{_lambda_.11} parent=1 // pred_fallthru
      _
    %v57 = vld [vmem:[%s0] sm:$0x3]
    %v58 = vld [vmem:[%s2] sm:$0xff]
    %v59 = vld [vmem:[%s2 + $0x8] sm:$0xf]
    %v60 = vld [vmem:[%s2 + $0xc] sm:$0xff]
    %v61 = vld [vmem:[%s2 + $0x14] sm:$0xf]
    %v62 = vld [vmem:[%s2 + $0x18] sm:$0xff]
    %v63 = vld [vmem:[%s2 + $0x20] sm:$0xf]
    %v64 = vld [vmem:[%s2 + $0x24] sm:$0xff]
    %v65 = vld [vmem:[%s2 + $0x2c] sm:$0xf]
    %v66 = vld [vmem:[%s2 + $0x30] sm:$0xff]
    %v67 = vld [vmem:[%s2 + $0x38] sm:$0xf]
    %v68 = vld [vmem:[%s2 + $0x3c] sm:$0xff]
    %v69 = vld [vmem:[%s2 + $0x44] sm:$0xf]
    %v70 = vld [vmem:[%s2 + $0x48] sm:$0xff]
    %v71 = vld [vmem:[%s2 + $0x50] sm:$0xf]
    %v72 = vld [vmem:[%s2 + $0x54] sm:$0xff]
    %v73 = vld [vmem:[%s2 + $0x5c] sm:$0xf]
    %v74 = vld [vmem:[%s3] sm:$0x7]
    %v76 = vlaneseq
    %v77 = vshrl.u32 %v76, 7
    %v78 = vsub.s32 0, %v77
    %v79 = vrot.slane %v74, %v78
    %v80 = vlaneseq
    %v81 = vshrl.u32 %v80, 7
    %v82 = vsub.s32 1, %v81
    %v83 = vrot.slane %v74, %v82
    %v84 = vlaneseq
    %v85 = vshrl.u32 %v84, 7
    %v86 = vsub.s32 2, %v85
    %v87 = vrot.slane %v74, %v86
    %v107 = vunpack.c.l.b16 %v58
    %v108 = vunpack.c.h.b16 %v58
    %v109 = vunpack.c.l.b16 %v59
    %v110 = vunpack.c.l.b16 %v60
    %v111 = vunpack.c.h.b16 %v60
    %v112 = vunpack.c.l.b16 %v61
    %v113 = vunpack.c.l.b16 %v62
    %v114 = vunpack.c.h.b16 %v62
    %v115 = vunpack.c.l.b16 %v63
    %v116 = vunpack.c.l.b16 %v64
    %v117 = vunpack.c.h.b16 %v64
    %v118 = vunpack.c.l.b16 %v65
    %v119 = vunpack.c.l.b16 %v66
    %v120 = vunpack.c.h.b16 %v66
    %v121 = vunpack.c.l.b16 %v67
    %v122 = vunpack.c.l.b16 %v68
    %v123 = vunpack.c.h.b16 %v68
    %v124 = vunpack.c.l.b16 %v69
    %v125 = vunpack.c.l.b16 %v70
    %v126 = vunpack.c.h.b16 %v70
    %v127 = vunpack.c.l.b16 %v71
    %v128 = vunpack.c.l.b16 %v72
    %v129 = vunpack.c.h.b16 %v72
    %v130 = vunpack.c.l.b16 %v73
    %v131 = vpack.c.b16 %v110, %v107
    %v132 = vpack.c.b16 %v111, %v108
    %v133 = vpack.c.b16 %v112, %v109
    %v134 = vpack.c.b16 %v116, %v113
    %v135 = vpack.c.b16 %v117, %v114
    %v136 = vpack.c.b16 %v118, %v115
    %v137 = vpack.c.b16 %v122, %v119
    %v138 = vpack.c.b16 %v123, %v120
    %v139 = vpack.c.b16 %v124, %v121
    %v140 = vpack.c.b16 %v128, %v125
    %v141 = vpack.c.b16 %v129, %v126
    %v142 = vpack.c.b16 %v130, %v127
    %vm155 = vcmask 523264
    %v157 = vsel %vm155, %v57, 0
    %159 = vmatprep.subr.bf16.mxu0 0
    %160 = vmatpush1.bf16.msra.mxu0 0
    %161 = vmatprep.subr.bf16.mxu0 0
    %162 = vmatpush1.bf16.msra.mxu0 0
    %163 = vmatprep.subr.bf16.mxu0 0
    %164 = vmatpush1.bf16.msra.mxu0 0
    %165 = vmatprep.subr.bf16.mxu0 0
    %166 = vmatpush1.bf16.msra.mxu0 0
    %167 = vmatprep.subr.bf16.mxu0 %v141
    %168 = vmatpush1.bf16.msra.mxu0 %v140
    %169 = vmatprep.subr.bf16.mxu0 %v138
    %170 = vmatpush1.bf16.msra.mxu0 %v137
    %171 = vmatprep.subr.bf16.mxu0 %v135
    %172 = vmatpush1.bf16.msra.mxu0 %v134
    %173 = vmatprep.subr.bf16.mxu0 %v132
    %174 = vmatpush1.bf16.msra.mxu0 %v131
    %175 = vmatprep.subr.bf16.mxu0 0
    %176 = vmatpush2.bf16.msra.mxu0 0
    %177 = vmatprep.subr.bf16.mxu0 0
    %178 = vmatpush2.bf16.msra.mxu0 0
    %179 = vmatprep.subr.bf16.mxu0 0
    %180 = vmatpush2.bf16.msra.mxu0 0
    %181 = vmatprep.subr.bf16.mxu0 0
    %182 = vmatpush2.bf16.msra.mxu0 0
    %183 = vmatprep.subr.bf16.mxu0 0
    %184 = vmatpush2.bf16.msra.mxu0 0
    %185 = vmatprep.subr.bf16.mxu0 0
    %186 = vmatpush2.bf16.msra.mxu0 0
    %187 = vmatprep.subr.bf16.mxu0 0
    %188 = vmatpush2.bf16.msra.mxu0 0
    %189 = vmatprep.subr.bf16.mxu0 0
    %190 = vmatpush2.bf16.msra.mxu0 0
    %191 = vmatprep.mubr.bf16.mxu0 0
    %192 = vmatmul.mubr.bf16.gmra.mxu0 %v157
    %v193 = vpop.f32.mrf.mxu0
    %v194 = vadd.f32 %v79, %v193
    %v195 = vpop.f32.mrf.mxu0
    %v196 = vadd.f32 %v83, %v195
    %v197 = vpop.f32.mrf.mxu0
    %v198 = vpop.f32.mrf.mxu0
    %199 = vdwg.mxu0
    %200 = vmatprep.subr.bf16.mxu0 0
    %201 = vmatpush1.bf16.msra.mxu0 0
    %202 = vmatprep.subr.bf16.mxu0 0
    %203 = vmatpush1.bf16.msra.mxu0 0
    %204 = vmatprep.subr.bf16.mxu0 0
    %205 = vmatpush1.bf16.msra.mxu0 0
    %206 = vmatprep.subr.bf16.mxu0 0
    %207 = vmatpush1.bf16.msra.mxu0 0
    %208 = vmatprep.subr.bf16.mxu0 0
    %209 = vmatpush1.bf16.msra.mxu0 %v142
    %210 = vmatprep.subr.bf16.mxu0 0
    %211 = vmatpush1.bf16.msra.mxu0 %v139
    %212 = vmatprep.subr.bf16.mxu0 0
    %213 = vmatpush1.bf16.msra.mxu0 %v136
    %214 = vmatprep.subr.bf16.mxu0 0
    %215 = vmatpush1.bf16.msra.mxu0 %v133
    %216 = vmatprep.subr.bf16.mxu0 0
    %217 = vmatpush2.bf16.msra.mxu0 0
    %218 = vmatprep.subr.bf16.mxu0 0
    %219 = vmatpush2.bf16.msra.mxu0 0
    %220 = vmatprep.subr.bf16.mxu0 0
    %221 = vmatpush2.bf16.msra.mxu0 0
    %222 = vmatprep.subr.bf16.mxu0 0
    %223 = vmatpush2.bf16.msra.mxu0 0
    %224 = vmatprep.subr.bf16.mxu0 0
    %225 = vmatpush2.bf16.msra.mxu0 0
    %226 = vmatprep.subr.bf16.mxu0 0
    %227 = vmatpush2.bf16.msra.mxu0 0
    %228 = vmatprep.subr.bf16.mxu0 0
    %229 = vmatpush2.bf16.msra.mxu0 0
    %230 = vmatprep.subr.bf16.mxu0 0
    %231 = vmatpush2.bf16.msra.mxu0 0
    %232 = vmatprep.mubr.bf16.mxu0 0
    %233 = vmatmul.mubr.bf16.gmra.mxu0 %v157
    %v234 = vpop.f32.mrf.mxu0
    %v235 = vadd.f32 %v87, %v234
    %v236 = vpop.f32.mrf.mxu0
    %v237 = vpop.f32.mrf.mxu0
    %v238 = vpop.f32.mrf.mxu0
    %239 = vdwg.mxu0
    %v240 = vmax.f32 %v194, 0.0
    %v241 = vmax.f32 %v196, 0.0
    %v242 = vmax.f32 %v235, 0.0
    %v243 = vmin.f32 %v240, 6.0
    %v244 = vmin.f32 %v241, 6.0
    %v245 = vmin.f32 %v242, 6.0
    %v246 = vld [vmem:[%s1] sm:$0x3]
    %v248 = vsel %vm155, %v246, 0
    %250 = vmatprep.subr.bf16.mxu0 0
    %251 = vmatpush1.bf16.msra.mxu0 0
    %252 = vmatprep.subr.bf16.mxu0 0
    %253 = vmatpush1.bf16.msra.mxu0 0
    %254 = vmatprep.subr.bf16.mxu0 0
    %255 = vmatpush1.bf16.msra.mxu0 0
    %256 = vmatprep.subr.bf16.mxu0 0
    %257 = vmatpush1.bf16.msra.mxu0 0
    %258 = vmatprep.subr.bf16.mxu0 %v141
    %259 = vmatpush1.bf16.msra.mxu0 %v140
    %260 = vmatprep.subr.bf16.mxu0 %v138
    %261 = vmatpush1.bf16.msra.mxu0 %v137
    %262 = vmatprep.subr.bf16.mxu0 %v135
    %263 = vmatpush1.bf16.msra.mxu0 %v134
    %264 = vmatprep.subr.bf16.mxu0 %v132
    %265 = vmatpush1.bf16.msra.mxu0 %v131
    %266 = vmatprep.subr.bf16.mxu0 0
    %267 = vmatpush2.bf16.msra.mxu0 0
    %268 = vmatprep.subr.bf16.mxu0 0
    %269 = vmatpush2.bf16.msra.mxu0 0
    %270 = vmatprep.subr.bf16.mxu0 0
    %271 = vmatpush2.bf16.msra.mxu0 0
    %272 = vmatprep.subr.bf16.mxu0 0
    %273 = vmatpush2.bf16.msra.mxu0 0
    %274 = vmatprep.subr.bf16.mxu0 0
    %275 = vmatpush2.bf16.msra.mxu0 0
    %276 = vmatprep.subr.bf16.mxu0 0
    %277 = vmatpush2.bf16.msra.mxu0 0
    %278 = vmatprep.subr.bf16.mxu0 0
    %279 = vmatpush2.bf16.msra.mxu0 0
    %280 = vmatprep.subr.bf16.mxu0 0
    %281 = vmatpush2.bf16.msra.mxu0 0
    %282 = vmatprep.mubr.bf16.mxu0 0
    %283 = vmatmul.mubr.bf16.gmra.mxu0 %v248
    %v284 = vpop.f32.mrf.mxu0
    %v285 = vadd.f32 %v79, %v284
    %v286 = vpop.f32.mrf.mxu0
    %v287 = vadd.f32 %v83, %v286
    %v288 = vpop.f32.mrf.mxu0
    %v289 = vpop.f32.mrf.mxu0
    %290 = vdwg.mxu0
    %291 = vmatprep.subr.bf16.mxu0 0
    %292 = vmatpush1.bf16.msra.mxu0 0
    %293 = vmatprep.subr.bf16.mxu0 0
    %294 = vmatpush1.bf16.msra.mxu0 0
    %295 = vmatprep.subr.bf16.mxu0 0
    %296 = vmatpush1.bf16.msra.mxu0 0
    %297 = vmatprep.subr.bf16.mxu0 0
    %298 = vmatpush1.bf16.msra.mxu0 0
    %299 = vmatprep.subr.bf16.mxu0 0
    %300 = vmatpush1.bf16.msra.mxu0 %v142
    %301 = vmatprep.subr.bf16.mxu0 0
    %302 = vmatpush1.bf16.msra.mxu0 %v139
    %303 = vmatprep.subr.bf16.mxu0 0
    %304 = vmatpush1.bf16.msra.mxu0 %v136
    %305 = vmatprep.subr.bf16.mxu0 0
    %306 = vmatpush1.bf16.msra.mxu0 %v133
    %307 = vmatprep.subr.bf16.mxu0 0
    %308 = vmatpush2.bf16.msra.mxu0 0
    %309 = vmatprep.subr.bf16.mxu0 0
    %310 = vmatpush2.bf16.msra.mxu0 0
    %311 = vmatprep.subr.bf16.mxu0 0
    %312 = vmatpush2.bf16.msra.mxu0 0
    %313 = vmatprep.subr.bf16.mxu0 0
    %314 = vmatpush2.bf16.msra.mxu0 0
    %315 = vmatprep.subr.bf16.mxu0 0
    %316 = vmatpush2.bf16.msra.mxu0 0
    %317 = vmatprep.subr.bf16.mxu0 0
    %318 = vmatpush2.bf16.msra.mxu0 0
    %319 = vmatprep.subr.bf16.mxu0 0
    %320 = vmatpush2.bf16.msra.mxu0 0
    %321 = vmatprep.subr.bf16.mxu0 0
    %322 = vmatpush2.bf16.msra.mxu0 0
    %323 = vmatprep.mubr.bf16.mxu0 0
    %324 = vmatmul.mubr.bf16.gmra.mxu0 %v248
    %v325 = vpop.f32.mrf.mxu0
    %v326 = vadd.f32 %v87, %v325
    %v327 = vpop.f32.mrf.mxu0
    %v328 = vpop.f32.mrf.mxu0
    %v329 = vpop.f32.mrf.mxu0
    %330 = vdwg.mxu0
    %v331 = vmax.f32 %v285, 0.0
    %v332 = vmax.f32 %v287, 0.0
    %v333 = vmax.f32 %v326, 0.0
    %v334 = vmin.f32 %v331, 6.0
    %v335 = vmin.f32 %v332, 6.0
    %v336 = vmin.f32 %v333, 6.0
    %v337 = vld [vmem:[#allocation2] sm:$0x7]
    %v339 = vlaneseq
    %v340 = vshrl.u32 %v339, 7
    %v341 = vsub.s32 0, %v340
    %v342 = vrot.slane %v337, %v341
    %v343 = vlaneseq
    %v344 = vshrl.u32 %v343, 7
    %v345 = vsub.s32 1, %v344
    %v346 = vrot.slane %v337, %v345
    %v347 = vlaneseq
    %v348 = vshrl.u32 %v347, 7
    %v349 = vsub.s32 2, %v348
    %v350 = vrot.slane %v337, %v349
    %v354 = vmul.f32 %v243, %v342
    %v355 = vmul.f32 %v244, %v346
    %v356 = vmul.f32 %v245, %v350
    %v357 = vld [vmem:[#allocation4] sm:$0x7]
    %v359 = vlaneseq
    %v360 = vshrl.u32 %v359, 7
    %v361 = vsub.s32 0, %v360
    %v362 = vrot.slane %v357, %v361
    %v363 = vlaneseq
    %v364 = vshrl.u32 %v363, 7
    %v365 = vsub.s32 1, %v364
    %v366 = vrot.slane %v357, %v365
    %v367 = vlaneseq
    %v368 = vshrl.u32 %v367, 7
    %v369 = vsub.s32 2, %v368
    %v370 = vrot.slane %v357, %v369
    %v374 = vmul.f32 %v334, %v362
    %v375 = vmul.f32 %v335, %v366
    %v376 = vmul.f32 %v336, %v370
    %v377 = vadd.f32 %v354, %v374
    %v378 = vadd.f32 %v355, %v375
    %v379 = vadd.f32 %v356, %v376
    %v380 = vld [vmem:[%s6] sm:$0x7]
    %v382 = vlaneseq
    %v383 = vshrl.u32 %v382, 7
    %v384 = vsub.s32 0, %v383
    %v385 = vrot.slane %v380, %v384
    %v386 = vlaneseq
    %v387 = vshrl.u32 %v386, 7
    %v388 = vsub.s32 1, %v387
    %v389 = vrot.slane %v380, %v388
    %v390 = vlaneseq
    %v391 = vshrl.u32 %v390, 7
    %v392 = vsub.s32 2, %v391
    %v393 = vrot.slane %v380, %v392
    %v397 = vadd.f32 %v377, %v385
    %v398 = vadd.f32 %v378, %v389
    %v399 = vadd.f32 %v379, %v393
    %v400 = vmax.f32 %v397, 0.0
    %v401 = vmax.f32 %v398, 0.0
    %v402 = vmax.f32 %v399, 0.0
    %v403 = vmin.f32 %v400, 6.0
    %v404 = vmin.f32 %v401, 6.0
    %v405 = vmin.f32 %v402, 6.0
    %v406 = vpack.c.bf16 %v403, %v403
    %v407 = vpack.c.bf16 %v404, %v404
    %v408 = vpack.c.bf16 %v405, %v405
    %v409 = vld [vmem:[%s7] sm:$0xf]
    %v410 = vld [vmem:[%s7 + $0x4] sm:$0xf]
    %v411 = vld [vmem:[%s7 + $0x8] sm:$0xf]
    %v412 = vld [vmem:[%s7 + $0xc] sm:$0xf]
    %v413 = vld [vmem:[%s7 + $0x10] sm:$0xf]
    %v414 = vld [vmem:[%s7 + $0x14] sm:$0xf]
    %v415 = vld [vmem:[%s7 + $0x18] sm:$0xf]
    %v416 = vld [vmem:[%s7 + $0x1c] sm:$0xf]
    %v417 = vld [vmem:[%s7 + $0x20] sm:$0xf]
    %v418 = vld [vmem:[%s7 + $0x24] sm:$0xf]
    %v419 = vld [vmem:[%s7 + $0x28] sm:$0xf]
    %v420 = vld [vmem:[%s7 + $0x2c] sm:$0xf]
    %v421 = vld [vmem:[%s7 + $0x30] sm:$0xf]
    %v422 = vld [vmem:[%s7 + $0x34] sm:$0xf]
    %v423 = vld [vmem:[%s7 + $0x38] sm:$0xf]
    %v424 = vld [vmem:[%s7 + $0x3c] sm:$0xf]
    %v425 = vld [vmem:[%s7 + $0x40] sm:$0xf]
    %v426 = vld [vmem:[%s7 + $0x44] sm:$0xf]
    %v427 = vld [vmem:[%s7 + $0x48] sm:$0xf]
    %v428 = vld [vmem:[%s7 + $0x4c] sm:$0xf]
    %v429 = vld [vmem:[%s7 + $0x50] sm:$0xf]
    %v430 = vld [vmem:[%s7 + $0x54] sm:$0xf]
    %v431 = vld [vmem:[%s7 + $0x58] sm:$0xf]
    %v432 = vld [vmem:[%s7 + $0x5c] sm:$0xf]
    %v433 = vld [vmem:[%s7 + $0x60] sm:$0xf]
    %v434 = vld [vmem:[%s7 + $0x64] sm:$0xf]
    %v435 = vld [vmem:[%s7 + $0x68] sm:$0xf]
    %v436 = vld [vmem:[%s7 + $0x6c] sm:$0xf]
    %v437 = vld [vmem:[%s7 + $0x70] sm:$0xf]
    %v438 = vld [vmem:[%s7 + $0x74] sm:$0xf]
    %v439 = vld [vmem:[%s7 + $0x78] sm:$0xf]
    %v440 = vld [vmem:[%s7 + $0x7c] sm:$0xf]
    %v441 = vld [vmem:[%s7 + $0x80] sm:$0xf]
    %v442 = vld [vmem:[%s7 + $0x84] sm:$0xf]
    %v443 = vld [vmem:[%s7 + $0x88] sm:$0xf]
    %v444 = vld [vmem:[%s7 + $0x8c] sm:$0xf]
    %v445 = vld [vmem:[%s7 + $0x90] sm:$0xf]
    %v446 = vld [vmem:[%s7 + $0x94] sm:$0xf]
    %v447 = vld [vmem:[%s7 + $0x98] sm:$0xf]
    %v448 = vld [vmem:[%s7 + $0x9c] sm:$0xf]
    %v449 = vld [vmem:[%s7 + $0xa0] sm:$0xf]
    %v450 = vld [vmem:[%s7 + $0xa4] sm:$0xf]
    %v451 = vld [vmem:[%s7 + $0xa8] sm:$0xf]
    %v452 = vld [vmem:[%s7 + $0xac] sm:$0xf]
    %v453 = vld [vmem:[%s7 + $0xb0] sm:$0xf]
    %v454 = vld [vmem:[%s7 + $0xb4] sm:$0xf]
    %v455 = vld [vmem:[%s7 + $0xb8] sm:$0xf]
    %v456 = vld [vmem:[%s7 + $0xbc] sm:$0xf]
    %v457 = vld [vmem:[%s8] sm:$0x1]
    %v459 = vlaneseq
    %v460 = vshrl.u32 %v459, 7
    %v461 = vsub.s32 0, %v460
    %v462 = vrot.slane %v457, %v461
    %v512 = vunpack.c.l.b16 %v409
    %v513 = vunpack.c.l.b16 %v410
    %v514 = vunpack.c.l.b16 %v411
    %v515 = vunpack.c.l.b16 %v412
    %v516 = vunpack.c.l.b16 %v413
    %v517 = vunpack.c.l.b16 %v414
    %v518 = vunpack.c.l.b16 %v415
    %v519 = vunpack.c.l.b16 %v416
    %v520 = vunpack.c.l.b16 %v417
    %v521 = vunpack.c.l.b16 %v418
    %v522 = vunpack.c.l.b16 %v419
    %v523 = vunpack.c.l.b16 %v420
    %v524 = vunpack.c.l.b16 %v421
    %v525 = vunpack.c.l.b16 %v422
    %v526 = vunpack.c.l.b16 %v423
    %v527 = vunpack.c.l.b16 %v424
    %v528 = vunpack.c.l.b16 %v425
    %v529 = vunpack.c.l.b16 %v426
    %v530 = vunpack.c.l.b16 %v427
    %v531 = vunpack.c.l.b16 %v428
    %v532 = vunpack.c.l.b16 %v429
    %v533 = vunpack.c.l.b16 %v430
    %v534 = vunpack.c.l.b16 %v431
    %v535 = vunpack.c.l.b16 %v432
    %v536 = vunpack.c.l.b16 %v433
    %v537 = vunpack.c.l.b16 %v434
    %v538 = vunpack.c.l.b16 %v435
    %v539 = vunpack.c.l.b16 %v436
    %v540 = vunpack.c.l.b16 %v437
    %v541 = vunpack.c.l.b16 %v438
    %v542 = vunpack.c.l.b16 %v439
    %v543 = vunpack.c.l.b16 %v440
    %v544 = vunpack.c.l.b16 %v441
    %v545 = vunpack.c.l.b16 %v442
    %v546 = vunpack.c.l.b16 %v443
    %v547 = vunpack.c.l.b16 %v444
    %v548 = vunpack.c.l.b16 %v445
    %v549 = vunpack.c.l.b16 %v446
    %v550 = vunpack.c.l.b16 %v447
    %v551 = vunpack.c.l.b16 %v448
    %v552 = vunpack.c.l.b16 %v449
    %v553 = vunpack.c.l.b16 %v450
    %v554 = vunpack.c.l.b16 %v451
    %v555 = vunpack.c.l.b16 %v452
    %v556 = vunpack.c.l.b16 %v453
    %v557 = vunpack.c.l.b16 %v454
    %v558 = vunpack.c.l.b16 %v455
    %v559 = vunpack.c.l.b16 %v456
    %v560 = vpack.c.b16 %v513, %v512
    %v561 = vpack.c.b16 %v515, %v514
    %v562 = vpack.c.b16 %v517, %v516
    %v563 = vpack.c.b16 %v519, %v518
    %v564 = vpack.c.b16 %v521, %v520
    %v565 = vpack.c.b16 %v523, %v522
    %v566 = vpack.c.b16 %v525, %v524
    %v567 = vpack.c.b16 %v527, %v526
    %v568 = vpack.c.b16 %v529, %v528
    %v569 = vpack.c.b16 %v531, %v530
    %v570 = vpack.c.b16 %v533, %v532
    %v571 = vpack.c.b16 %v535, %v534
    %v572 = vpack.c.b16 %v537, %v536
    %v573 = vpack.c.b16 %v539, %v538
    %v574 = vpack.c.b16 %v541, %v540
    %v575 = vpack.c.b16 %v543, %v542
    %v576 = vpack.c.b16 %v545, %v544
    %v577 = vpack.c.b16 %v547, %v546
    %v578 = vpack.c.b16 %v549, %v548
    %v579 = vpack.c.b16 %v551, %v550
    %v580 = vpack.c.b16 %v553, %v552
    %v581 = vpack.c.b16 %v555, %v554
    %v582 = vpack.c.b16 %v557, %v556
    %v583 = vpack.c.b16 %v559, %v558
    %608 = vmatprep.subr.bf16.mxu0 0
    %609 = vmatpush1.bf16.msra.mxu0 %v567
    %610 = vmatprep.subr.bf16.mxu0 0
    %611 = vmatpush1.bf16.msra.mxu0 %v566
    %612 = vmatprep.subr.bf16.mxu0 0
    %613 = vmatpush1.bf16.msra.mxu0 %v565
    %614 = vmatprep.subr.bf16.mxu0 0
    %615 = vmatpush1.bf16.msra.mxu0 %v564
    %616 = vmatprep.subr.bf16.mxu0 0
    %617 = vmatpush1.bf16.msra.mxu0 %v563
    %618 = vmatprep.subr.bf16.mxu0 0
    %619 = vmatpush1.bf16.msra.mxu0 %v562
    %620 = vmatprep.subr.bf16.mxu0 0
    %621 = vmatpush1.bf16.msra.mxu0 %v561
    %622 = vmatprep.subr.bf16.mxu0 0
    %623 = vmatpush1.bf16.msra.mxu0 %v560
    %624 = vmatprep.subr.bf16.mxu0 0
    %625 = vmatpush2.bf16.msra.mxu0 %v575
    %626 = vmatprep.subr.bf16.mxu0 0
    %627 = vmatpush2.bf16.msra.mxu0 %v574
    %628 = vmatprep.subr.bf16.mxu0 0
    %629 = vmatpush2.bf16.msra.mxu0 %v573
    %630 = vmatprep.subr.bf16.mxu0 0
    %631 = vmatpush2.bf16.msra.mxu0 %v572
    %632 = vmatprep.subr.bf16.mxu0 0
    %633 = vmatpush2.bf16.msra.mxu0 %v571
    %634 = vmatprep.subr.bf16.mxu0 0
    %635 = vmatpush2.bf16.msra.mxu0 %v570
    %636 = vmatprep.subr.bf16.mxu0 0
    %637 = vmatpush2.bf16.msra.mxu0 %v569
    %638 = vmatprep.subr.bf16.mxu0 0
    %639 = vmatpush2.bf16.msra.mxu0 %v568
    %640 = vmatprep.mubr.bf16.mxu0 %v407
    %641 = vmatmul.mubr.bf16.gmra.mxu0 %v406
    %v642 = vpop.f32.mrf.mxu0
    %v643 = vadd.f32 %v462, %v642
    %v644 = vpop.f32.mrf.mxu0
    %v645 = vpop.f32.mrf.mxu0
    %v646 = vpop.f32.mrf.mxu0
    %647 = vdwg.mxu0
    %648 = vmatprep.subr.bf16.mxu0 0
    %649 = vmatpush1.bf16.msra.mxu0 %v583
    %650 = vmatprep.subr.bf16.mxu0 0
    %651 = vmatpush1.bf16.msra.mxu0 %v582
    %652 = vmatprep.subr.bf16.mxu0 0
    %653 = vmatpush1.bf16.msra.mxu0 %v581
    %654 = vmatprep.subr.bf16.mxu0 0
    %655 = vmatpush1.bf16.msra.mxu0 %v580
    %656 = vmatprep.subr.bf16.mxu0 0
    %657 = vmatpush1.bf16.msra.mxu0 %v579
    %658 = vmatprep.subr.bf16.mxu0 0
    %659 = vmatpush1.bf16.msra.mxu0 %v578
    %660 = vmatprep.subr.bf16.mxu0 0
    %661 = vmatpush1.bf16.msra.mxu0 %v577
    %662 = vmatprep.subr.bf16.mxu0 0
    %663 = vmatpush1.bf16.msra.mxu0 %v576
    %664 = vmatprep.subr.bf16.mxu0 0
    %665 = vmatpush2.bf16.msra.mxu0 0
    %666 = vmatprep.subr.bf16.mxu0 0
    %667 = vmatpush2.bf16.msra.mxu0 0
    %668 = vmatprep.subr.bf16.mxu0 0
    %669 = vmatpush2.bf16.msra.mxu0 0
    %670 = vmatprep.subr.bf16.mxu0 0
    %671 = vmatpush2.bf16.msra.mxu0 0
    %672 = vmatprep.subr.bf16.mxu0 0
    %673 = vmatpush2.bf16.msra.mxu0 0
    %674 = vmatprep.subr.bf16.mxu0 0
    %675 = vmatpush2.bf16.msra.mxu0 0
    %676 = vmatprep.subr.bf16.mxu0 0
    %677 = vmatpush2.bf16.msra.mxu0 0
    %678 = vmatprep.subr.bf16.mxu0 0
    %679 = vmatpush2.bf16.msra.mxu0 0
    %680 = vmatprep.mubr.bf16.mxu0 0
    %681 = vmatmul.mubr.bf16.gmra.mxu0 %v408
    %v682 = vpop.f32.mrf.mxu0
    %v683 = vadd.f32 %v643, %v682
    %v684 = vpop.f32.mrf.mxu0
    %v685 = vpop.f32.mrf.mxu0
    %v686 = vpop.f32.mrf.mxu0
    %687 = vdwg.mxu0
    %v688 = vunpack.c.l.bf16 %v57
    %v689 = vadd.f32 %v683, %v688
    %v690 = vpack.c.bf16 %v689, %v689
    %vm691 = vcmask 517120
    %692 = vst.msk [vmem:[%s9] sm:$0x3] %vm691, %v690
    // Predicated region
    $region46: #{_lambda_.11} parent=1 // pred_check
      _
    $region47: #{_lambda_.11} parent=1 // pred_check_branch
      %694 = sbr.rel (0) target = $region49
    $region48: #{_lambda_.11} parent=1 // pred_region
      _
    $region49: #{_lambda_.11} parent=1 // pred_fallthru
      _
    // Predicated region
    $region50: #{_lambda_.11} parent=1 // pred_check
      _
    $region51: #{_lambda_.11} parent=1 // pred_check_branch
      %696 = sbr.rel (0) target = $region53
    $region52: #{_lambda_.11} parent=1 // pred_region
      _
    $region53: #{_lambda_.11} parent=1 // pred_fallthru
      _
    %697 = vsyncpa [#allocation3], 1
    %698 = vsyncpa [#allocation5], 1

// kernel: _lambda_.12
$region0: #{_lambda_.12}
  #allocation0 [shape = 'u32[]', space=smem, size = 0x4, offset = 0x4, fixed_abs, tag = 'smem constant byte address 0x4 - core index']
  #allocation1 [shape = 'u32[144,128]{1,0:T(1,128)}', space=vmem, size = 0x12000, scoped, tag = 'internal scratch']
  %s0 = inlined_call_operand.vmem [shape: bf16[2,64], index: 0, kind: input, shape index: {}]
  %s1 = inlined_call_operand.vmem [shape: bf16[2,64], index: 1, kind: input, shape index: {}]
  %s2 = inlined_call_operand.vmem [shape: bf16[64,384], index: 2, kind: input, shape index: {}]
  %s3 = inlined_call_operand.vmem [shape: f32[1,384], index: 3, kind: input, shape index: {}, may-alias: {3,6}]
  %s4 = inlined_call_operand.vmem [shape: f32[1,384], index: 4, kind: input, shape index: {}]
  %s5 = inlined_call_operand.vmem [shape: f32[1,384], index: 5, kind: input, shape index: {}]
  %s6 = inlined_call_operand.vmem [shape: f32[1,384], index: 6, kind: input, shape index: {}, may-alias: {3,6}]
  %s7 = inlined_call_operand.vmem [shape: bf16[384,64], index: 7, kind: input, shape index: {}]
  %s8 = inlined_call_operand.vmem [shape: f32[1,64], index: 8, kind: input, shape index: {}]
  %s9 = inlined_call_operand.vmem [shape: bf16[2,64], index: 9, kind: output, shape index: {}]
  %s10 = sld [smem:[#allocation0]]
  $region46: #{_lambda_.12} parent=0
    _
  %s12 = ssub.s32 1, %s10
  %s13 = scalar_select 0, %s12, %s10
  // Predicated region
  $region2: #{_lambda_.12} parent=0 // pred_check
    _
  $region3: #{_lambda_.12} parent=0 // pred_check_branch
    %15 = sbr.rel (0) target = $region5
  $region4: #{_lambda_.12} parent=0 // pred_region
    _
  $region5: #{_lambda_.12} parent=0 // pred_fallthru
    _
  // Predicated region
  $region6: #{_lambda_.12} parent=0 // pred_check
    _
  $region7: #{_lambda_.12} parent=0 // pred_check_branch
    %17 = sbr.rel (0) target = $region9
  $region8: #{_lambda_.12} parent=0 // pred_region
    _
  $region9: #{_lambda_.12} parent=0 // pred_fallthru
    _
  // Predicated region
  $region10: #{_lambda_.12} parent=0 // pred_check
    _
  $region11: #{_lambda_.12} parent=0 // pred_check_branch
    %19 = sbr.rel (0) target = $region13
  $region12: #{_lambda_.12} parent=0 // pred_region
    _
  $region13: #{_lambda_.12} parent=0 // pred_fallthru
    _
  // Predicated region
  $region14: #{_lambda_.12} parent=0 // pred_check
    _
  $region15: #{_lambda_.12} parent=0 // pred_check_branch
    %21 = sbr.rel (0) target = $region17
  $region16: #{_lambda_.12} parent=0 // pred_region
    _
  $region17: #{_lambda_.12} parent=0 // pred_fallthru
    _
  // Predicated region
  $region18: #{_lambda_.12} parent=0 // pred_check
    _
  $region19: #{_lambda_.12} parent=0 // pred_check_branch
    %23 = sbr.rel (0) target = $region21
  $region20: #{_lambda_.12} parent=0 // pred_region
    _
  $region21: #{_lambda_.12} parent=0 // pred_fallthru
    _
  // Predicated region
  $region22: #{_lambda_.12} parent=0 // pred_check
    _
  $region23: #{_lambda_.12} parent=0 // pred_check_branch
    %25 = sbr.rel (0) target = $region25
  $region24: #{_lambda_.12} parent=0 // pred_region
    _
  $region25: #{_lambda_.12} parent=0 // pred_fallthru
    _
  // Predicated region
  $region26: #{_lambda_.12} parent=0 // pred_check
    _
  $region27: #{_lambda_.12} parent=0 // pred_check_branch
    %27 = sbr.rel (0) target = $region29
  $region28: #{_lambda_.12} parent=0 // pred_region
    _
  $region29: #{_lambda_.12} parent=0 // pred_fallthru
    _
  // Predicated region
  $region30: #{_lambda_.12} parent=0 // pred_check
    _
  $region31: #{_lambda_.12} parent=0 // pred_check_branch
    %29 = sbr.rel (0) target = $region33
  $region32: #{_lambda_.12} parent=0 // pred_region
    _
  $region33: #{_lambda_.12} parent=0 // pred_fallthru
    _
  // Predicated region
  $region34: #{_lambda_.12} parent=0 // pred_check
    _
  $region35: #{_lambda_.12} parent=0 // pred_check_branch
    %31 = sbr.rel (0) target = $region37
  $region36: #{_lambda_.12} parent=0 // pred_region
    _
  $region37: #{_lambda_.12} parent=0 // pred_fallthru
    _
  %v33 = vld [vmem:[%s0] sm:$0x1]
  %v34 = vld [vmem:[%s2] sm:$0xff]
  %v35 = vld [vmem:[%s2 + $0x8] sm:$0xf]
  %v36 = vld [vmem:[%s2 + $0xc] sm:$0xff]
  %v37 = vld [vmem:[%s2 + $0x14] sm:$0xf]
  %v38 = vld [vmem:[%s2 + $0x18] sm:$0xff]
  %v39 = vld [vmem:[%s2 + $0x20] sm:$0xf]
  %v40 = vld [vmem:[%s2 + $0x24] sm:$0xff]
  %v41 = vld [vmem:[%s2 + $0x2c] sm:$0xf]
  %v42 = vld [vmem:[%s2 + $0x30] sm:$0xff]
  %v43 = vld [vmem:[%s2 + $0x38] sm:$0xf]
  %v44 = vld [vmem:[%s2 + $0x3c] sm:$0xff]
  %v45 = vld [vmem:[%s2 + $0x44] sm:$0xf]
  %v46 = vld [vmem:[%s2 + $0x48] sm:$0xff]
  %v47 = vld [vmem:[%s2 + $0x50] sm:$0xf]
  %v48 = vld [vmem:[%s2 + $0x54] sm:$0xff]
  %v49 = vld [vmem:[%s2 + $0x5c] sm:$0xf]
  %v50 = vld [vmem:[%s3] sm:$0x7]
  %v52 = vlaneseq
  %v53 = vshrl.u32 %v52, 7
  %v54 = vsub.s32 0, %v53
  %v55 = vrot.slane %v50, %v54
  %v56 = vlaneseq
  %v57 = vshrl.u32 %v56, 7
  %v58 = vsub.s32 1, %v57
  %v59 = vrot.slane %v50, %v58
  %v60 = vlaneseq
  %v61 = vshrl.u32 %v60, 7
  %v62 = vsub.s32 2, %v61
  %v63 = vrot.slane %v50, %v62
  %v83 = vunpack.c.l.b16 %v34
  %v84 = vunpack.c.h.b16 %v34
  %v85 = vunpack.c.l.b16 %v35
  %v86 = vunpack.c.l.b16 %v36
  %v87 = vunpack.c.h.b16 %v36
  %v88 = vunpack.c.l.b16 %v37
  %v89 = vunpack.c.l.b16 %v38
  %v90 = vunpack.c.h.b16 %v38
  %v91 = vunpack.c.l.b16 %v39
  %v92 = vunpack.c.l.b16 %v40
  %v93 = vunpack.c.h.b16 %v40
  %v94 = vunpack.c.l.b16 %v41
  %v95 = vunpack.c.l.b16 %v42
  %v96 = vunpack.c.h.b16 %v42
  %v97 = vunpack.c.l.b16 %v43
  %v98 = vunpack.c.l.b16 %v44
  %v99 = vunpack.c.h.b16 %v44
  %v100 = vunpack.c.l.b16 %v45
  %v101 = vunpack.c.l.b16 %v46
  %v102 = vunpack.c.h.b16 %v46
  %v103 = vunpack.c.l.b16 %v47
  %v104 = vunpack.c.l.b16 %v48
  %v105 = vunpack.c.h.b16 %v48
  %v106 = vunpack.c.l.b16 %v49
  %v107 = vpack.c.b16 %v86, %v83
  %v108 = vpack.c.b16 %v87, %v84
  %v109 = vpack.c.b16 %v88, %v85
  %v110 = vpack.c.b16 %v92, %v89
  %v111 = vpack.c.b16 %v93, %v90
  %v112 = vpack.c.b16 %v94, %v91
  %v113 = vpack.c.b16 %v98, %v95
  %v114 = vpack.c.b16 %v99, %v96
  %v115 = vpack.c.b16 %v100, %v97
  %v116 = vpack.c.b16 %v104, %v101
  %v117 = vpack.c.b16 %v105, %v102
  %v118 = vpack.c.b16 %v106, %v103
  %vm131 = vcmask 523264
  %v133 = vsel %vm131, %v33, 0
  %135 = vmatprep.subr.bf16.mxu0 0
  %136 = vmatpush1.bf16.msra.mxu0 0
  %137 = vmatprep.subr.bf16.mxu0 0
  %138 = vmatpush1.bf16.msra.mxu0 0
  %139 = vmatprep.subr.bf16.mxu0 0
  %140 = vmatpush1.bf16.msra.mxu0 0
  %141 = vmatprep.subr.bf16.mxu0 0
  %142 = vmatpush1.bf16.msra.mxu0 0
  %143 = vmatprep.subr.bf16.mxu0 %v117
  %144 = vmatpush1.bf16.msra.mxu0 %v116
  %145 = vmatprep.subr.bf16.mxu0 %v114
  %146 = vmatpush1.bf16.msra.mxu0 %v113
  %147 = vmatprep.subr.bf16.mxu0 %v111
  %148 = vmatpush1.bf16.msra.mxu0 %v110
  %149 = vmatprep.subr.bf16.mxu0 %v108
  %150 = vmatpush1.bf16.msra.mxu0 %v107
  %151 = vmatprep.subr.bf16.mxu0 0
  %152 = vmatpush2.bf16.msra.mxu0 0
  %153 = vmatprep.subr.bf16.mxu0 0
  %154 = vmatpush2.bf16.msra.mxu0 0
  %155 = vmatprep.subr.bf16.mxu0 0
  %156 = vmatpush2.bf16.msra.mxu0 0
  %157 = vmatprep.subr.bf16.mxu0 0
  %158 = vmatpush2.bf16.msra.mxu0 0
  %159 = vmatprep.subr.bf16.mxu0 0
  %160 = vmatpush2.bf16.msra.mxu0 0
  %161 = vmatprep.subr.bf16.mxu0 0
  %162 = vmatpush2.bf16.msra.mxu0 0
  %163 = vmatprep.subr.bf16.mxu0 0
  %164 = vmatpush2.bf16.msra.mxu0 0
  %165 = vmatprep.subr.bf16.mxu0 0
  %166 = vmatpush2.bf16.msra.mxu0 0
  %167 = vmatprep.mubr.bf16.mxu0 0
  %168 = vmatmul.mubr.bf16.gmra.mxu0 %v133
  %v169 = vpop.f32.mrf.mxu0
  %v170 = vadd.f32 %v55, %v169
  %v171 = vpop.f32.mrf.mxu0
  %v172 = vadd.f32 %v59, %v171
  %v173 = vpop.f32.mrf.mxu0
  %v174 = vpop.f32.mrf.mxu0
  %175 = vdwg.mxu0
  %176 = vmatprep.subr.bf16.mxu0 0
  %177 = vmatpush1.bf16.msra.mxu0 0
  %178 = vmatprep.subr.bf16.mxu0 0
  %179 = vmatpush1.bf16.msra.mxu0 0
  %180 = vmatprep.subr.bf16.mxu0 0
  %181 = vmatpush1.bf16.msra.mxu0 0
  %182 = vmatprep.subr.bf16.mxu0 0
  %183 = vmatpush1.bf16.msra.mxu0 0
  %184 = vmatprep.subr.bf16.mxu0 0
  %185 = vmatpush1.bf16.msra.mxu0 %v118
  %186 = vmatprep.subr.bf16.mxu0 0
  %187 = vmatpush1.bf16.msra.mxu0 %v115
  %188 = vmatprep.subr.bf16.mxu0 0
  %189 = vmatpush1.bf16.msra.mxu0 %v112
  %190 = vmatprep.subr.bf16.mxu0 0
  %191 = vmatpush1.bf16.msra.mxu0 %v109
  %192 = vmatprep.subr.bf16.mxu0 0
  %193 = vmatpush2.bf16.msra.mxu0 0
  %194 = vmatprep.subr.bf16.mxu0 0
  %195 = vmatpush2.bf16.msra.mxu0 0
  %196 = vmatprep.subr.bf16.mxu0 0
  %197 = vmatpush2.bf16.msra.mxu0 0
  %198 = vmatprep.subr.bf16.mxu0 0
  %199 = vmatpush2.bf16.msra.mxu0 0
  %200 = vmatprep.subr.bf16.mxu0 0
  %201 = vmatpush2.bf16.msra.mxu0 0
  %202 = vmatprep.subr.bf16.mxu0 0
  %203 = vmatpush2.bf16.msra.mxu0 0
  %204 = vmatprep.subr.bf16.mxu0 0
  %205 = vmatpush2.bf16.msra.mxu0 0
  %206 = vmatprep.subr.bf16.mxu0 0
  %207 = vmatpush2.bf16.msra.mxu0 0
  %208 = vmatprep.mubr.bf16.mxu0 0
  %209 = vmatmul.mubr.bf16.gmra.mxu0 %v133
  %v210 = vpop.f32.mrf.mxu0
  %v211 = vadd.f32 %v63, %v210
  %v212 = vpop.f32.mrf.mxu0
  %v213 = vpop.f32.mrf.mxu0
  %v214 = vpop.f32.mrf.mxu0
  %215 = vdwg.mxu0
  %v216 = vmax.f32 %v170, 0.0
  %v217 = vmax.f32 %v172, 0.0
  %v218 = vmax.f32 %v211, 0.0
  %v219 = vmin.f32 %v216, 6.0
  %v220 = vmin.f32 %v217, 6.0
  %v221 = vmin.f32 %v218, 6.0
  %v222 = vld [vmem:[%s1] sm:$0x1]
  %v224 = vsel %vm131, %v222, 0
  %226 = vmatprep.subr.bf16.mxu0 0
  %227 = vmatpush1.bf16.msra.mxu0 0
  %228 = vmatprep.subr.bf16.mxu0 0
  %229 = vmatpush1.bf16.msra.mxu0 0
  %230 = vmatprep.subr.bf16.mxu0 0
  %231 = vmatpush1.bf16.msra.mxu0 0
  %232 = vmatprep.subr.bf16.mxu0 0
  %233 = vmatpush1.bf16.msra.mxu0 0
  %234 = vmatprep.subr.bf16.mxu0 %v117
  %235 = vmatpush1.bf16.msra.mxu0 %v116
  %236 = vmatprep.subr.bf16.mxu0 %v114
  %237 = vmatpush1.bf16.msra.mxu0 %v113
  %238 = vmatprep.subr.bf16.mxu0 %v111
  %239 = vmatpush1.bf16.msra.mxu0 %v110
  %240 = vmatprep.subr.bf16.mxu0 %v108
  %241 = vmatpush1.bf16.msra.mxu0 %v107
  %242 = vmatprep.subr.bf16.mxu0 0
  %243 = vmatpush2.bf16.msra.mxu0 0
  %244 = vmatprep.subr.bf16.mxu0 0
  %245 = vmatpush2.bf16.msra.mxu0 0
  %246 = vmatprep.subr.bf16.mxu0 0
  %247 = vmatpush2.bf16.msra.mxu0 0
  %248 = vmatprep.subr.bf16.mxu0 0
  %249 = vmatpush2.bf16.msra.mxu0 0
  %250 = vmatprep.subr.bf16.mxu0 0
  %251 = vmatpush2.bf16.msra.mxu0 0
  %252 = vmatprep.subr.bf16.mxu0 0
  %253 = vmatpush2.bf16.msra.mxu0 0
  %254 = vmatprep.subr.bf16.mxu0 0
  %255 = vmatpush2.bf16.msra.mxu0 0
  %256 = vmatprep.subr.bf16.mxu0 0
  %257 = vmatpush2.bf16.msra.mxu0 0
  %258 = vmatprep.mubr.bf16.mxu0 0
  %259 = vmatmul.mubr.bf16.gmra.mxu0 %v224
  %v260 = vpop.f32.mrf.mxu0
  %v261 = vadd.f32 %v55, %v260
  %v262 = vpop.f32.mrf.mxu0
  %v263 = vadd.f32 %v59, %v262
  %v264 = vpop.f32.mrf.mxu0
  %v265 = vpop.f32.mrf.mxu0
  %266 = vdwg.mxu0
  %267 = vmatprep.subr.bf16.mxu0 0
  %268 = vmatpush1.bf16.msra.mxu0 0
  %269 = vmatprep.subr.bf16.mxu0 0
  %270 = vmatpush1.bf16.msra.mxu0 0
  %271 = vmatprep.subr.bf16.mxu0 0
  %272 = vmatpush1.bf16.msra.mxu0 0
  %273 = vmatprep.subr.bf16.mxu0 0
  %274 = vmatpush1.bf16.msra.mxu0 0
  %275 = vmatprep.subr.bf16.mxu0 0
  %276 = vmatpush1.bf16.msra.mxu0 %v118
  %277 = vmatprep.subr.bf16.mxu0 0
  %278 = vmatpush1.bf16.msra.mxu0 %v115
  %279 = vmatprep.subr.bf16.mxu0 0
  %280 = vmatpush1.bf16.msra.mxu0 %v112
  %281 = vmatprep.subr.bf16.mxu0 0
  %282 = vmatpush1.bf16.msra.mxu0 %v109
  %283 = vmatprep.subr.bf16.mxu0 0
  %284 = vmatpush2.bf16.msra.mxu0 0
  %285 = vmatprep.subr.bf16.mxu0 0
  %286 = vmatpush2.bf16.msra.mxu0 0
  %287 = vmatprep.subr.bf16.mxu0 0
  %288 = vmatpush2.bf16.msra.mxu0 0
  %289 = vmatprep.subr.bf16.mxu0 0
  %290 = vmatpush2.bf16.msra.mxu0 0
  %291 = vmatprep.subr.bf16.mxu0 0
  %292 = vmatpush2.bf16.msra.mxu0 0
  %293 = vmatprep.subr.bf16.mxu0 0
  %294 = vmatpush2.bf16.msra.mxu0 0
  %295 = vmatprep.subr.bf16.mxu0 0
  %296 = vmatpush2.bf16.msra.mxu0 0
  %297 = vmatprep.subr.bf16.mxu0 0
  %298 = vmatpush2.bf16.msra.mxu0 0
  %299 = vmatprep.mubr.bf16.mxu0 0
  %300 = vmatmul.mubr.bf16.gmra.mxu0 %v224
  %v301 = vpop.f32.mrf.mxu0
  %v302 = vadd.f32 %v63, %v301
  %v303 = vpop.f32.mrf.mxu0
  %v304 = vpop.f32.mrf.mxu0
  %v305 = vpop.f32.mrf.mxu0
  %306 = vdwg.mxu0
  %v307 = vmax.f32 %v261, 0.0
  %v308 = vmax.f32 %v263, 0.0
  %v309 = vmax.f32 %v302, 0.0
  %v310 = vmin.f32 %v307, 6.0
  %v311 = vmin.f32 %v308, 6.0
  %v312 = vmin.f32 %v309, 6.0
  %v313 = vld [vmem:[%s4] sm:$0x7]
  %v315 = vlaneseq
  %v316 = vshrl.u32 %v315, 7
  %v317 = vsub.s32 0, %v316
  %v318 = vrot.slane %v313, %v317
  %v319 = vlaneseq
  %v320 = vshrl.u32 %v319, 7
  %v321 = vsub.s32 1, %v320
  %v322 = vrot.slane %v313, %v321
  %v323 = vlaneseq
  %v324 = vshrl.u32 %v323, 7
  %v325 = vsub.s32 2, %v324
  %v326 = vrot.slane %v313, %v325
  %v330 = vmul.f32 %v219, %v318
  %v331 = vmul.f32 %v220, %v322
  %v332 = vmul.f32 %v221, %v326
  %v333 = vld [vmem:[%s5] sm:$0x7]
  %v335 = vlaneseq
  %v336 = vshrl.u32 %v335, 7
  %v337 = vsub.s32 0, %v336
  %v338 = vrot.slane %v333, %v337
  %v339 = vlaneseq
  %v340 = vshrl.u32 %v339, 7
  %v341 = vsub.s32 1, %v340
  %v342 = vrot.slane %v333, %v341
  %v343 = vlaneseq
  %v344 = vshrl.u32 %v343, 7
  %v345 = vsub.s32 2, %v344
  %v346 = vrot.slane %v333, %v345
  %v350 = vmul.f32 %v310, %v338
  %v351 = vmul.f32 %v311, %v342
  %v352 = vmul.f32 %v312, %v346
  %v353 = vadd.f32 %v330, %v350
  %v354 = vadd.f32 %v331, %v351
  %v355 = vadd.f32 %v332, %v352
  %v356 = vld [vmem:[%s6] sm:$0x7]
  %v358 = vlaneseq
  %v359 = vshrl.u32 %v358, 7
  %v360 = vsub.s32 0, %v359
  %v361 = vrot.slane %v356, %v360
  %v362 = vlaneseq
  %v363 = vshrl.u32 %v362, 7
  %v364 = vsub.s32 1, %v363
  %v365 = vrot.slane %v356, %v364
  %v366 = vlaneseq
  %v367 = vshrl.u32 %v366, 7
  %v368 = vsub.s32 2, %v367
  %v369 = vrot.slane %v356, %v368
  %v373 = vadd.f32 %v353, %v361
  %v374 = vadd.f32 %v354, %v365
  %v375 = vadd.f32 %v355, %v369
  %v376 = vmax.f32 %v373, 0.0
  %v377 = vmax.f32 %v374, 0.0
  %v378 = vmax.f32 %v375, 0.0
  %v379 = vmin.f32 %v376, 6.0
  %v380 = vmin.f32 %v377, 6.0
  %v381 = vmin.f32 %v378, 6.0
  %v382 = vpack.c.bf16 %v379, %v379
  %v383 = vpack.c.bf16 %v380, %v380
  %v384 = vpack.c.bf16 %v381, %v381
  %v385 = vld [vmem:[%s7] sm:$0xf]
  %v386 = vld [vmem:[%s7 + $0x4] sm:$0xf]
  %v387 = vld [vmem:[%s7 + $0x8] sm:$0xf]
  %v388 = vld [vmem:[%s7 + $0xc] sm:$0xf]
  %v389 = vld [vmem:[%s7 + $0x10] sm:$0xf]
  %v390 = vld [vmem:[%s7 + $0x14] sm:$0xf]
  %v391 = vld [vmem:[%s7 + $0x18] sm:$0xf]
  %v392 = vld [vmem:[%s7 + $0x1c] sm:$0xf]
  %v393 = vld [vmem:[%s7 + $0x20] sm:$0xf]
  %v394 = vld [vmem:[%s7 + $0x24] sm:$0xf]
  %v395 = vld [vmem:[%s7 + $0x28] sm:$0xf]
  %v396 = vld [vmem:[%s7 + $0x2c] sm:$0xf]
  %v397 = vld [vmem:[%s7 + $0x30] sm:$0xf]
  %v398 = vld [vmem:[%s7 + $0x34] sm:$0xf]
  %v399 = vld [vmem:[%s7 + $0x38] sm:$0xf]
  %v400 = vld [vmem:[%s7 + $0x3c] sm:$0xf]
  %v401 = vld [vmem:[%s7 + $0x40] sm:$0xf]
  %v402 = vld [vmem:[%s7 + $0x44] sm:$0xf]
  %v403 = vld [vmem:[%s7 + $0x48] sm:$0xf]
  %v404 = vld [vmem:[%s7 + $0x4c] sm:$0xf]
  %v405 = vld [vmem:[%s7 + $0x50] sm:$0xf]
  %v406 = vld [vmem:[%s7 + $0x54] sm:$0xf]
  %v407 = vld [vmem:[%s7 + $0x58] sm:$0xf]
  %v408 = vld [vmem:[%s7 + $0x5c] sm:$0xf]
  %v409 = vld [vmem:[%s7 + $0x60] sm:$0xf]
  %v410 = vld [vmem:[%s7 + $0x64] sm:$0xf]
  %v411 = vld [vmem:[%s7 + $0x68] sm:$0xf]
  %v412 = vld [vmem:[%s7 + $0x6c] sm:$0xf]
  %v413 = vld [vmem:[%s7 + $0x70] sm:$0xf]
  %v414 = vld [vmem:[%s7 + $0x74] sm:$0xf]
  %v415 = vld [vmem:[%s7 + $0x78] sm:$0xf]
  %v416 = vld [vmem:[%s7 + $0x7c] sm:$0xf]
  %v417 = vld [vmem:[%s7 + $0x80] sm:$0xf]
  %v418 = vld [vmem:[%s7 + $0x84] sm:$0xf]
  %v419 = vld [vmem:[%s7 + $0x88] sm:$0xf]
  %v420 = vld [vmem:[%s7 + $0x8c] sm:$0xf]
  %v421 = vld [vmem:[%s7 + $0x90] sm:$0xf]
  %v422 = vld [vmem:[%s7 + $0x94] sm:$0xf]
  %v423 = vld [vmem:[%s7 + $0x98] sm:$0xf]
  %v424 = vld [vmem:[%s7 + $0x9c] sm:$0xf]
  %v425 = vld [vmem:[%s7 + $0xa0] sm:$0xf]
  %v426 = vld [vmem:[%s7 + $0xa4] sm:$0xf]
  %v427 = vld [vmem:[%s7 + $0xa8] sm:$0xf]
  %v428 = vld [vmem:[%s7 + $0xac] sm:$0xf]
  %v429 = vld [vmem:[%s7 + $0xb0] sm:$0xf]
  %v430 = vld [vmem:[%s7 + $0xb4] sm:$0xf]
  %v431 = vld [vmem:[%s7 + $0xb8] sm:$0xf]
  %v432 = vld [vmem:[%s7 + $0xbc] sm:$0xf]
  %v433 = vld [vmem:[%s8] sm:$0x1]
  %v435 = vlaneseq
  %v436 = vshrl.u32 %v435, 7
  %v437 = vsub.s32 0, %v436
  %v438 = vrot.slane %v433, %v437
  %v488 = vunpack.c.l.b16 %v385
  %v489 = vunpack.c.l.b16 %v386
  %v490 = vunpack.c.l.b16 %v387
  %v491 = vunpack.c.l.b16 %v388
  %v492 = vunpack.c.l.b16 %v389
  %v493 = vunpack.c.l.b16 %v390
  %v494 = vunpack.c.l.b16 %v391
  %v495 = vunpack.c.l.b16 %v392
  %v496 = vunpack.c.l.b16 %v393
  %v497 = vunpack.c.l.b16 %v394
  %v498 = vunpack.c.l.b16 %v395
  %v499 = vunpack.c.l.b16 %v396
  %v500 = vunpack.c.l.b16 %v397
  %v501 = vunpack.c.l.b16 %v398
  %v502 = vunpack.c.l.b16 %v399
  %v503 = vunpack.c.l.b16 %v400
  %v504 = vunpack.c.l.b16 %v401
  %v505 = vunpack.c.l.b16 %v402
  %v506 = vunpack.c.l.b16 %v403
  %v507 = vunpack.c.l.b16 %v404
  %v508 = vunpack.c.l.b16 %v405
  %v509 = vunpack.c.l.b16 %v406
  %v510 = vunpack.c.l.b16 %v407
  %v511 = vunpack.c.l.b16 %v408
  %v512 = vunpack.c.l.b16 %v409
  %v513 = vunpack.c.l.b16 %v410
  %v514 = vunpack.c.l.b16 %v411
  %v515 = vunpack.c.l.b16 %v412
  %v516 = vunpack.c.l.b16 %v413
  %v517 = vunpack.c.l.b16 %v414
  %v518 = vunpack.c.l.b16 %v415
  %v519 = vunpack.c.l.b16 %v416
  %v520 = vunpack.c.l.b16 %v417
  %v521 = vunpack.c.l.b16 %v418
  %v522 = vunpack.c.l.b16 %v419
  %v523 = vunpack.c.l.b16 %v420
  %v524 = vunpack.c.l.b16 %v421
  %v525 = vunpack.c.l.b16 %v422
  %v526 = vunpack.c.l.b16 %v423
  %v527 = vunpack.c.l.b16 %v424
  %v528 = vunpack.c.l.b16 %v425
  %v529 = vunpack.c.l.b16 %v426
  %v530 = vunpack.c.l.b16 %v427
  %v531 = vunpack.c.l.b16 %v428
  %v532 = vunpack.c.l.b16 %v429
  %v533 = vunpack.c.l.b16 %v430
  %v534 = vunpack.c.l.b16 %v431
  %v535 = vunpack.c.l.b16 %v432
  %v536 = vpack.c.b16 %v489, %v488
  %v537 = vpack.c.b16 %v491, %v490
  %v538 = vpack.c.b16 %v493, %v492
  %v539 = vpack.c.b16 %v495, %v494
  %v540 = vpack.c.b16 %v497, %v496
  %v541 = vpack.c.b16 %v499, %v498
  %v542 = vpack.c.b16 %v501, %v500
  %v543 = vpack.c.b16 %v503, %v502
  %v544 = vpack.c.b16 %v505, %v504
  %v545 = vpack.c.b16 %v507, %v506
  %v546 = vpack.c.b16 %v509, %v508
  %v547 = vpack.c.b16 %v511, %v510
  %v548 = vpack.c.b16 %v513, %v512
  %v549 = vpack.c.b16 %v515, %v514
  %v550 = vpack.c.b16 %v517, %v516
  %v551 = vpack.c.b16 %v519, %v518
  %v552 = vpack.c.b16 %v521, %v520
  %v553 = vpack.c.b16 %v523, %v522
  %v554 = vpack.c.b16 %v525, %v524
  %v555 = vpack.c.b16 %v527, %v526
  %v556 = vpack.c.b16 %v529, %v528
  %v557 = vpack.c.b16 %v531, %v530
  %v558 = vpack.c.b16 %v533, %v532
  %v559 = vpack.c.b16 %v535, %v534
  %584 = vmatprep.subr.bf16.mxu0 0
  %585 = vmatpush1.bf16.msra.mxu0 %v543
  %586 = vmatprep.subr.bf16.mxu0 0
  %587 = vmatpush1.bf16.msra.mxu0 %v542
  %588 = vmatprep.subr.bf16.mxu0 0
  %589 = vmatpush1.bf16.msra.mxu0 %v541
  %590 = vmatprep.subr.bf16.mxu0 0
  %591 = vmatpush1.bf16.msra.mxu0 %v540
  %592 = vmatprep.subr.bf16.mxu0 0
  %593 = vmatpush1.bf16.msra.mxu0 %v539
  %594 = vmatprep.subr.bf16.mxu0 0
  %595 = vmatpush1.bf16.msra.mxu0 %v538
  %596 = vmatprep.subr.bf16.mxu0 0
  %597 = vmatpush1.bf16.msra.mxu0 %v537
  %598 = vmatprep.subr.bf16.mxu0 0
  %599 = vmatpush1.bf16.msra.mxu0 %v536
  %600 = vmatprep.subr.bf16.mxu0 0
  %601 = vmatpush2.bf16.msra.mxu0 %v551
  %602 = vmatprep.subr.bf16.mxu0 0
  %603 = vmatpush2.bf16.msra.mxu0 %v550
  %604 = vmatprep.subr.bf16.mxu0 0
  %605 = vmatpush2.bf16.msra.mxu0 %v549
  %606 = vmatprep.subr.bf16.mxu0 0
  %607 = vmatpush2.bf16.msra.mxu0 %v548
  %608 = vmatprep.subr.bf16.mxu0 0
  %609 = vmatpush2.bf16.msra.mxu0 %v547
  %610 = vmatprep.subr.bf16.mxu0 0
  %611 = vmatpush2.bf16.msra.mxu0 %v546
  %612 = vmatprep.subr.bf16.mxu0 0
  %613 = vmatpush2.bf16.msra.mxu0 %v545
  %614 = vmatprep.subr.bf16.mxu0 0
  %615 = vmatpush2.bf16.msra.mxu0 %v544
  %616 = vmatprep.mubr.bf16.mxu0 %v383
  %617 = vmatmul.mubr.bf16.gmra.mxu0 %v382
  %v618 = vpop.f32.mrf.mxu0
  %v619 = vadd.f32 %v438, %v618
  %v620 = vpop.f32.mrf.mxu0
  %v621 = vpop.f32.mrf.mxu0
  %v622 = vpop.f32.mrf.mxu0
  %623 = vdwg.mxu0
  %624 = vmatprep.subr.bf16.mxu0 0
  %625 = vmatpush1.bf16.msra.mxu0 %v559
  %626 = vmatprep.subr.bf16.mxu0 0
  %627 = vmatpush1.bf16.msra.mxu0 %v558
  %628 = vmatprep.subr.bf16.mxu0 0
  %629 = vmatpush1.bf16.msra.mxu0 %v557
  %630 = vmatprep.subr.bf16.mxu0 0
  %631 = vmatpush1.bf16.msra.mxu0 %v556
  %632 = vmatprep.subr.bf16.mxu0 0
  %633 = vmatpush1.bf16.msra.mxu0 %v555
  %634 = vmatprep.subr.bf16.mxu0 0
  %635 = vmatpush1.bf16.msra.mxu0 %v554
  %636 = vmatprep.subr.bf16.mxu0 0
  %637 = vmatpush1.bf16.msra.mxu0 %v553
  %638 = vmatprep.subr.bf16.mxu0 0
  %639 = vmatpush1.bf16.msra.mxu0 %v552
  %640 = vmatprep.subr.bf16.mxu0 0
  %641 = vmatpush2.bf16.msra.mxu0 0
  %642 = vmatprep.subr.bf16.mxu0 0
  %643 = vmatpush2.bf16.msra.mxu0 0
  %644 = vmatprep.subr.bf16.mxu0 0
  %645 = vmatpush2.bf16.msra.mxu0 0
  %646 = vmatprep.subr.bf16.mxu0 0
  %647 = vmatpush2.bf16.msra.mxu0 0
  %648 = vmatprep.subr.bf16.mxu0 0
  %649 = vmatpush2.bf16.msra.mxu0 0
  %650 = vmatprep.subr.bf16.mxu0 0
  %651 = vmatpush2.bf16.msra.mxu0 0
  %652 = vmatprep.subr.bf16.mxu0 0
  %653 = vmatpush2.bf16.msra.mxu0 0
  %654 = vmatprep.subr.bf16.mxu0 0
  %655 = vmatpush2.bf16.msra.mxu0 0
  %656 = vmatprep.mubr.bf16.mxu0 0
  %657 = vmatmul.mubr.bf16.gmra.mxu0 %v384
  %v658 = vpop.f32.mrf.mxu0
  %v659 = vadd.f32 %v619, %v658
  %v660 = vpop.f32.mrf.mxu0
  %v661 = vpop.f32.mrf.mxu0
  %v662 = vpop.f32.mrf.mxu0
  %663 = vdwg.mxu0
  %v664 = vpack.c.bf16 %v659, %v659
  %vm665 = vcmask 516096
  %666 = vst.msk [vmem:[%s9] sm:$0x1] %vm665, %v664
  // Predicated region
  $region38: #{_lambda_.12} parent=0 // pred_check
    _
  $region39: #{_lambda_.12} parent=0 // pred_check_branch
    %668 = sbr.rel (0) target = $region41
  $region40: #{_lambda_.12} parent=0 // pred_region
    _
  $region41: #{_lambda_.12} parent=0 // pred_fallthru
    _
  // Predicated region
  $region42: #{_lambda_.12} parent=0 // pred_check
    _
  $region43: #{_lambda_.12} parent=0 // pred_check_branch
    %670 = sbr.rel (0) target = $region45
  $region44: #{_lambda_.12} parent=0 // pred_region
    _
  $region45: #{_lambda_.12} parent=0 // pred_fallthru
    _

</llo_original>
